<compile_context>
chip_gen: v6e
topology: v6e:2x2x1
jax: 0.10.0
libtpu: 0.0.40
codegen_flags: <defaults>
</compile_context>

<pallas_src>
import functools
import math

import numpy as np
import jax
import jax.numpy as jnp
from jax import lax
from jax.experimental import pallas as pl
from jax.experimental.pallas import tpu as pltpu


# --------------------------------------------------------------------------- positional encoding
def positional_encoding_table(n_position, d_model):
    position = np.arange(n_position, dtype=np.float64)[:, None]
    div = np.power(10000.0, (2.0 * (np.arange(d_model)[None, :] // 2)) / d_model)
    angle = position / div
    table = np.zeros((n_position, d_model), dtype=np.float64)
    table[:, 0::2] = np.sin(angle[:, 0::2])
    table[:, 1::2] = np.cos(angle[:, 1::2])
    return jnp.asarray(table, jnp.float32)


# --------------------------------------------------------------------------- fused Pallas kernel
def _decoder_block_kernel(
        x_ref, kv_ref, pe_ref,
        sa_wqkv_ref, sa_bqkv_ref, sa_wo_ref, sa_bo_ref,
        ca_wq_ref, ca_bq_ref, ca_wkv_ref, ca_bkv_ref, ca_wo_ref, ca_bo_ref,
        w1_ref, b1_ref, w2p_ref, b2p_ref,
        hm_self_ref, hm_cross_ref, bias_self_ref, bias_cross_ref,
        bsum_self_ref, bsum_cross_ref, fold_ht_ref, fold_hs_ref,
        rep_ref, node_sel_ref,
        out_ref,
        *, num_heads):
    """One batch element per grid step.

    x_ref  : (1, N*T, E) decoder hidden states, rows ordered (node, time)
    kv_ref : (1, N*S, E) encoder states, rows ordered (node, enc-step)
    out_ref: (1, N*T, OUT_W) packed slab: cols [0,E)=output, [E,E+T)=A_st, [E+T,E+T+S)=cross attn
    """
    f32, bf16 = jnp.float32, jnp.bfloat16
    H = num_heads
    NT = x_ref.shape[1]
    E = x_ref.shape[2]
    hd = E // H
    scale = 1.0 / math.sqrt(hd)

    def contract_last(a_bf, b_bf):
        # (M, E) x (L, E) -> (M, L), contraction over E (no transposes materialized)
        return lax.dot_general(a_bf, b_bf, (((1,), (1,)), ((), ())),
                               preferred_element_type=f32)

    def expand_heads(m, hm):
        # (L, E) -> block-diagonal-over-heads (H*L, E): row block h keeps only head-h columns.
        rep = jnp.concatenate([m] * H, axis=0)
        return (rep * hm).astype(bf16)

    def block_softmax(scores, bias, bsum):
        # scores: (R, H*L). bias: additive mask (0 / -1e30). bsum: per-head block-sum matrix.
        s = scores + bias
        s = s - jnp.max(s, axis=-1, keepdims=True)           # row max; per-block invariant
        e = jnp.exp(s)                                        # masked entries -> exactly 0
        denom = jnp.dot(e, bsum, preferred_element_type=f32)  # per-head block sums, broadcast
        return e * pl.reciprocal(denom, approx=True)

    # ---- fused q/k/v projection: pos-encoded + raw streams in ONE stacked matmul --------------
    x = x_ref[0]                                              # (NT, E) f32
    x_pe = x + pe_ref[...]
    x2 = jnp.concatenate([x_pe, x], axis=0).astype(bf16)      # (2*NT, E)
    proj = (jnp.dot(x2, sa_wqkv_ref[...], preferred_element_type=f32)
            + sa_bqkv_ref[...])                               # (2*NT, 3E)
    q_t, k_t, v_t = proj[:NT, :E], proj[:NT, E:2 * E], proj[:NT, 2 * E:]
    q_s, k_s = proj[NT:, :E], proj[NT:, E:2 * E]              # weights-only spatial pass

    # ---- all-heads block-diagonal scores (lane-dense (NT, H*NT)) + fused double softmax --------
    k_bd_t = expand_heads(k_t, hm_self_ref[...])              # (H*NT, E)
    v_bd_t = expand_heads(v_t, hm_self_ref[...])
    k_bd_s = expand_heads(k_s, hm_self_ref[...])
    s_t = contract_last((q_t * scale).astype(bf16), k_bd_t)   # (NT, H*NT)
    s_s = contract_last((q_s * scale).astype(bf16), k_bd_s)   # (NT, H*NT)
    p_both = block_softmax(jnp.concatenate([s_t, s_s], axis=0),
                           bias_self_ref[...], bsum_self_ref[...])   # (2*NT, H*NT)
    p_t, p_s = p_both[:NT], p_both[NT:]

    # ---- temporal context (all heads in one matmul) + output projection ------------------------
    ctx_t = jnp.dot(p_t.astype(bf16), v_bd_t, preferred_element_type=f32)       # (NT, E)
    dec = (jnp.dot(ctx_t.astype(bf16), sa_wo_ref[...], preferred_element_type=f32)
           + sa_bo_ref[...])                                                     # (NT, E)

    # ---- A_st = A_s @ A_t (head-averaged), already placed into packed lanes [E, E+T) ----------
    at_fold = jnp.dot(p_t, fold_ht_ref[...], preferred_element_type=f32)         # (NT, OUT_W)
    st_placed = jnp.dot(p_s, jnp.concatenate([at_fold] * H, axis=0),
                        preferred_element_type=f32)                              # (NT, OUT_W)

    # ---- apply block-diagonal A_st to the temporal output --------------------------------------
    st_big = (jnp.dot(st_placed, rep_ref[...], preferred_element_type=f32)
              * node_sel_ref[...])                                                # (NT, NT)
    dec2 = jnp.dot(st_big, dec, preferred_element_type=f32)                       # (NT, E)

    # ---- cross attention against encoder states (all heads, block-diagonal K/V) ----------------
    kv = kv_ref[0]                                                                 # (NS, E)
    q_c = (jnp.dot(dec2.astype(bf16), ca_wq_ref[...], preferred_element_type=f32)
           + ca_bq_ref[...])
    kvp = (jnp.dot(kv.astype(bf16), ca_wkv_ref[...], preferred_element_type=f32)
           + ca_bkv_ref[...])                                                      # (NS, 2E)
    k_c, v_c = kvp[:, :E], kvp[:, E:]
    k_bd_c = expand_heads(k_c, hm_cross_ref[...])                                  # (H*NS, E)
    v_bd_c = expand_heads(v_c, hm_cross_ref[...])
    s_c = contract_last((q_c * scale).astype(bf16), k_bd_c)                        # (NT, H*NS)
    p_c = block_softmax(s_c, bias_cross_ref[...], bsum_cross_ref[...])
    cross_placed = jnp.dot(p_c, fold_hs_ref[...], preferred_element_type=f32)      # (NT, OUT_W)
    ctx_c = jnp.dot(p_c.astype(bf16), v_bd_c, preferred_element_type=f32)          # (NT, E)
    dec_c = (jnp.dot(ctx_c.astype(bf16), ca_wo_ref[...], preferred_element_type=f32)
             + ca_bo_ref[...])

    # ---- feed-forward; padded W2 writes the output straight into packed lanes [0, E) ----------
    h1 = jnp.maximum(jnp.dot(dec_c.astype(bf16), w1_ref[...],
                             preferred_element_type=f32) + b1_ref[...], 0.0)       # (NT, F)
    out_placed = (jnp.dot(h1.astype(bf16), w2p_ref[...], preferred_element_type=f32)
                  + b2p_ref[...])                                                  # (NT, OUT_W)

    # single lane-dense, unmasked store of the packed slab
    out_ref[0] = out_placed + st_placed + cross_placed


# --------------------------------------------------------------------------- constant tables
def _build_constants(N, T, S, E, H, out_w):
    NT, NS = N * T, N * S
    hd = E // H
    NEG = -1e30
    f = lambda a: np.asarray(a, np.float32)

    # head-column masks used to expand K/V into block-diagonal-over-heads operands
    hm_self = f((np.arange(H * NT)[:, None] // NT) == (np.arange(E)[None, :] // hd))
    hm_cross = f((np.arange(H * NS)[:, None] // NS) == (np.arange(E)[None, :] // hd))

    # additive score masks (0 allowed / -1e30 masked), column index = h*L + key
    q_idx = np.arange(NT)
    key_self = np.arange(H * NT) % NT
    node_ok = (q_idx[:, None] // T) == (key_self[None, :] // T)     # temporal: same node
    time_ok = (q_idx[:, None] % T) == (key_self[None, :] % T)       # spatial: same time
    bias_self = np.where(np.concatenate([node_ok, time_ok], axis=0), 0.0, NEG).astype(np.float32)
    key_cross = np.arange(H * NS) % NS
    cross_ok = (q_idx[:, None] // T) == (key_cross[None, :] // S)   # cross: same node
    bias_cross = np.where(cross_ok, 0.0, NEG).astype(np.float32)

    # per-head block-sum matrices (softmax denominators broadcast back over the block)
    bsum_self = f((np.arange(H * NT)[:, None] // NT) == (np.arange(H * NT)[None, :] // NT))
    bsum_cross = f((np.arange(H * NS)[:, None] // NS) == (np.arange(H * NS)[None, :] // NS))

    # fold (heads + nodes) -> time / enc-step, pre-shifted into the packed output lanes,
    # with the 1/H head averages baked in (1/H^2 for A_st because A_s and A_t are both averaged)
    fold_ht = np.zeros((H * NT, out_w), np.float32)
    fold_ht[np.arange(H * NT), E + (np.arange(H * NT) % T)] = 1.0 / (H * H)
    fold_hs = np.zeros((H * NS, out_w), np.float32)
    fold_hs[np.arange(H * NS), E + T + (np.arange(H * NS) % S)] = 1.0 / H

    # replicate packed A_st columns back onto (node', time') columns + same-node selector
    rep = np.zeros((out_w, NT), np.float32)
    rep[E + (np.arange(NT) % T), np.arange(NT)] = 1.0
    node_sel = f((np.arange(NT)[:, None] // T) == (np.arange(NT)[None, :] // T))

    return (hm_self, hm_cross, bias_self, bias_cross,
            bsum_self, bsum_cross, fold_ht, fold_hs, rep, node_sel)


# --------------------------------------------------------------------------- Pallas wrapper
def decoder_block_pallas(hidden_states, key_value_states, params, num_heads,
                         attention_mask=None):
    """hidden_states: (B, N, T, E); key_value_states: (B, S, N, E)."""
    assert attention_mask is None  # TODO(synk): additive attention mask not wired in
    B, N, T, E = hidden_states.shape
    S = key_value_states.shape[1]
    H = num_heads
    NT, NS = N * T, N * S
    bf16 = jnp.bfloat16
    out_w = int(np.ceil((E + T + S) / 128.0)) * 128            # packed lane-dense output width

    sa, ca, mlp = params["self_attn"], params["cross_attn"], params["mlp"]
    F = mlp["w1"].shape[1]

    # wrapper-side layout plumbing (free XLA reshapes / one tiny transpose of encoder states)
    x_flat = hidden_states.reshape(B, NT, E)
    kv_flat = key_value_states.transpose(0, 2, 1, 3).reshape(B, NS, E)
    pe_tiled = jnp.tile(params["pos_table"], (N, 1))            # (NT, E)

    # pre-packed weights (cast to bf16 once; biases stay f32)
    sa_wqkv = jnp.concatenate([sa["wq"], sa["wk"], sa["wv"]], axis=1).astype(bf16)   # (E, 3E)
    sa_bqkv = jnp.concatenate([sa["bq"], sa["bk"], sa["bv"]])[None, :]
    sa_wo, sa_bo = sa["wo"].astype(bf16), sa["bo"][None, :]
    ca_wq, ca_bq = ca["wq"].astype(bf16), ca["bq"][None, :]
    ca_wkv = jnp.concatenate([ca["wk"], ca["wv"]], axis=1).astype(bf16)              # (E, 2E)
    ca_bkv = jnp.concatenate([ca["bk"], ca["bv"]])[None, :]
    ca_wo, ca_bo = ca["wo"].astype(bf16), ca["bo"][None, :]
    w1, b1 = mlp["w1"].astype(bf16), mlp["b1"][None, :]
    # padded final projection: the FFN output lands directly in packed lanes [0, E)
    w2_pad = jnp.zeros((F, out_w), bf16).at[:, :E].set(mlp["w2"].astype(bf16))
    b2_pad = jnp.zeros((1, out_w), jnp.float32).at[:, :E].set(mlp["b2"][None, :])

    (hm_self, hm_cross, bias_self, bias_cross, bsum_self, bsum_cross,
     fold_ht, fold_hs, rep, node_sel) = _build_constants(N, T, S, E, H, out_w)

    kernel = functools.partial(_decoder_block_kernel, num_heads=H)

    const = lambda a: pl.BlockSpec(a.shape, lambda b: (0,) * a.ndim)   # resident constants
    batch3 = lambda d1, d2: pl.BlockSpec((1, d1, d2), lambda b: (b, 0, 0))

    operands = (x_flat, kv_flat, pe_tiled,
                sa_wqkv, sa_bqkv, sa_wo, sa_bo,
                ca_wq, ca_bq, ca_wkv, ca_bkv, ca_wo, ca_bo,
                w1, b1, w2_pad, b2_pad,
                hm_self, hm_cross, bias_self, bias_cross,
                bsum_self, bsum_cross, fold_ht, fold_hs, rep, node_sel)
    in_specs = [batch3(NT, E), batch3(NS, E)] + [const(a) for a in operands[2:]]

    packed = pl.pallas_call(
        kernel,
        out_shape=jax.ShapeDtypeStruct((B, NT, out_w), jnp.float32),
        grid=(B,),
        in_specs=in_specs,
        out_specs=batch3(NT, out_w),
        compiler_params=pltpu.CompilerParams(dimension_semantics=("parallel",)),
    )(*operands)

    out = packed[:, :, :E].reshape(B, N, T, E)
    st = packed[:, :, E:E + T].reshape(B, N, T, T)
    cross = packed[:, :, E + T:E + T + S].reshape(B, N, T, S)
    return out, st, cross


# --------------------------------------------------------------------------- plain-JAX reference
def _mm(a, b):
    return jnp.dot(a.astype(jnp.bfloat16), b.astype(jnp.bfloat16),
                   preferred_element_type=jnp.float32)


def _bmm(a, b):
    return jnp.einsum("gij,gjk->gik", a.astype(jnp.bfloat16), b.astype(jnp.bfloat16),
                      preferred_element_type=jnp.float32)


def _mha_ref(xq, xkv, p, num_heads):
    G, Lq, E = xq.shape
    Lk = xkv.shape[1]
    hd = E // num_heads
    scale = 1.0 / math.sqrt(hd)
    q = _mm(xq.reshape(G * Lq, E), p["wq"]).reshape(G, Lq, E) + p["bq"]
    k = _mm(xkv.reshape(G * Lk, E), p["wk"]).reshape(G, Lk, E) + p["bk"]
    v = _mm(xkv.reshape(G * Lk, E), p["wv"]).reshape(G, Lk, E) + p["bv"]
    split = lambda t, L: t.reshape(G, L, num_heads, hd).transpose(0, 2, 1, 3)
    qh, kh, vh = split(q, Lq), split(k, Lk), split(v, Lk)
    s = jnp.einsum("ghqd,ghkd->ghqk", qh.astype(jnp.bfloat16), kh.astype(jnp.bfloat16),
                   preferred_element_type=jnp.float32) * scale
    pr = jax.nn.softmax(s, axis=-1)
    ctx = jnp.einsum("ghqk,ghkd->ghqd", pr.astype(jnp.bfloat16), vh.astype(jnp.bfloat16),
                     preferred_element_type=jnp.float32)
    ctx = ctx.transpose(0, 2, 1, 3).reshape(G, Lq, E)
    out = _mm(ctx.reshape(G * Lq, E), p["wo"]).reshape(G, Lq, E) + p["bo"]
    return out, pr.mean(axis=1)


def _mha_axis_ref(x, key_value_states, p, axis, num_heads):
    B, A1, A2, E = x.shape
    if axis == "time":
        xq = x.transpose(0, 2, 1, 3).reshape(B * A2, A1, E)
        xkv = xq if key_value_states is None else \
            key_value_states.transpose(0, 2, 1, 3).reshape(B * A2, -1, E)
    else:  # 'space'
        xq = x.reshape(B * A1, A2, E)
        xkv = xq if key_value_states is None else key_value_states.reshape(B * A1, -1, E)
    out_f, attn_f = _mha_ref(xq, xkv, p, num_heads)
    Lq, Lk = xq.shape[1], xkv.shape[1]
    if axis == "time":
        out = out_f.reshape(B, A2, Lq, E).transpose(0, 2, 1, 3)
        attn = attn_f.reshape(B, A2, Lq, Lk)
    else:
        out = out_f.reshape(B, A1, Lq, E)
        attn = attn_f.reshape(B, A1, Lq, Lk)
    return out, attn


def decoder_block_ref(hidden_states, key_value_states, params, num_heads):
    B, N, T, E = hidden_states.shape
    pe = params["pos_table"]
    pos_encoded = (hidden_states + pe[None, None]).transpose(0, 2, 1, 3)           # (B,T,N,E)

    dec_out, temporal_attn = _mha_axis_ref(pos_encoded, None, params["self_attn"],
                                           "time", num_heads)
    _, spatial_attn = _mha_axis_ref(hidden_states.transpose(0, 2, 1, 3), None,
                                    params["self_attn"], "space", num_heads)

    temporal_attn_t = temporal_attn.transpose(0, 2, 1, 3)                           # (B,T,N,T)
    st = _bmm(spatial_attn.reshape(B * T, N, N),
              temporal_attn_t.reshape(B * T, N, T)).reshape(B, T, N, T)
    st = st.transpose(0, 2, 1, 3)                                                   # (B,N,T,T)

    dec_t = dec_out.transpose(0, 2, 1, 3)                                           # (B,N,T,E)
    dec = _bmm(st.reshape(B * N, T, T), dec_t.reshape(B * N, T, E)).reshape(B, N, T, E)

    dec_q = dec.transpose(0, 2, 1, 3)                                               # (B,T,N,E)
    dec_out2, cross_attn = _mha_axis_ref(dec_q, key_value_states,
                                         params["cross_attn"], "time", num_heads)
    dec_out2 = dec_out2.transpose(0, 2, 1, 3)                                       # (B,N,T,E)

    mlp = params["mlp"]
    xf = dec_out2.reshape(B * N * T, E)
    h1 = jnp.maximum(_mm(xf, mlp["w1"]) + mlp["b1"], 0.0)
    out = (_mm(h1, mlp["w2"]) + mlp["b2"]).reshape(B, N, T, E)
    return out, st, cross_attn


# --------------------------------------------------------------------------- params / main
def init_params(key, embed_dim, ff_expansion, prediction_length):
    def linear(k, fan_in, fan_out):
        kw, kb = jax.random.split(k)
        w = jax.random.normal(kw, (fan_in, fan_out), jnp.float32) * (1.0 / math.sqrt(fan_in))
        b = jax.random.normal(kb, (fan_out,), jnp.float32) * 0.01
        return w, b

    ks = jax.random.split(key, 4)
    E, F = embed_dim, embed_dim * ff_expansion

    def attn_params(k4):
        k0, k1, k2, k3 = jax.random.split(k4, 4)
        wq, bq = linear(k0, E, E)
        wk, bk = linear(k1, E, E)
        wv, bv = linear(k2, E, E)
        wo, bo = linear(k3, E, E)
        return dict(wq=wq, bq=bq, wk=wk, bk=bk, wv=wv, bv=bv, wo=wo, bo=bo)

    w1, b1 = linear(ks[2], E, F)
    w2, b2 = linear(ks[3], F, E)
    return dict(
        pos_table=positional_encoding_table(prediction_length, E),
        self_attn=attn_params(ks[0]),
        cross_attn=attn_params(ks[1]),
        mlp=dict(w1=w1, b1=b1, w2=w2, b2=b2),
    )


if __name__ == "__main__":
    # small, module-consistent shapes
    B, N, T, E = 2, 4, 8, 32          # batch, spatial nodes, prediction_length, embed_dim
    H = 4                              # decoder_attn_heads
    S = 16                             # encoder context length
    FF_EXPANSION = 2

    key = jax.random.PRNGKey(0)
    k_param, k_h, k_kv = jax.random.split(key, 3)
    params = init_params(k_param, E, FF_EXPANSION, T)

    hidden_states = jax.random.normal(k_h, (B, N, T, E), jnp.float32)
    key_value_states = jax.random.normal(k_kv, (B, S, N, E), jnp.float32)

    fwd_pallas = jax.jit(lambda h, kv: decoder_block_pallas(h, kv, params, H))
    fwd_ref = jax.jit(lambda h, kv: decoder_block_ref(h, kv, params, H))

    out_pl, st_pl, cross_pl = fwd_pallas(hidden_states, key_value_states)
    jax.block_until_ready((out_pl, st_pl, cross_pl))

    out_rf, st_rf, cross_rf = fwd_ref(hidden_states, key_value_states)
    jax.block_until_ready((out_rf, st_rf, cross_rf))

    # bf16 MXU operands + approx reciprocal in the kernel -> compare at bf16-level tolerance
    np.testing.assert_allclose(np.asarray(out_pl), np.asarray(out_rf), rtol=2e-2, atol=2e-2)
    np.testing.assert_allclose(np.asarray(st_pl), np.asarray(st_rf), rtol=2e-2, atol=2e-2)
    np.testing.assert_allclose(np.asarray(cross_pl), np.asarray(cross_rf), rtol=2e-2, atol=2e-2)

    print("KERNEL_OK")
</pallas_src>

<mosaic_0001>
module attributes {stable_mosaic.version = 11 : i64} {
  func.func @_decoder_block_kernel(%arg0: i32, %arg1: memref<1x32x32xf32, #tpu.memory_space<vmem>>, %arg2: memref<1x64x32xf32, #tpu.memory_space<vmem>>, %arg3: memref<32x32xf32, #tpu.memory_space<vmem>>, %arg4: memref<32x96xbf16, #tpu.memory_space<vmem>>, %arg5: memref<1x96xf32, #tpu.memory_space<vmem>>, %arg6: memref<32x32xbf16, #tpu.memory_space<vmem>>, %arg7: memref<1x32xf32, #tpu.memory_space<vmem>>, %arg8: memref<32x32xbf16, #tpu.memory_space<vmem>>, %arg9: memref<1x32xf32, #tpu.memory_space<vmem>>, %arg10: memref<32x64xbf16, #tpu.memory_space<vmem>>, %arg11: memref<1x64xf32, #tpu.memory_space<vmem>>, %arg12: memref<32x32xbf16, #tpu.memory_space<vmem>>, %arg13: memref<1x32xf32, #tpu.memory_space<vmem>>, %arg14: memref<32x64xbf16, #tpu.memory_space<vmem>>, %arg15: memref<1x64xf32, #tpu.memory_space<vmem>>, %arg16: memref<64x128xbf16, #tpu.memory_space<vmem>>, %arg17: memref<1x128xf32, #tpu.memory_space<vmem>>, %arg18: memref<128x32xf32, #tpu.memory_space<vmem>>, %arg19: memref<256x32xf32, #tpu.memory_space<vmem>>, %arg20: memref<64x128xf32, #tpu.memory_space<vmem>>, %arg21: memref<32x256xf32, #tpu.memory_space<vmem>>, %arg22: memref<128x128xf32, #tpu.memory_space<vmem>>, %arg23: memref<256x256xf32, #tpu.memory_space<vmem>>, %arg24: memref<128x128xf32, #tpu.memory_space<vmem>>, %arg25: memref<256x128xf32, #tpu.memory_space<vmem>>, %arg26: memref<128x32xf32, #tpu.memory_space<vmem>>, %arg27: memref<32x32xf32, #tpu.memory_space<vmem>>, %arg28: memref<1x32x128xf32, #tpu.memory_space<vmem>>) attributes {dimension_semantics = [#tpu.dimension_semantics<parallel>], iteration_bounds = array<i64: 2>, scalar_prefetch = 0 : i64, scratch_operands = 0 : i64, tpu.core_type = #tpu.core_type<tc>, window_params = [{transform_indices = @transform_0, window_bounds = array<i64: 1, 32, 32>}, {transform_indices = @transform_1, window_bounds = array<i64: 1, 64, 32>}, {pipeline_mode = #tpu.pipeline_mode<synchronous>, transform_indices = @transform_2, window_bounds = array<i64: 32, 32>}, {pipeline_mode = #tpu.pipeline_mode<synchronous>, transform_indices = @transform_3, window_bounds = array<i64: 32, 96>}, {pipeline_mode = #tpu.pipeline_mode<synchronous>, transform_indices = @transform_4, window_bounds = array<i64: 1, 96>}, {pipeline_mode = #tpu.pipeline_mode<synchronous>, transform_indices = @transform_5, window_bounds = array<i64: 32, 32>}, {pipeline_mode = #tpu.pipeline_mode<synchronous>, transform_indices = @transform_6, window_bounds = array<i64: 1, 32>}, {pipeline_mode = #tpu.pipeline_mode<synchronous>, transform_indices = @transform_7, window_bounds = array<i64: 32, 32>}, {pipeline_mode = #tpu.pipeline_mode<synchronous>, transform_indices = @transform_8, window_bounds = array<i64: 1, 32>}, {pipeline_mode = #tpu.pipeline_mode<synchronous>, transform_indices = @transform_9, window_bounds = array<i64: 32, 64>}, {pipeline_mode = #tpu.pipeline_mode<synchronous>, transform_indices = @transform_10, window_bounds = array<i64: 1, 64>}, {pipeline_mode = #tpu.pipeline_mode<synchronous>, transform_indices = @transform_11, window_bounds = array<i64: 32, 32>}, {pipeline_mode = #tpu.pipeline_mode<synchronous>, transform_indices = @transform_12, window_bounds = array<i64: 1, 32>}, {pipeline_mode = #tpu.pipeline_mode<synchronous>, transform_indices = @transform_13, window_bounds = array<i64: 32, 64>}, {pipeline_mode = #tpu.pipeline_mode<synchronous>, transform_indices = @transform_14, window_bounds = array<i64: 1, 64>}, {pipeline_mode = #tpu.pipeline_mode<synchronous>, transform_indices = @transform_15, window_bounds = array<i64: 64, 128>}, {pipeline_mode = #tpu.pipeline_mode<synchronous>, transform_indices = @transform_16, window_bounds = array<i64: 1, 128>}, {pipeline_mode = #tpu.pipeline_mode<synchronous>, transform_indices = @transform_17, window_bounds = array<i64: 128, 32>}, {pipeline_mode = #tpu.pipeline_mode<synchronous>, transform_indices = @transform_18, window_bounds = array<i64: 256, 32>}, {pipeline_mode = #tpu.pipeline_mode<synchronous>, transform_indices = @transform_19, window_bounds = array<i64: 64, 128>}, {pipeline_mode = #tpu.pipeline_mode<synchronous>, transform_indices = @transform_20, window_bounds = array<i64: 32, 256>}, {pipeline_mode = #tpu.pipeline_mode<synchronous>, transform_indices = @transform_21, window_bounds = array<i64: 128, 128>}, {pipeline_mode = #tpu.pipeline_mode<synchronous>, transform_indices = @transform_22, window_bounds = array<i64: 256, 256>}, {pipeline_mode = #tpu.pipeline_mode<synchronous>, transform_indices = @transform_23, window_bounds = array<i64: 128, 128>}, {pipeline_mode = #tpu.pipeline_mode<synchronous>, transform_indices = @transform_24, window_bounds = array<i64: 256, 128>}, {pipeline_mode = #tpu.pipeline_mode<synchronous>, transform_indices = @transform_25, window_bounds = array<i64: 128, 32>}, {pipeline_mode = #tpu.pipeline_mode<synchronous>, transform_indices = @transform_26, window_bounds = array<i64: 32, 32>}, {transform_indices = @transform_27, window_bounds = array<i64: 1, 32, 128>}]} {
    %c0 = arith.constant 0 : index
    %c0_0 = arith.constant 0 : index
    %c0_1 = arith.constant 0 : index
    %0 = vector.load %arg1[%c0, %c0_0, %c0_1] : memref<1x32x32xf32, #tpu.memory_space<vmem>>, vector<1x32x32xf32>
    %1 = vector.shape_cast %0 : vector<1x32x32xf32> to vector<32x32xf32>
    %c0_2 = arith.constant 0 : index
    %c0_3 = arith.constant 0 : index
    %2 = vector.load %arg3[%c0_2, %c0_3] : memref<32x32xf32, #tpu.memory_space<vmem>>, vector<32x32xf32>
    %3 = arith.addf %1, %2 : vector<32x32xf32>
    %4 = tpu.concatenate %3, %1 in 0 : vector<32x32xf32>, vector<32x32xf32> -> vector<64x32xf32>
    %5 = arith.truncf %4 : vector<64x32xf32> to vector<64x32xbf16>
    %c0_4 = arith.constant 0 : index
    %c0_5 = arith.constant 0 : index
    %6 = vector.load %arg4[%c0_4, %c0_5] : memref<32x96xbf16, #tpu.memory_space<vmem>>, vector<32x96xbf16>
    %cst = arith.constant dense<0.000000e+00> : vector<64x96xf32>
    %7 = tpu.matmul %5, %6, %cst {dimension_numbers = #tpu.dot_dimension_numbers<[1], [0], [0], [1], [0, 0, 1, 1], [], []>} : vector<64x32xbf16>, vector<32x96xbf16>, vector<64x96xf32> -> vector<64x96xf32>
    %c0_6 = arith.constant 0 : index
    %c0_7 = arith.constant 0 : index
    %8 = vector.load %arg5[%c0_6, %c0_7] : memref<1x96xf32, #tpu.memory_space<vmem>>, vector<1x96xf32>
    %9 = vector.broadcast %8 : vector<1x96xf32> to vector<64x96xf32>
    %10 = arith.addf %7, %9 : vector<64x96xf32>
    %11 = vector.extract_strided_slice %10 {offsets = [0, 0], sizes = [32, 32], strides = [1, 1]} : vector<64x96xf32> to vector<32x32xf32>
    %12 = vector.extract_strided_slice %10 {offsets = [0, 32], sizes = [32, 32], strides = [1, 1]} : vector<64x96xf32> to vector<32x32xf32>
    %13 = vector.extract_strided_slice %10 {offsets = [0, 64], sizes = [32, 32], strides = [1, 1]} : vector<64x96xf32> to vector<32x32xf32>
    %14 = vector.extract_strided_slice %10 {offsets = [32, 0], sizes = [32, 32], strides = [1, 1]} : vector<64x96xf32> to vector<32x32xf32>
    %15 = vector.extract_strided_slice %10 {offsets = [32, 32], sizes = [32, 32], strides = [1, 1]} : vector<64x96xf32> to vector<32x32xf32>
    %c0_8 = arith.constant 0 : index
    %c0_9 = arith.constant 0 : index
    %16 = vector.load %arg18[%c0_8, %c0_9] : memref<128x32xf32, #tpu.memory_space<vmem>>, vector<128x32xf32>
    %17 = tpu.concatenate %12, %12, %12, %12 in 0 : vector<32x32xf32>, vector<32x32xf32>, vector<32x32xf32>, vector<32x32xf32> -> vector<128x32xf32>
    %18 = arith.mulf %17, %16 : vector<128x32xf32>
    %19 = arith.truncf %18 : vector<128x32xf32> to vector<128x32xbf16>
    %c0_10 = arith.constant 0 : index
    %c0_11 = arith.constant 0 : index
    %20 = vector.load %arg18[%c0_10, %c0_11] : memref<128x32xf32, #tpu.memory_space<vmem>>, vector<128x32xf32>
    %21 = tpu.concatenate %13, %13, %13, %13 in 0 : vector<32x32xf32>, vector<32x32xf32>, vector<32x32xf32>, vector<32x32xf32> -> vector<128x32xf32>
    %22 = arith.mulf %21, %20 : vector<128x32xf32>
    %23 = arith.truncf %22 : vector<128x32xf32> to vector<128x32xbf16>
    %c0_12 = arith.constant 0 : index
    %c0_13 = arith.constant 0 : index
    %24 = vector.load %arg18[%c0_12, %c0_13] : memref<128x32xf32, #tpu.memory_space<vmem>>, vector<128x32xf32>
    %25 = tpu.concatenate %15, %15, %15, %15 in 0 : vector<32x32xf32>, vector<32x32xf32>, vector<32x32xf32>, vector<32x32xf32> -> vector<128x32xf32>
    %26 = arith.mulf %25, %24 : vector<128x32xf32>
    %27 = arith.truncf %26 : vector<128x32xf32> to vector<128x32xbf16>
    %cst_14 = arith.constant 0.353553385 : f32
    %28 = vector.broadcast %cst_14 : f32 to vector<32x32xf32>
    %29 = arith.mulf %11, %28 : vector<32x32xf32>
    %30 = arith.truncf %29 : vector<32x32xf32> to vector<32x32xbf16>
    %cst_15 = arith.constant dense<0.000000e+00> : vector<32x128xf32>
    %31 = tpu.matmul %30, %19, %cst_15 {dimension_numbers = #tpu.dot_dimension_numbers<[1], [1], [0], [0], [0, 0, 1, 0], [], []>} : vector<32x32xbf16>, vector<128x32xbf16>, vector<32x128xf32> -> vector<32x128xf32>
    %cst_16 = arith.constant 0.353553385 : f32
    %32 = vector.broadcast %cst_16 : f32 to vector<32x32xf32>
    %33 = arith.mulf %14, %32 : vector<32x32xf32>
    %34 = arith.truncf %33 : vector<32x32xf32> to vector<32x32xbf16>
    %cst_17 = arith.constant dense<0.000000e+00> : vector<32x128xf32>
    %35 = tpu.matmul %34, %27, %cst_17 {dimension_numbers = #tpu.dot_dimension_numbers<[1], [1], [0], [0], [0, 0, 1, 0], [], []>} : vector<32x32xbf16>, vector<128x32xbf16>, vector<32x128xf32> -> vector<32x128xf32>
    %36 = tpu.concatenate %31, %35 in 0 : vector<32x128xf32>, vector<32x128xf32> -> vector<64x128xf32>
    %c0_18 = arith.constant 0 : index
    %c0_19 = arith.constant 0 : index
    %37 = vector.load %arg20[%c0_18, %c0_19] : memref<64x128xf32, #tpu.memory_space<vmem>>, vector<64x128xf32>
    %c0_20 = arith.constant 0 : index
    %c0_21 = arith.constant 0 : index
    %38 = vector.load %arg22[%c0_20, %c0_21] : memref<128x128xf32, #tpu.memory_space<vmem>>, vector<128x128xf32>
    %39 = arith.addf %36, %37 : vector<64x128xf32>
    %cst_22 = arith.constant dense<0xFF800000> : vector<64xf32>
    %40 = vector.multi_reduction <maximumf>, %39, %cst_22 [1] : vector<64x128xf32> to vector<64xf32>
    %41 = vector.shape_cast %40 : vector<64xf32> to vector<64x1xf32>
    %42 = vector.broadcast %41 : vector<64x1xf32> to vector<64x128xf32>
    %43 = arith.subf %39, %42 : vector<64x128xf32>
    %44 = math.exp %43 : vector<64x128xf32>
    %cst_23 = arith.constant dense<0.000000e+00> : vector<64x128xf32>
    %45 = tpu.matmul %44, %38, %cst_23 {dimension_numbers = #tpu.dot_dimension_numbers<[1], [0], [0], [1], [0, 0, 1, 1], [], []>} : vector<64x128xf32>, vector<128x128xf32>, vector<64x128xf32> -> vector<64x128xf32>
    %46 = tpu.reciprocal %45 {approx = true} : vector<64x128xf32> -> vector<64x128xf32>
    %47 = arith.mulf %44, %46 : vector<64x128xf32>
    %48 = vector.extract_strided_slice %47 {offsets = [0, 0], sizes = [32, 128], strides = [1, 1]} : vector<64x128xf32> to vector<32x128xf32>
    %49 = vector.extract_strided_slice %47 {offsets = [32, 0], sizes = [32, 128], strides = [1, 1]} : vector<64x128xf32> to vector<32x128xf32>
    %50 = arith.truncf %48 : vector<32x128xf32> to vector<32x128xbf16>
    %cst_24 = arith.constant dense<0.000000e+00> : vector<32x32xf32>
    %51 = tpu.matmul %50, %23, %cst_24 {dimension_numbers = #tpu.dot_dimension_numbers<[1], [0], [0], [1], [0, 0, 1, 1], [], []>} : vector<32x128xbf16>, vector<128x32xbf16>, vector<32x32xf32> -> vector<32x32xf32>
    %52 = arith.truncf %51 : vector<32x32xf32> to vector<32x32xbf16>
    %c0_25 = arith.constant 0 : index
    %c0_26 = arith.constant 0 : index
    %53 = vector.load %arg6[%c0_25, %c0_26] : memref<32x32xbf16, #tpu.memory_space<vmem>>, vector<32x32xbf16>
    %cst_27 = arith.constant dense<0.000000e+00> : vector<32x32xf32>
    %54 = tpu.matmul %52, %53, %cst_27 {dimension_numbers = #tpu.dot_dimension_numbers<[1], [0], [0], [1], [0, 0, 1, 1], [], []>} : vector<32x32xbf16>, vector<32x32xbf16>, vector<32x32xf32> -> vector<32x32xf32>
    %c0_28 = arith.constant 0 : index
    %c0_29 = arith.constant 0 : index
    %55 = vector.load %arg7[%c0_28, %c0_29] : memref<1x32xf32, #tpu.memory_space<vmem>>, vector<1x32xf32>
    %56 = vector.broadcast %55 : vector<1x32xf32> to vector<32x32xf32>
    %57 = arith.addf %54, %56 : vector<32x32xf32>
    %c0_30 = arith.constant 0 : index
    %c0_31 = arith.constant 0 : index
    %58 = vector.load %arg24[%c0_30, %c0_31] : memref<128x128xf32, #tpu.memory_space<vmem>>, vector<128x128xf32>
    %cst_32 = arith.constant dense<0.000000e+00> : vector<32x128xf32>
    %59 = tpu.matmul %48, %58, %cst_32 {dimension_numbers = #tpu.dot_dimension_numbers<[1], [0], [0], [1], [0, 0, 1, 1], [], []>} : vector<32x128xf32>, vector<128x128xf32>, vector<32x128xf32> -> vector<32x128xf32>
    %60 = tpu.concatenate %59, %59, %59, %59 in 0 : vector<32x128xf32>, vector<32x128xf32>, vector<32x128xf32>, vector<32x128xf32> -> vector<128x128xf32>
    %cst_33 = arith.constant dense<0.000000e+00> : vector<32x128xf32>
    %61 = tpu.matmul %49, %60, %cst_33 {dimension_numbers = #tpu.dot_dimension_numbers<[1], [0], [0], [1], [0, 0, 1, 1], [], []>} : vector<32x128xf32>, vector<128x128xf32>, vector<32x128xf32> -> vector<32x128xf32>
    %c0_34 = arith.constant 0 : index
    %c0_35 = arith.constant 0 : index
    %62 = vector.load %arg26[%c0_34, %c0_35] : memref<128x32xf32, #tpu.memory_space<vmem>>, vector<128x32xf32>
    %cst_36 = arith.constant dense<0.000000e+00> : vector<32x32xf32>
    %63 = tpu.matmul %61, %62, %cst_36 {dimension_numbers = #tpu.dot_dimension_numbers<[1], [0], [0], [1], [0, 0, 1, 1], [], []>} : vector<32x128xf32>, vector<128x32xf32>, vector<32x32xf32> -> vector<32x32xf32>
    %c0_37 = arith.constant 0 : index
    %c0_38 = arith.constant 0 : index
    %64 = vector.load %arg27[%c0_37, %c0_38] : memref<32x32xf32, #tpu.memory_space<vmem>>, vector<32x32xf32>
    %65 = arith.mulf %63, %64 : vector<32x32xf32>
    %cst_39 = arith.constant dense<0.000000e+00> : vector<32x32xf32>
    %66 = tpu.matmul %65, %57, %cst_39 {dimension_numbers = #tpu.dot_dimension_numbers<[1], [0], [0], [1], [0, 0, 1, 1], [], []>} : vector<32x32xf32>, vector<32x32xf32>, vector<32x32xf32> -> vector<32x32xf32>
    %c0_40 = arith.constant 0 : index
    %c0_41 = arith.constant 0 : index
    %c0_42 = arith.constant 0 : index
    %67 = vector.load %arg2[%c0_40, %c0_41, %c0_42] : memref<1x64x32xf32, #tpu.memory_space<vmem>>, vector<1x64x32xf32>
    %68 = vector.shape_cast %67 : vector<1x64x32xf32> to vector<64x32xf32>
    %69 = arith.truncf %66 : vector<32x32xf32> to vector<32x32xbf16>
    %c0_43 = arith.constant 0 : index
    %c0_44 = arith.constant 0 : index
    %70 = vector.load %arg8[%c0_43, %c0_44] : memref<32x32xbf16, #tpu.memory_space<vmem>>, vector<32x32xbf16>
    %cst_45 = arith.constant dense<0.000000e+00> : vector<32x32xf32>
    %71 = tpu.matmul %69, %70, %cst_45 {dimension_numbers = #tpu.dot_dimension_numbers<[1], [0], [0], [1], [0, 0, 1, 1], [], []>} : vector<32x32xbf16>, vector<32x32xbf16>, vector<32x32xf32> -> vector<32x32xf32>
    %c0_46 = arith.constant 0 : index
    %c0_47 = arith.constant 0 : index
    %72 = vector.load %arg9[%c0_46, %c0_47] : memref<1x32xf32, #tpu.memory_space<vmem>>, vector<1x32xf32>
    %73 = vector.broadcast %72 : vector<1x32xf32> to vector<32x32xf32>
    %74 = arith.addf %71, %73 : vector<32x32xf32>
    %75 = arith.truncf %68 : vector<64x32xf32> to vector<64x32xbf16>
    %c0_48 = arith.constant 0 : index
    %c0_49 = arith.constant 0 : index
    %76 = vector.load %arg10[%c0_48, %c0_49] : memref<32x64xbf16, #tpu.memory_space<vmem>>, vector<32x64xbf16>
    %cst_50 = arith.constant dense<0.000000e+00> : vector<64x64xf32>
    %77 = tpu.matmul %75, %76, %cst_50 {dimension_numbers = #tpu.dot_dimension_numbers<[1], [0], [0], [1], [0, 0, 1, 1], [], []>} : vector<64x32xbf16>, vector<32x64xbf16>, vector<64x64xf32> -> vector<64x64xf32>
    %c0_51 = arith.constant 0 : index
    %c0_52 = arith.constant 0 : index
    %78 = vector.load %arg11[%c0_51, %c0_52] : memref<1x64xf32, #tpu.memory_space<vmem>>, vector<1x64xf32>
    %79 = vector.broadcast %78 : vector<1x64xf32> to vector<64x64xf32>
    %80 = arith.addf %77, %79 : vector<64x64xf32>
    %81 = vector.extract_strided_slice %80 {offsets = [0, 0], sizes = [64, 32], strides = [1, 1]} : vector<64x64xf32> to vector<64x32xf32>
    %82 = vector.extract_strided_slice %80 {offsets = [0, 32], sizes = [64, 32], strides = [1, 1]} : vector<64x64xf32> to vector<64x32xf32>
    %c0_53 = arith.constant 0 : index
    %c0_54 = arith.constant 0 : index
    %83 = vector.load %arg19[%c0_53, %c0_54] : memref<256x32xf32, #tpu.memory_space<vmem>>, vector<256x32xf32>
    %84 = tpu.concatenate %81, %81, %81, %81 in 0 : vector<64x32xf32>, vector<64x32xf32>, vector<64x32xf32>, vector<64x32xf32> -> vector<256x32xf32>
    %85 = arith.mulf %84, %83 : vector<256x32xf32>
    %86 = arith.truncf %85 : vector<256x32xf32> to vector<256x32xbf16>
    %c0_55 = arith.constant 0 : index
    %c0_56 = arith.constant 0 : index
    %87 = vector.load %arg19[%c0_55, %c0_56] : memref<256x32xf32, #tpu.memory_space<vmem>>, vector<256x32xf32>
    %88 = tpu.concatenate %82, %82, %82, %82 in 0 : vector<64x32xf32>, vector<64x32xf32>, vector<64x32xf32>, vector<64x32xf32> -> vector<256x32xf32>
    %89 = arith.mulf %88, %87 : vector<256x32xf32>
    %90 = arith.truncf %89 : vector<256x32xf32> to vector<256x32xbf16>
    %cst_57 = arith.constant 0.353553385 : f32
    %91 = vector.broadcast %cst_57 : f32 to vector<32x32xf32>
    %92 = arith.mulf %74, %91 : vector<32x32xf32>
    %93 = arith.truncf %92 : vector<32x32xf32> to vector<32x32xbf16>
    %cst_58 = arith.constant dense<0.000000e+00> : vector<32x256xf32>
    %94 = tpu.matmul %93, %86, %cst_58 {dimension_numbers = #tpu.dot_dimension_numbers<[1], [1], [0], [0], [0, 0, 1, 0], [], []>} : vector<32x32xbf16>, vector<256x32xbf16>, vector<32x256xf32> -> vector<32x256xf32>
    %c0_59 = arith.constant 0 : index
    %c0_60 = arith.constant 0 : index
    %95 = vector.load %arg21[%c0_59, %c0_60] : memref<32x256xf32, #tpu.memory_space<vmem>>, vector<32x256xf32>
    %c0_61 = arith.constant 0 : index
    %c0_62 = arith.constant 0 : index
    %96 = vector.load %arg23[%c0_61, %c0_62] : memref<256x256xf32, #tpu.memory_space<vmem>>, vector<256x256xf32>
    %97 = arith.addf %94, %95 : vector<32x256xf32>
    %cst_63 = arith.constant dense<0xFF800000> : vector<32xf32>
    %98 = vector.multi_reduction <maximumf>, %97, %cst_63 [1] : vector<32x256xf32> to vector<32xf32>
    %99 = vector.shape_cast %98 : vector<32xf32> to vector<32x1xf32>
    %100 = vector.broadcast %99 : vector<32x1xf32> to vector<32x256xf32>
    %101 = arith.subf %97, %100 : vector<32x256xf32>
    %102 = math.exp %101 : vector<32x256xf32>
    %cst_64 = arith.constant dense<0.000000e+00> : vector<32x256xf32>
    %103 = tpu.matmul %102, %96, %cst_64 {dimension_numbers = #tpu.dot_dimension_numbers<[1], [0], [0], [1], [0, 0, 1, 1], [], []>} : vector<32x256xf32>, vector<256x256xf32>, vector<32x256xf32> -> vector<32x256xf32>
    %104 = tpu.reciprocal %103 {approx = true} : vector<32x256xf32> -> vector<32x256xf32>
    %105 = arith.mulf %102, %104 : vector<32x256xf32>
    %c0_65 = arith.constant 0 : index
    %c0_66 = arith.constant 0 : index
    %106 = vector.load %arg25[%c0_65, %c0_66] : memref<256x128xf32, #tpu.memory_space<vmem>>, vector<256x128xf32>
    %cst_67 = arith.constant dense<0.000000e+00> : vector<32x128xf32>
    %107 = tpu.matmul %105, %106, %cst_67 {dimension_numbers = #tpu.dot_dimension_numbers<[1], [0], [0], [1], [0, 0, 1, 1], [], []>} : vector<32x256xf32>, vector<256x128xf32>, vector<32x128xf32> -> vector<32x128xf32>
    %108 = arith.truncf %105 : vector<32x256xf32> to vector<32x256xbf16>
    %cst_68 = arith.constant dense<0.000000e+00> : vector<32x32xf32>
    %109 = tpu.matmul %108, %90, %cst_68 {dimension_numbers = #tpu.dot_dimension_numbers<[1], [0], [0], [1], [0, 0, 1, 1], [], []>} : vector<32x256xbf16>, vector<256x32xbf16>, vector<32x32xf32> -> vector<32x32xf32>
    %110 = arith.truncf %109 : vector<32x32xf32> to vector<32x32xbf16>
    %c0_69 = arith.constant 0 : index
    %c0_70 = arith.constant 0 : index
    %111 = vector.load %arg12[%c0_69, %c0_70] : memref<32x32xbf16, #tpu.memory_space<vmem>>, vector<32x32xbf16>
    %cst_71 = arith.constant dense<0.000000e+00> : vector<32x32xf32>
    %112 = tpu.matmul %110, %111, %cst_71 {dimension_numbers = #tpu.dot_dimension_numbers<[1], [0], [0], [1], [0, 0, 1, 1], [], []>} : vector<32x32xbf16>, vector<32x32xbf16>, vector<32x32xf32> -> vector<32x32xf32>
    %c0_72 = arith.constant 0 : index
    %c0_73 = arith.constant 0 : index
    %113 = vector.load %arg13[%c0_72, %c0_73] : memref<1x32xf32, #tpu.memory_space<vmem>>, vector<1x32xf32>
    %114 = vector.broadcast %113 : vector<1x32xf32> to vector<32x32xf32>
    %115 = arith.addf %112, %114 : vector<32x32xf32>
    %116 = arith.truncf %115 : vector<32x32xf32> to vector<32x32xbf16>
    %c0_74 = arith.constant 0 : index
    %c0_75 = arith.constant 0 : index
    %117 = vector.load %arg14[%c0_74, %c0_75] : memref<32x64xbf16, #tpu.memory_space<vmem>>, vector<32x64xbf16>
    %cst_76 = arith.constant dense<0.000000e+00> : vector<32x64xf32>
    %118 = tpu.matmul %116, %117, %cst_76 {dimension_numbers = #tpu.dot_dimension_numbers<[1], [0], [0], [1], [0, 0, 1, 1], [], []>} : vector<32x32xbf16>, vector<32x64xbf16>, vector<32x64xf32> -> vector<32x64xf32>
    %c0_77 = arith.constant 0 : index
    %c0_78 = arith.constant 0 : index
    %119 = vector.load %arg15[%c0_77, %c0_78] : memref<1x64xf32, #tpu.memory_space<vmem>>, vector<1x64xf32>
    %120 = vector.broadcast %119 : vector<1x64xf32> to vector<32x64xf32>
    %121 = arith.addf %118, %120 : vector<32x64xf32>
    %cst_79 = arith.constant 0.000000e+00 : f32
    %122 = vector.broadcast %cst_79 : f32 to vector<32x64xf32>
    %123 = arith.maximumf %121, %122 : vector<32x64xf32>
    %124 = arith.truncf %123 : vector<32x64xf32> to vector<32x64xbf16>
    %c0_80 = arith.constant 0 : index
    %c0_81 = arith.constant 0 : index
    %125 = vector.load %arg16[%c0_80, %c0_81] : memref<64x128xbf16, #tpu.memory_space<vmem>>, vector<64x128xbf16>
    %cst_82 = arith.constant dense<0.000000e+00> : vector<32x128xf32>
    %126 = tpu.matmul %124, %125, %cst_82 {dimension_numbers = #tpu.dot_dimension_numbers<[1], [0], [0], [1], [0, 0, 1, 1], [], []>} : vector<32x64xbf16>, vector<64x128xbf16>, vector<32x128xf32> -> vector<32x128xf32>
    %c0_83 = arith.constant 0 : index
    %c0_84 = arith.constant 0 : index
    %127 = vector.load %arg17[%c0_83, %c0_84] : memref<1x128xf32, #tpu.memory_space<vmem>>, vector<1x128xf32>
    %128 = vector.broadcast %127 : vector<1x128xf32> to vector<32x128xf32>
    %129 = arith.addf %126, %128 : vector<32x128xf32>
    %130 = arith.addf %129, %61 : vector<32x128xf32>
    %131 = arith.addf %130, %107 : vector<32x128xf32>
    %c0_85 = arith.constant 0 : index
    %c0_86 = arith.constant 0 : index
    %c0_87 = arith.constant 0 : index
    %132 = vector.load %arg28[%c0_85, %c0_86, %c0_87] : memref<1x32x128xf32, #tpu.memory_space<vmem>>, vector<1x32x128xf32>
    %133 = vector.shape_cast %132 : vector<1x32x128xf32> to vector<32x128xf32>
    %134 = vector.shape_cast %131 : vector<32x128xf32> to vector<1x32x128xf32>
    tpu.vector_store %arg28[%c0_85, %c0_86, %c0_87], %134 {strides = array<i32>} : memref<1x32x128xf32, #tpu.memory_space<vmem>>, vector<1x32x128xf32>,
    return
  }
  func.func @transform_0(%arg0: i32) -> (i32, i32, i32) {
    %c0_i32 = arith.constant 0 : i32
    %c0_i32_0 = arith.constant 0 : i32
    %c0_i32_1 = arith.constant 0 : i32
    return %arg0, %c0_i32, %c0_i32_0 : i32, i32, i32
  }
  func.func @transform_1(%arg0: i32) -> (i32, i32, i32) {
    %c0_i32 = arith.constant 0 : i32
    %c0_i32_0 = arith.constant 0 : i32
    %c0_i32_1 = arith.constant 0 : i32
    return %arg0, %c0_i32, %c0_i32_0 : i32, i32, i32
  }
  func.func @transform_2(%arg0: i32) -> (i32, i32) {
    %c0_i32 = arith.constant 0 : i32
    %c0_i32_0 = arith.constant 0 : i32
    %c0_i32_1 = arith.constant 0 : i32
    return %c0_i32, %c0_i32_0 : i32, i32
  }
  func.func @transform_3(%arg0: i32) -> (i32, i32) {
    %c0_i32 = arith.constant 0 : i32
    %c0_i32_0 = arith.constant 0 : i32
    %c0_i32_1 = arith.constant 0 : i32
    return %c0_i32, %c0_i32_0 : i32, i32
  }
  func.func @transform_4(%arg0: i32) -> (i32, i32) {
    %c0_i32 = arith.constant 0 : i32
    %c0_i32_0 = arith.constant 0 : i32
    %c0_i32_1 = arith.constant 0 : i32
    return %c0_i32, %c0_i32_0 : i32, i32
  }
  func.func @transform_5(%arg0: i32) -> (i32, i32) {
    %c0_i32 = arith.constant 0 : i32
    %c0_i32_0 = arith.constant 0 : i32
    %c0_i32_1 = arith.constant 0 : i32
    return %c0_i32, %c0_i32_0 : i32, i32
  }
  func.func @transform_6(%arg0: i32) -> (i32, i32) {
    %c0_i32 = arith.constant 0 : i32
    %c0_i32_0 = arith.constant 0 : i32
    %c0_i32_1 = arith.constant 0 : i32
    return %c0_i32, %c0_i32_0 : i32, i32
  }
  func.func @transform_7(%arg0: i32) -> (i32, i32) {
    %c0_i32 = arith.constant 0 : i32
    %c0_i32_0 = arith.constant 0 : i32
    %c0_i32_1 = arith.constant 0 : i32
    return %c0_i32, %c0_i32_0 : i32, i32
  }
  func.func @transform_8(%arg0: i32) -> (i32, i32) {
    %c0_i32 = arith.constant 0 : i32
    %c0_i32_0 = arith.constant 0 : i32
    %c0_i32_1 = arith.constant 0 : i32
    return %c0_i32, %c0_i32_0 : i32, i32
  }
  func.func @transform_9(%arg0: i32) -> (i32, i32) {
    %c0_i32 = arith.constant 0 : i32
    %c0_i32_0 = arith.constant 0 : i32
    %c0_i32_1 = arith.constant 0 : i32
    return %c0_i32, %c0_i32_0 : i32, i32
  }
  func.func @transform_10(%arg0: i32) -> (i32, i32) {
    %c0_i32 = arith.constant 0 : i32
    %c0_i32_0 = arith.constant 0 : i32
    %c0_i32_1 = arith.constant 0 : i32
    return %c0_i32, %c0_i32_0 : i32, i32
  }
  func.func @transform_11(%arg0: i32) -> (i32, i32) {
    %c0_i32 = arith.constant 0 : i32
    %c0_i32_0 = arith.constant 0 : i32
    %c0_i32_1 = arith.constant 0 : i32
    return %c0_i32, %c0_i32_0 : i32, i32
  }
  func.func @transform_12(%arg0: i32) -> (i32, i32) {
    %c0_i32 = arith.constant 0 : i32
    %c0_i32_0 = arith.constant 0 : i32
    %c0_i32_1 = arith.constant 0 : i32
    return %c0_i32, %c0_i32_0 : i32, i32
  }
  func.func @transform_13(%arg0: i32) -> (i32, i32) {
    %c0_i32 = arith.constant 0 : i32
    %c0_i32_0 = arith.constant 0 : i32
    %c0_i32_1 = arith.constant 0 : i32
    return %c0_i32, %c0_i32_0 : i32, i32
  }
  func.func @transform_14(%arg0: i32) -> (i32, i32) {
    %c0_i32 = arith.constant 0 : i32
    %c0_i32_0 = arith.constant 0 : i32
    %c0_i32_1 = arith.constant 0 : i32
    return %c0_i32, %c0_i32_0 : i32, i32
  }
  func.func @transform_15(%arg0: i32) -> (i32, i32) {
    %c0_i32 = arith.constant 0 : i32
    %c0_i32_0 = arith.constant 0 : i32
    %c0_i32_1 = arith.constant 0 : i32
    return %c0_i32, %c0_i32_0 : i32, i32
  }
  func.func @transform_16(%arg0: i32) -> (i32, i32) {
    %c0_i32 = arith.constant 0 : i32
    %c0_i32_0 = arith.constant 0 : i32
    %c0_i32_1 = arith.constant 0 : i32
    return %c0_i32, %c0_i32_0 : i32, i32
  }
  func.func @transform_17(%arg0: i32) -> (i32, i32) {
    %c0_i32 = arith.constant 0 : i32
    %c0_i32_0 = arith.constant 0 : i32
    %c0_i32_1 = arith.constant 0 : i32
    return %c0_i32, %c0_i32_0 : i32, i32
  }
  func.func @transform_18(%arg0: i32) -> (i32, i32) {
    %c0_i32 = arith.constant 0 : i32
    %c0_i32_0 = arith.constant 0 : i32
    %c0_i32_1 = arith.constant 0 : i32
    return %c0_i32, %c0_i32_0 : i32, i32
  }
  func.func @transform_19(%arg0: i32) -> (i32, i32) {
    %c0_i32 = arith.constant 0 : i32
    %c0_i32_0 = arith.constant 0 : i32
    %c0_i32_1 = arith.constant 0 : i32
    return %c0_i32, %c0_i32_0 : i32, i32
  }
  func.func @transform_20(%arg0: i32) -> (i32, i32) {
    %c0_i32 = arith.constant 0 : i32
    %c0_i32_0 = arith.constant 0 : i32
    %c0_i32_1 = arith.constant 0 : i32
    return %c0_i32, %c0_i32_0 : i32, i32
  }
  func.func @transform_21(%arg0: i32) -> (i32, i32) {
    %c0_i32 = arith.constant 0 : i32
    %c0_i32_0 = arith.constant 0 : i32
    %c0_i32_1 = arith.constant 0 : i32
    return %c0_i32, %c0_i32_0 : i32, i32
  }
  func.func @transform_22(%arg0: i32) -> (i32, i32) {
    %c0_i32 = arith.constant 0 : i32
    %c0_i32_0 = arith.constant 0 : i32
    %c0_i32_1 = arith.constant 0 : i32
    return %c0_i32, %c0_i32_0 : i32, i32
  }
  func.func @transform_23(%arg0: i32) -> (i32, i32) {
    %c0_i32 = arith.constant 0 : i32
    %c0_i32_0 = arith.constant 0 : i32
    %c0_i32_1 = arith.constant 0 : i32
    return %c0_i32, %c0_i32_0 : i32, i32
  }
  func.func @transform_24(%arg0: i32) -> (i32, i32) {
    %c0_i32 = arith.constant 0 : i32
    %c0_i32_0 = arith.constant 0 : i32
    %c0_i32_1 = arith.constant 0 : i32
    return %c0_i32, %c0_i32_0 : i32, i32
  }
  func.func @transform_25(%arg0: i32) -> (i32, i32) {
    %c0_i32 = arith.constant 0 : i32
    %c0_i32_0 = arith.constant 0 : i32
    %c0_i32_1 = arith.constant 0 : i32
    return %c0_i32, %c0_i32_0 : i32, i32
  }
  func.func @transform_26(%arg0: i32) -> (i32, i32) {
    %c0_i32 = arith.constant 0 : i32
    %c0_i32_0 = arith.constant 0 : i32
    %c0_i32_1 = arith.constant 0 : i32
    return %c0_i32, %c0_i32_0 : i32, i32
  }
  func.func @transform_27(%arg0: i32) -> (i32, i32, i32) {
    %c0_i32 = arith.constant 0 : i32
    %c0_i32_0 = arith.constant 0 : i32
    %c0_i32_1 = arith.constant 0 : i32
    return %arg0, %c0_i32, %c0_i32_0 : i32, i32, i32
  }
}

</mosaic_0001>

<llo_original>
// kernel: _lambda_.1
$region0: #{_lambda_.1}
  #allocation0 [shape = 'u32[]', space=smem, size = 0x4, offset = 0x4, fixed_abs, tag = 'smem constant byte address 0x4 - core index']
  #allocation1 [shape = 'u32[144,128]{1,0:T(1,128)}', space=vmem, size = 0x12000, scoped, tag = 'internal scratch']
  %s0 = inlined_call_operand.vmem [shape: f32[2,32,32], index: 0, kind: input, shape index: {}]
  %s1 = inlined_call_operand.vmem [shape: f32[2,64,32], index: 1, kind: input, shape index: {}]
  %s2 = inlined_call_operand.vmem [shape: f32[32,32], index: 2, kind: input, shape index: {}]
  %s3 = inlined_call_operand.hbm [shape: bf16[32,96], index: 3, kind: input, shape index: {}]
  %s4 = inlined_call_operand.vmem [shape: f32[1,96], index: 4, kind: input, shape index: {}]
  %s5 = inlined_call_operand.hbm [shape: bf16[32,32], index: 5, kind: input, shape index: {}]
  %s6 = inlined_call_operand.vmem [shape: f32[1,32], index: 6, kind: input, shape index: {}]
  %s7 = inlined_call_operand.hbm [shape: bf16[32,32], index: 7, kind: input, shape index: {}]
  %s8 = inlined_call_operand.vmem [shape: f32[1,32], index: 8, kind: input, shape index: {}]
  %s9 = inlined_call_operand.hbm [shape: bf16[32,64], index: 9, kind: input, shape index: {}]
  %s10 = inlined_call_operand.vmem [shape: f32[1,64], index: 10, kind: input, shape index: {}]
  %s11 = inlined_call_operand.hbm [shape: bf16[32,32], index: 11, kind: input, shape index: {}]
  %s12 = inlined_call_operand.vmem [shape: f32[1,32], index: 12, kind: input, shape index: {}]
  %s13 = inlined_call_operand.hbm [shape: bf16[32,64], index: 13, kind: input, shape index: {}]
  %s14 = inlined_call_operand.hbm [shape: f32[1,64], index: 14, kind: input, shape index: {}]
  %s15 = inlined_call_operand.vmem [shape: bf16[64,128], index: 15, kind: input, shape index: {}]
  %s16 = inlined_call_operand.vmem [shape: f32[1,128], index: 16, kind: input, shape index: {}]
  %s17 = inlined_call_operand.hbm [shape: f32[128,32], index: 17, kind: input, shape index: {}]
  %s18 = inlined_call_operand.hbm [shape: f32[256,32], index: 18, kind: input, shape index: {}]
  %s19 = inlined_call_operand.hbm [shape: f32[64,128], index: 19, kind: input, shape index: {}]
  %s20 = inlined_call_operand.hbm [shape: f32[32,256], index: 20, kind: input, shape index: {}]
  %s21 = inlined_call_operand.hbm [shape: f32[128,128], index: 21, kind: input, shape index: {}]
  %s22 = inlined_call_operand.hbm [shape: f32[256,256], index: 22, kind: input, shape index: {}]
  %s23 = inlined_call_operand.hbm [shape: f32[128,128], index: 23, kind: input, shape index: {}]
  %s24 = inlined_call_operand.vmem [shape: f32[256,128], index: 24, kind: input, shape index: {}]
  %s25 = inlined_call_operand.vmem [shape: f32[128,32], index: 25, kind: input, shape index: {}]
  %s26 = inlined_call_operand.hbm [shape: f32[32,32], index: 26, kind: input, shape index: {}]
  %s27 = inlined_call_operand.vmem [shape: f32[2,32,128], index: 27, kind: output, shape index: {}]
  %s28 = sld [smem:[#allocation0]]
  $region201: #{_lambda_.1} parent=0
    _
  %s30 = ssub.s32 1, %s28
  %s31 = scalar_select 0, %s30, %s28
  $region1: #{_lambda_.1} parent=0
    #allocation2 [shape = 'u8[8192]{0}', space=vmem, size = 0x2000, scoped, tag = 'input window, operand 3, single buffered']
    #allocation3 [shape = 's32[2]{0}', space=sflag, size = 0x8, scoped, tag = 'scoped memory for _lambda_.1']
    #allocation4 [shape = 'u8[8192]{0}', space=vmem, size = 0x2000, scoped, tag = 'input window, operand 5, single buffered']
    #allocation5 [shape = 's32[1]{0}', space=sflag, size = 0x4, scoped, tag = 'scoped memory for _lambda_.1']
    #allocation6 [shape = 'u8[8192]{0}', space=vmem, size = 0x2000, scoped, tag = 'input window, operand 7, single buffered']
    #allocation7 [shape = 'u8[8192]{0}', space=vmem, size = 0x2000, scoped, tag = 'input window, operand 9, single buffered']
    #allocation8 [shape = 's32[1]{0}', space=sflag, size = 0x4, scoped, tag = 'scoped memory for _lambda_.1']
    #allocation9 [shape = 'u8[8192]{0}', space=vmem, size = 0x2000, scoped, tag = 'input window, operand 11, single buffered']
    #allocation10 [shape = 'u8[8192]{0}', space=vmem, size = 0x2000, scoped, tag = 'input window, operand 13, single buffered']
    #allocation11 [shape = 's32[1]{0}', space=sflag, size = 0x4, scoped, tag = 'scoped memory for _lambda_.1']
    #allocation12 [shape = 'u8[512]{0}', space=vmem, size = 0x400, scoped, tag = 'input window, operand 14, single buffered']
    #allocation13 [shape = 'u8[65536]{0}', space=vmem, size = 0x10000, scoped, tag = 'input window, operand 17, single buffered']
    #allocation14 [shape = 's32[1]{0}', space=sflag, size = 0x4, scoped, tag = 'scoped memory for _lambda_.1']
    #allocation15 [shape = 'u8[131072]{0}', space=vmem, size = 0x20000, scoped, tag = 'input window, operand 18, single buffered']
    #allocation16 [shape = 'u8[32768]{0}', space=vmem, size = 0x8000, scoped, tag = 'input window, operand 19, single buffered']
    #allocation17 [shape = 's32[1]{0}', space=sflag, size = 0x4, scoped, tag = 'scoped memory for _lambda_.1']
    #allocation18 [shape = 'u8[32768]{0}', space=vmem, size = 0x8000, scoped, tag = 'input window, operand 20, single buffered']
    #allocation19 [shape = 'u8[65536]{0}', space=vmem, size = 0x10000, scoped, tag = 'input window, operand 21, single buffered']
    #allocation20 [shape = 's32[1]{0}', space=sflag, size = 0x4, scoped, tag = 'scoped memory for _lambda_.1']
    #allocation21 [shape = 'u8[262144]{0}', space=vmem, size = 0x40000, scoped, tag = 'input window, operand 22, single buffered']
    #allocation22 [shape = 'u8[65536]{0}', space=vmem, size = 0x10000, scoped, tag = 'input window, operand 23, single buffered']
    #allocation23 [shape = 's32[1]{0}', space=sflag, size = 0x4, scoped, tag = 'scoped memory for _lambda_.1']
    #allocation24 [shape = 'u8[16384]{0}', space=vmem, size = 0x4000, scoped, tag = 'input window, operand 26, single buffered']
    %32 = vsyncpa [#allocation3], 0
    %33 = vsyncpa [#allocation5], 0
    %34 = vsyncpa [#allocation8], 0
    %35 = vsyncpa [#allocation11], 0
    %36 = vsyncpa [#allocation14], 0
    %37 = vsyncpa [#allocation17], 0
    %38 = vsyncpa [#allocation20], 0
    %39 = vsyncpa [#allocation23], 0
    loop: start=0, step=1, limit=4
    $region2: #{_lambda_.1} parent=1 // loop_pre_header
      _
    $region3: #{_lambda_.1} parent=1 // loop_header
      %s41 = sphi 0, %s45
      %p42 = scmp.ge.s32.totalorder %s41, 4
      %s51 = sphi 0, %s53
      %s54 = sphi 0, %s51
      %s55 = sphi 0, %s54
      %s71 = sphi 0, %s55
      %s77 = sphi 0, %s79
      %s80 = sphi 0, %s77
      %s81 = sphi 0, %s80
      %s97 = sphi 0, %s81
      %s101 = sphi 0, %s101
      %s103 = sphi 0, %s101
      %s104 = sphi 0, %s103
      %s118 = sphi 0, %s104
      %s122 = sphi 0, %s122
      %s124 = sphi 0, %s122
      %s125 = sphi 0, %s124
      %s139 = sphi 0, %s125
      %s143 = sphi 0, %s143
      %s145 = sphi 0, %s143
      %s146 = sphi 0, %s145
      %s160 = sphi 0, %s146
      %s164 = sphi 0, %s164
      %s166 = sphi 0, %s164
      %s167 = sphi 0, %s166
      %s181 = sphi 0, %s167
      %s185 = sphi 0, %s185
      %s187 = sphi 0, %s185
      %s188 = sphi 0, %s187
      %s202 = sphi 0, %s188
      %s206 = sphi 0, %s206
      %s208 = sphi 0, %s206
      %s209 = sphi 0, %s208
      %s223 = sphi 0, %s209
      %s227 = sphi 0, %s227
      %s229 = sphi 0, %s227
      %s230 = sphi 0, %s229
      %s244 = sphi 0, %s230
      %s248 = sphi 0, %s248
      %s250 = sphi 0, %s248
      %s251 = sphi 0, %s250
      %s265 = sphi 0, %s251
      %s269 = sphi 0, %s269
      %s271 = sphi 0, %s269
      %s272 = sphi 0, %s271
      %s286 = sphi 0, %s272
      %s290 = sphi 0, %s290
      %s292 = sphi 0, %s290
      %s293 = sphi 0, %s292
      %s307 = sphi 0, %s293
      %s311 = sphi 0, %s311
      %s313 = sphi 0, %s311
      %s314 = sphi 0, %s313
      %s328 = sphi 0, %s314
      %s332 = sphi 0, %s332
      %s334 = sphi 0, %s332
      %s335 = sphi 0, %s334
      %s349 = sphi 0, %s335
      %s353 = sphi 0, %s353
      %s355 = sphi 0, %s353
      %s356 = sphi 0, %s355
      %s370 = sphi 0, %s356
      %s374 = sphi 0, %s374
      %s376 = sphi 0, %s374
      %s377 = sphi 0, %s376
      %s391 = sphi 0, %s377
      %s395 = sphi 0, %s395
      %s397 = sphi 0, %s395
      %s398 = sphi 0, %s397
      %s412 = sphi 0, %s398
      %s416 = sphi 0, %s416
      %s418 = sphi 0, %s416
      %s419 = sphi 0, %s418
      %s433 = sphi 0, %s419
      %s437 = sphi 0, %s437
      %s439 = sphi 0, %s437
      %s440 = sphi 0, %s439
      %s454 = sphi 0, %s440
      %s458 = sphi 0, %s458
      %s460 = sphi 0, %s458
      %s461 = sphi 0, %s460
      %s475 = sphi 0, %s461
      %s479 = sphi 0, %s479
      %s481 = sphi 0, %s479
      %s482 = sphi 0, %s481
      %s496 = sphi 0, %s482
      %s500 = sphi 0, %s500
      %s502 = sphi 0, %s500
      %s503 = sphi 0, %s502
      %s517 = sphi 0, %s503
      %s521 = sphi 0, %s521
      %s523 = sphi 0, %s521
      %s524 = sphi 0, %s523
      %s538 = sphi 0, %s524
      %s542 = sphi 0, %s542
      %s544 = sphi 0, %s542
      %s545 = sphi 0, %s544
      %s559 = sphi 0, %s545
      %s563 = sphi 0, %s563
      %s565 = sphi 0, %s563
      %s566 = sphi 0, %s565
      %s580 = sphi 0, %s566
      %s584 = sphi 0, %s584
      %s586 = sphi 0, %s584
      %s587 = sphi 0, %s586
      %s601 = sphi 0, %s587
      %s605 = sphi 0, %s605
      %s607 = sphi 0, %s605
      %s608 = sphi 0, %s607
      %s622 = sphi 0, %s608
      %s628 = sphi 0, %s630
      %s631 = sphi 0, %s628
      %s632 = sphi 0, %s631
      %s648 = sphi 0, %s632
    $region4: #{_lambda_.1} parent=1 // loop_header_branch
      %44 = sbr.rel (%p42) target = $region8
    $region5: #{_lambda_.1} parent=1 // loop_body
      %s46 = ssub.s32 %s41, 1
      %s47 = ssub.s32 %s41, 2
      %s48 = sadd.s32 %s41, 1
      %s49 = ssub.s32 %s41, %s48
      %p50 = scmp.eq.s32.totalorder %s49, 0
      %s52 = sadd.s32 %s51, 1
      %s53 = scalar_select %p50, %s51, %s52
      %p56 = pneg %p50
      %p57 = scmp.eq.s32.totalorder %s41, 1
      %p58 = por %p56, %p57
      %p59 = scmp.ne.s32.totalorder %s51, %s54
      %p60 = scmp.eq.s32.totalorder %s41, 0
      %p61 = por %p59, %p60
      %p62 = scmp.ne.s32.totalorder %s51, %s54
      %p63 = scmp.eq.s32.totalorder %s46, 1
      %p64 = por %p62, %p63
      %p65 = scmp.ne.s32.totalorder %s54, %s55
      %p66 = scmp.eq.s32.totalorder %s46, 0
      %p67 = por %p65, %p66
      %p68 = scmp.ne.s32.totalorder %s54, %s55
      %p69 = scmp.eq.s32.totalorder %s47, 1
      %p70 = por %p68, %p69
      %p72 = scmp.ne.s32.totalorder %s55, %s71
      %p73 = scmp.eq.s32.totalorder %s47, 0
      %p74 = por %p72, %p73
      %s75 = ssub.s32 %s41, %s48
      %p76 = scmp.eq.s32.totalorder %s75, 0
      %s78 = sadd.s32 %s77, 1
      %s79 = scalar_select %p76, %s77, %s78
      %p82 = pneg %p76
      %p83 = scmp.eq.s32.totalorder %s41, 1
      %p84 = por %p82, %p83
      %p85 = scmp.ne.s32.totalorder %s77, %s80
      %p86 = scmp.eq.s32.totalorder %s41, 0
      %p87 = por %p85, %p86
      %p88 = scmp.ne.s32.totalorder %s77, %s80
      %p89 = scmp.eq.s32.totalorder %s46, 1
      %p90 = por %p88, %p89
      %p91 = scmp.ne.s32.totalorder %s80, %s81
      %p92 = scmp.eq.s32.totalorder %s46, 0
      %p93 = por %p91, %p92
      %p94 = scmp.ne.s32.totalorder %s80, %s81
      %p95 = scmp.eq.s32.totalorder %s47, 1
      %p96 = por %p94, %p95
      %p98 = scmp.ne.s32.totalorder %s81, %s97
      %p99 = scmp.eq.s32.totalorder %s47, 0
      %p100 = por %p98, %p99
      %s102 = sadd.s32 %s101, 1
      %p105 = scmp.eq.s32.totalorder %s41, 1
      %p106 = scmp.ne.s32.totalorder %s101, %s103
      %p107 = scmp.eq.s32.totalorder %s41, 0
      %p108 = por %p106, %p107
      %p109 = scmp.ne.s32.totalorder %s101, %s103
      %p110 = scmp.eq.s32.totalorder %s46, 1
      %p111 = por %p109, %p110
      %p112 = scmp.ne.s32.totalorder %s103, %s104
      %p113 = scmp.eq.s32.totalorder %s46, 0
      %p114 = por %p112, %p113
      %p115 = scmp.ne.s32.totalorder %s103, %s104
      %p116 = scmp.eq.s32.totalorder %s47, 1
      %p117 = por %p115, %p116
      %p119 = scmp.ne.s32.totalorder %s104, %s118
      %p120 = scmp.eq.s32.totalorder %s47, 0
      %p121 = por %p119, %p120
      %s123 = sadd.s32 %s122, 1
      %p126 = scmp.eq.s32.totalorder %s41, 1
      %p127 = scmp.ne.s32.totalorder %s122, %s124
      %p128 = scmp.eq.s32.totalorder %s41, 0
      %p129 = por %p127, %p128
      %p130 = scmp.ne.s32.totalorder %s122, %s124
      %p131 = scmp.eq.s32.totalorder %s46, 1
      %p132 = por %p130, %p131
      %p133 = scmp.ne.s32.totalorder %s124, %s125
      %p134 = scmp.eq.s32.totalorder %s46, 0
      %p135 = por %p133, %p134
      %p136 = scmp.ne.s32.totalorder %s124, %s125
      %p137 = scmp.eq.s32.totalorder %s47, 1
      %p138 = por %p136, %p137
      %p140 = scmp.ne.s32.totalorder %s125, %s139
      %p141 = scmp.eq.s32.totalorder %s47, 0
      %p142 = por %p140, %p141
      %s144 = sadd.s32 %s143, 1
      %p147 = scmp.eq.s32.totalorder %s41, 1
      %p148 = scmp.ne.s32.totalorder %s143, %s145
      %p149 = scmp.eq.s32.totalorder %s41, 0
      %p150 = por %p148, %p149
      %p151 = scmp.ne.s32.totalorder %s143, %s145
      %p152 = scmp.eq.s32.totalorder %s46, 1
      %p153 = por %p151, %p152
      %p154 = scmp.ne.s32.totalorder %s145, %s146
      %p155 = scmp.eq.s32.totalorder %s46, 0
      %p156 = por %p154, %p155
      %p157 = scmp.ne.s32.totalorder %s145, %s146
      %p158 = scmp.eq.s32.totalorder %s47, 1
      %p159 = por %p157, %p158
      %p161 = scmp.ne.s32.totalorder %s146, %s160
      %p162 = scmp.eq.s32.totalorder %s47, 0
      %p163 = por %p161, %p162
      %s165 = sadd.s32 %s164, 1
      %p168 = scmp.eq.s32.totalorder %s41, 1
      %p169 = scmp.ne.s32.totalorder %s164, %s166
      %p170 = scmp.eq.s32.totalorder %s41, 0
      %p171 = por %p169, %p170
      %p172 = scmp.ne.s32.totalorder %s164, %s166
      %p173 = scmp.eq.s32.totalorder %s46, 1
      %p174 = por %p172, %p173
      %p175 = scmp.ne.s32.totalorder %s166, %s167
      %p176 = scmp.eq.s32.totalorder %s46, 0
      %p177 = por %p175, %p176
      %p178 = scmp.ne.s32.totalorder %s166, %s167
      %p179 = scmp.eq.s32.totalorder %s47, 1
      %p180 = por %p178, %p179
      %p182 = scmp.ne.s32.totalorder %s167, %s181
      %p183 = scmp.eq.s32.totalorder %s47, 0
      %p184 = por %p182, %p183
      %s186 = sadd.s32 %s185, 1
      %p189 = scmp.eq.s32.totalorder %s41, 1
      %p190 = scmp.ne.s32.totalorder %s185, %s187
      %p191 = scmp.eq.s32.totalorder %s41, 0
      %p192 = por %p190, %p191
      %p193 = scmp.ne.s32.totalorder %s185, %s187
      %p194 = scmp.eq.s32.totalorder %s46, 1
      %p195 = por %p193, %p194
      %p196 = scmp.ne.s32.totalorder %s187, %s188
      %p197 = scmp.eq.s32.totalorder %s46, 0
      %p198 = por %p196, %p197
      %p199 = scmp.ne.s32.totalorder %s187, %s188
      %p200 = scmp.eq.s32.totalorder %s47, 1
      %p201 = por %p199, %p200
      %p203 = scmp.ne.s32.totalorder %s188, %s202
      %p204 = scmp.eq.s32.totalorder %s47, 0
      %p205 = por %p203, %p204
      %s207 = sadd.s32 %s206, 1
      %p210 = scmp.eq.s32.totalorder %s41, 1
      %p211 = scmp.ne.s32.totalorder %s206, %s208
      %p212 = scmp.eq.s32.totalorder %s41, 0
      %p213 = por %p211, %p212
      %p214 = scmp.ne.s32.totalorder %s206, %s208
      %p215 = scmp.eq.s32.totalorder %s46, 1
      %p216 = por %p214, %p215
      %p217 = scmp.ne.s32.totalorder %s208, %s209
      %p218 = scmp.eq.s32.totalorder %s46, 0
      %p219 = por %p217, %p218
      %p220 = scmp.ne.s32.totalorder %s208, %s209
      %p221 = scmp.eq.s32.totalorder %s47, 1
      %p222 = por %p220, %p221
      %p224 = scmp.ne.s32.totalorder %s209, %s223
      %p225 = scmp.eq.s32.totalorder %s47, 0
      %p226 = por %p224, %p225
      %s228 = sadd.s32 %s227, 1
      %p231 = scmp.eq.s32.totalorder %s41, 1
      %p232 = scmp.ne.s32.totalorder %s227, %s229
      %p233 = scmp.eq.s32.totalorder %s41, 0
      %p234 = por %p232, %p233
      %p235 = scmp.ne.s32.totalorder %s227, %s229
      %p236 = scmp.eq.s32.totalorder %s46, 1
      %p237 = por %p235, %p236
      %p238 = scmp.ne.s32.totalorder %s229, %s230
      %p239 = scmp.eq.s32.totalorder %s46, 0
      %p240 = por %p238, %p239
      %p241 = scmp.ne.s32.totalorder %s229, %s230
      %p242 = scmp.eq.s32.totalorder %s47, 1
      %p243 = por %p241, %p242
      %p245 = scmp.ne.s32.totalorder %s230, %s244
      %p246 = scmp.eq.s32.totalorder %s47, 0
      %p247 = por %p245, %p246
      %s249 = sadd.s32 %s248, 1
      %p252 = scmp.eq.s32.totalorder %s41, 1
      %p253 = scmp.ne.s32.totalorder %s248, %s250
      %p254 = scmp.eq.s32.totalorder %s41, 0
      %p255 = por %p253, %p254
      %p256 = scmp.ne.s32.totalorder %s248, %s250
      %p257 = scmp.eq.s32.totalorder %s46, 1
      %p258 = por %p256, %p257
      %p259 = scmp.ne.s32.totalorder %s250, %s251
      %p260 = scmp.eq.s32.totalorder %s46, 0
      %p261 = por %p259, %p260
      %p262 = scmp.ne.s32.totalorder %s250, %s251
      %p263 = scmp.eq.s32.totalorder %s47, 1
      %p264 = por %p262, %p263
      %p266 = scmp.ne.s32.totalorder %s251, %s265
      %p267 = scmp.eq.s32.totalorder %s47, 0
      %p268 = por %p266, %p267
      %s270 = sadd.s32 %s269, 1
      %p273 = scmp.eq.s32.totalorder %s41, 1
      %p274 = scmp.ne.s32.totalorder %s269, %s271
      %p275 = scmp.eq.s32.totalorder %s41, 0
      %p276 = por %p274, %p275
      %p277 = scmp.ne.s32.totalorder %s269, %s271
      %p278 = scmp.eq.s32.totalorder %s46, 1
      %p279 = por %p277, %p278
      %p280 = scmp.ne.s32.totalorder %s271, %s272
      %p281 = scmp.eq.s32.totalorder %s46, 0
      %p282 = por %p280, %p281
      %p283 = scmp.ne.s32.totalorder %s271, %s272
      %p284 = scmp.eq.s32.totalorder %s47, 1
      %p285 = por %p283, %p284
      %p287 = scmp.ne.s32.totalorder %s272, %s286
      %p288 = scmp.eq.s32.totalorder %s47, 0
      %p289 = por %p287, %p288
      %s291 = sadd.s32 %s290, 1
      %p294 = scmp.eq.s32.totalorder %s41, 1
      %p295 = scmp.ne.s32.totalorder %s290, %s292
      %p296 = scmp.eq.s32.totalorder %s41, 0
      %p297 = por %p295, %p296
      %p298 = scmp.ne.s32.totalorder %s290, %s292
      %p299 = scmp.eq.s32.totalorder %s46, 1
      %p300 = por %p298, %p299
      %p301 = scmp.ne.s32.totalorder %s292, %s293
      %p302 = scmp.eq.s32.totalorder %s46, 0
      %p303 = por %p301, %p302
      %p304 = scmp.ne.s32.totalorder %s292, %s293
      %p305 = scmp.eq.s32.totalorder %s47, 1
      %p306 = por %p304, %p305
      %p308 = scmp.ne.s32.totalorder %s293, %s307
      %p309 = scmp.eq.s32.totalorder %s47, 0
      %p310 = por %p308, %p309
      %s312 = sadd.s32 %s311, 1
      %p315 = scmp.eq.s32.totalorder %s41, 1
      %p316 = scmp.ne.s32.totalorder %s311, %s313
      %p317 = scmp.eq.s32.totalorder %s41, 0
      %p318 = por %p316, %p317
      %p319 = scmp.ne.s32.totalorder %s311, %s313
      %p320 = scmp.eq.s32.totalorder %s46, 1
      %p321 = por %p319, %p320
      %p322 = scmp.ne.s32.totalorder %s313, %s314
      %p323 = scmp.eq.s32.totalorder %s46, 0
      %p324 = por %p322, %p323
      %p325 = scmp.ne.s32.totalorder %s313, %s314
      %p326 = scmp.eq.s32.totalorder %s47, 1
      %p327 = por %p325, %p326
      %p329 = scmp.ne.s32.totalorder %s314, %s328
      %p330 = scmp.eq.s32.totalorder %s47, 0
      %p331 = por %p329, %p330
      %s333 = sadd.s32 %s332, 1
      %p336 = scmp.eq.s32.totalorder %s41, 1
      %p337 = scmp.ne.s32.totalorder %s332, %s334
      %p338 = scmp.eq.s32.totalorder %s41, 0
      %p339 = por %p337, %p338
      %p340 = scmp.ne.s32.totalorder %s332, %s334
      %p341 = scmp.eq.s32.totalorder %s46, 1
      %p342 = por %p340, %p341
      %p343 = scmp.ne.s32.totalorder %s334, %s335
      %p344 = scmp.eq.s32.totalorder %s46, 0
      %p345 = por %p343, %p344
      %p346 = scmp.ne.s32.totalorder %s334, %s335
      %p347 = scmp.eq.s32.totalorder %s47, 1
      %p348 = por %p346, %p347
      %p350 = scmp.ne.s32.totalorder %s335, %s349
      %p351 = scmp.eq.s32.totalorder %s47, 0
      %p352 = por %p350, %p351
      %s354 = sadd.s32 %s353, 1
      %p357 = scmp.eq.s32.totalorder %s41, 1
      %p358 = scmp.ne.s32.totalorder %s353, %s355
      %p359 = scmp.eq.s32.totalorder %s41, 0
      %p360 = por %p358, %p359
      %p361 = scmp.ne.s32.totalorder %s353, %s355
      %p362 = scmp.eq.s32.totalorder %s46, 1
      %p363 = por %p361, %p362
      %p364 = scmp.ne.s32.totalorder %s355, %s356
      %p365 = scmp.eq.s32.totalorder %s46, 0
      %p366 = por %p364, %p365
      %p367 = scmp.ne.s32.totalorder %s355, %s356
      %p368 = scmp.eq.s32.totalorder %s47, 1
      %p369 = por %p367, %p368
      %p371 = scmp.ne.s32.totalorder %s356, %s370
      %p372 = scmp.eq.s32.totalorder %s47, 0
      %p373 = por %p371, %p372
      %s375 = sadd.s32 %s374, 1
      %p378 = scmp.eq.s32.totalorder %s41, 1
      %p379 = scmp.ne.s32.totalorder %s374, %s376
      %p380 = scmp.eq.s32.totalorder %s41, 0
      %p381 = por %p379, %p380
      %p382 = scmp.ne.s32.totalorder %s374, %s376
      %p383 = scmp.eq.s32.totalorder %s46, 1
      %p384 = por %p382, %p383
      %p385 = scmp.ne.s32.totalorder %s376, %s377
      %p386 = scmp.eq.s32.totalorder %s46, 0
      %p387 = por %p385, %p386
      %p388 = scmp.ne.s32.totalorder %s376, %s377
      %p389 = scmp.eq.s32.totalorder %s47, 1
      %p390 = por %p388, %p389
      %p392 = scmp.ne.s32.totalorder %s377, %s391
      %p393 = scmp.eq.s32.totalorder %s47, 0
      %p394 = por %p392, %p393
      %s396 = sadd.s32 %s395, 1
      %p399 = scmp.eq.s32.totalorder %s41, 1
      %p400 = scmp.ne.s32.totalorder %s395, %s397
      %p401 = scmp.eq.s32.totalorder %s41, 0
      %p402 = por %p400, %p401
      %p403 = scmp.ne.s32.totalorder %s395, %s397
      %p404 = scmp.eq.s32.totalorder %s46, 1
      %p405 = por %p403, %p404
      %p406 = scmp.ne.s32.totalorder %s397, %s398
      %p407 = scmp.eq.s32.totalorder %s46, 0
      %p408 = por %p406, %p407
      %p409 = scmp.ne.s32.totalorder %s397, %s398
      %p410 = scmp.eq.s32.totalorder %s47, 1
      %p411 = por %p409, %p410
      %p413 = scmp.ne.s32.totalorder %s398, %s412
      %p414 = scmp.eq.s32.totalorder %s47, 0
      %p415 = por %p413, %p414
      %s417 = sadd.s32 %s416, 1
      %p420 = scmp.eq.s32.totalorder %s41, 1
      %p421 = scmp.ne.s32.totalorder %s416, %s418
      %p422 = scmp.eq.s32.totalorder %s41, 0
      %p423 = por %p421, %p422
      %p424 = scmp.ne.s32.totalorder %s416, %s418
      %p425 = scmp.eq.s32.totalorder %s46, 1
      %p426 = por %p424, %p425
      %p427 = scmp.ne.s32.totalorder %s418, %s419
      %p428 = scmp.eq.s32.totalorder %s46, 0
      %p429 = por %p427, %p428
      %p430 = scmp.ne.s32.totalorder %s418, %s419
      %p431 = scmp.eq.s32.totalorder %s47, 1
      %p432 = por %p430, %p431
      %p434 = scmp.ne.s32.totalorder %s419, %s433
      %p435 = scmp.eq.s32.totalorder %s47, 0
      %p436 = por %p434, %p435
      %s438 = sadd.s32 %s437, 1
      %p441 = scmp.eq.s32.totalorder %s41, 1
      %p442 = scmp.ne.s32.totalorder %s437, %s439
      %p443 = scmp.eq.s32.totalorder %s41, 0
      %p444 = por %p442, %p443
      %p445 = scmp.ne.s32.totalorder %s437, %s439
      %p446 = scmp.eq.s32.totalorder %s46, 1
      %p447 = por %p445, %p446
      %p448 = scmp.ne.s32.totalorder %s439, %s440
      %p449 = scmp.eq.s32.totalorder %s46, 0
      %p450 = por %p448, %p449
      %p451 = scmp.ne.s32.totalorder %s439, %s440
      %p452 = scmp.eq.s32.totalorder %s47, 1
      %p453 = por %p451, %p452
      %p455 = scmp.ne.s32.totalorder %s440, %s454
      %p456 = scmp.eq.s32.totalorder %s47, 0
      %p457 = por %p455, %p456
      %s459 = sadd.s32 %s458, 1
      %p462 = scmp.eq.s32.totalorder %s41, 1
      %p463 = scmp.ne.s32.totalorder %s458, %s460
      %p464 = scmp.eq.s32.totalorder %s41, 0
      %p465 = por %p463, %p464
      %p466 = scmp.ne.s32.totalorder %s458, %s460
      %p467 = scmp.eq.s32.totalorder %s46, 1
      %p468 = por %p466, %p467
      %p469 = scmp.ne.s32.totalorder %s460, %s461
      %p470 = scmp.eq.s32.totalorder %s46, 0
      %p471 = por %p469, %p470
      %p472 = scmp.ne.s32.totalorder %s460, %s461
      %p473 = scmp.eq.s32.totalorder %s47, 1
      %p474 = por %p472, %p473
      %p476 = scmp.ne.s32.totalorder %s461, %s475
      %p477 = scmp.eq.s32.totalorder %s47, 0
      %p478 = por %p476, %p477
      %s480 = sadd.s32 %s479, 1
      %p483 = scmp.eq.s32.totalorder %s41, 1
      %p484 = scmp.ne.s32.totalorder %s479, %s481
      %p485 = scmp.eq.s32.totalorder %s41, 0
      %p486 = por %p484, %p485
      %p487 = scmp.ne.s32.totalorder %s479, %s481
      %p488 = scmp.eq.s32.totalorder %s46, 1
      %p489 = por %p487, %p488
      %p490 = scmp.ne.s32.totalorder %s481, %s482
      %p491 = scmp.eq.s32.totalorder %s46, 0
      %p492 = por %p490, %p491
      %p493 = scmp.ne.s32.totalorder %s481, %s482
      %p494 = scmp.eq.s32.totalorder %s47, 1
      %p495 = por %p493, %p494
      %p497 = scmp.ne.s32.totalorder %s482, %s496
      %p498 = scmp.eq.s32.totalorder %s47, 0
      %p499 = por %p497, %p498
      %s501 = sadd.s32 %s500, 1
      %p504 = scmp.eq.s32.totalorder %s41, 1
      %p505 = scmp.ne.s32.totalorder %s500, %s502
      %p506 = scmp.eq.s32.totalorder %s41, 0
      %p507 = por %p505, %p506
      %p508 = scmp.ne.s32.totalorder %s500, %s502
      %p509 = scmp.eq.s32.totalorder %s46, 1
      %p510 = por %p508, %p509
      %p511 = scmp.ne.s32.totalorder %s502, %s503
      %p512 = scmp.eq.s32.totalorder %s46, 0
      %p513 = por %p511, %p512
      %p514 = scmp.ne.s32.totalorder %s502, %s503
      %p515 = scmp.eq.s32.totalorder %s47, 1
      %p516 = por %p514, %p515
      %p518 = scmp.ne.s32.totalorder %s503, %s517
      %p519 = scmp.eq.s32.totalorder %s47, 0
      %p520 = por %p518, %p519
      %s522 = sadd.s32 %s521, 1
      %p525 = scmp.eq.s32.totalorder %s41, 1
      %p526 = scmp.ne.s32.totalorder %s521, %s523
      %p527 = scmp.eq.s32.totalorder %s41, 0
      %p528 = por %p526, %p527
      %p529 = scmp.ne.s32.totalorder %s521, %s523
      %p530 = scmp.eq.s32.totalorder %s46, 1
      %p531 = por %p529, %p530
      %p532 = scmp.ne.s32.totalorder %s523, %s524
      %p533 = scmp.eq.s32.totalorder %s46, 0
      %p534 = por %p532, %p533
      %p535 = scmp.ne.s32.totalorder %s523, %s524
      %p536 = scmp.eq.s32.totalorder %s47, 1
      %p537 = por %p535, %p536
      %p539 = scmp.ne.s32.totalorder %s524, %s538
      %p540 = scmp.eq.s32.totalorder %s47, 0
      %p541 = por %p539, %p540
      %s543 = sadd.s32 %s542, 1
      %p546 = scmp.eq.s32.totalorder %s41, 1
      %p547 = scmp.ne.s32.totalorder %s542, %s544
      %p548 = scmp.eq.s32.totalorder %s41, 0
      %p549 = por %p547, %p548
      %p550 = scmp.ne.s32.totalorder %s542, %s544
      %p551 = scmp.eq.s32.totalorder %s46, 1
      %p552 = por %p550, %p551
      %p553 = scmp.ne.s32.totalorder %s544, %s545
      %p554 = scmp.eq.s32.totalorder %s46, 0
      %p555 = por %p553, %p554
      %p556 = scmp.ne.s32.totalorder %s544, %s545
      %p557 = scmp.eq.s32.totalorder %s47, 1
      %p558 = por %p556, %p557
      %p560 = scmp.ne.s32.totalorder %s545, %s559
      %p561 = scmp.eq.s32.totalorder %s47, 0
      %p562 = por %p560, %p561
      %s564 = sadd.s32 %s563, 1
      %p567 = scmp.eq.s32.totalorder %s41, 1
      %p568 = scmp.ne.s32.totalorder %s563, %s565
      %p569 = scmp.eq.s32.totalorder %s41, 0
      %p570 = por %p568, %p569
      %p571 = scmp.ne.s32.totalorder %s563, %s565
      %p572 = scmp.eq.s32.totalorder %s46, 1
      %p573 = por %p571, %p572
      %p574 = scmp.ne.s32.totalorder %s565, %s566
      %p575 = scmp.eq.s32.totalorder %s46, 0
      %p576 = por %p574, %p575
      %p577 = scmp.ne.s32.totalorder %s565, %s566
      %p578 = scmp.eq.s32.totalorder %s47, 1
      %p579 = por %p577, %p578
      %p581 = scmp.ne.s32.totalorder %s566, %s580
      %p582 = scmp.eq.s32.totalorder %s47, 0
      %p583 = por %p581, %p582
      %s585 = sadd.s32 %s584, 1
      %p588 = scmp.eq.s32.totalorder %s41, 1
      %p589 = scmp.ne.s32.totalorder %s584, %s586
      %p590 = scmp.eq.s32.totalorder %s41, 0
      %p591 = por %p589, %p590
      %p592 = scmp.ne.s32.totalorder %s584, %s586
      %p593 = scmp.eq.s32.totalorder %s46, 1
      %p594 = por %p592, %p593
      %p595 = scmp.ne.s32.totalorder %s586, %s587
      %p596 = scmp.eq.s32.totalorder %s46, 0
      %p597 = por %p595, %p596
      %p598 = scmp.ne.s32.totalorder %s586, %s587
      %p599 = scmp.eq.s32.totalorder %s47, 1
      %p600 = por %p598, %p599
      %p602 = scmp.ne.s32.totalorder %s587, %s601
      %p603 = scmp.eq.s32.totalorder %s47, 0
      %p604 = por %p602, %p603
      %s606 = sadd.s32 %s605, 1
      %p609 = scmp.eq.s32.totalorder %s41, 1
      %p610 = scmp.ne.s32.totalorder %s605, %s607
      %p611 = scmp.eq.s32.totalorder %s41, 0
      %p612 = por %p610, %p611
      %p613 = scmp.ne.s32.totalorder %s605, %s607
      %p614 = scmp.eq.s32.totalorder %s46, 1
      %p615 = por %p613, %p614
      %p616 = scmp.ne.s32.totalorder %s607, %s608
      %p617 = scmp.eq.s32.totalorder %s46, 0
      %p618 = por %p616, %p617
      %p619 = scmp.ne.s32.totalorder %s607, %s608
      %p620 = scmp.eq.s32.totalorder %s47, 1
      %p621 = por %p619, %p620
      %p623 = scmp.ne.s32.totalorder %s608, %s622
      %p624 = scmp.eq.s32.totalorder %s47, 0
      %p625 = por %p623, %p624
      %s626 = ssub.s32 %s41, %s48
      %p627 = scmp.eq.s32.totalorder %s626, 0
      %s629 = sadd.s32 %s628, 1
      %s630 = scalar_select %p627, %s628, %s629
      %p633 = pneg %p627
      %p634 = scmp.eq.s32.totalorder %s41, 1
      %p635 = por %p633, %p634
      %p636 = scmp.ne.s32.totalorder %s628, %s631
      %p637 = scmp.eq.s32.totalorder %s41, 0
      %p638 = por %p636, %p637
      %p639 = scmp.ne.s32.totalorder %s628, %s631
      %p640 = scmp.eq.s32.totalorder %s46, 1
      %p641 = por %p639, %p640
      %p642 = scmp.ne.s32.totalorder %s631, %s632
      %p643 = scmp.eq.s32.totalorder %s46, 0
      %p644 = por %p642, %p643
      %p645 = scmp.ne.s32.totalorder %s631, %s632
      %p646 = scmp.eq.s32.totalorder %s47, 1
      %p647 = por %p645, %p646
      %p649 = scmp.ne.s32.totalorder %s632, %s648
      %p650 = scmp.eq.s32.totalorder %s47, 0
      %p651 = por %p649, %p650
      %p652 = scmp.le.s32.totalorder 1, %s41
      %p653 = scmp.lt.s32.totalorder %s41, 3
      %p654 = pnand %p652, %p653
      %p655 = pneg %p654
      // Predicated region
      $region9: #{_lambda_.1} parent=5 // pred_check
        _
      $region10: #{_lambda_.1} parent=5 // pred_check_branch
        %657 = sbr.rel (%p654) target = $region12
      $region11: #{_lambda_.1} parent=5 // pred_region
        %s658 = ssub.s32 %s41, 1
        // Predicated region
        $region13: #{_lambda_.1} parent=11 // pred_check
          %p659 = pneg %p114
        $region14: #{_lambda_.1} parent=11 // pred_check_branch
          %661 = sbr.rel (%p659) target = $region16
        $region15: #{_lambda_.1} parent=11 // pred_region
          _
        $region16: #{_lambda_.1} parent=11 // pred_fallthru
          _
        // Predicated region
        $region17: #{_lambda_.1} parent=11 // pred_check
          %p662 = pneg %p135
        $region18: #{_lambda_.1} parent=11 // pred_check_branch
          %664 = sbr.rel (%p662) target = $region20
        $region19: #{_lambda_.1} parent=11 // pred_region
          %s666 = ssub.s32 256, 256
          %667 = vsyncadd [#allocation3], %s666
          %s668 = sshll.u32 [#allocation2], 4
          %s669 = int_to_ptr.vmem [resolvable:$true] %s668
          %674 = dma.hbm_to_vmem [thread:$0]  %s3, 256, %s669, [#allocation3], 64, 64, 4
        $region20: #{_lambda_.1} parent=11 // pred_fallthru
          _
        // Predicated region
        $region21: #{_lambda_.1} parent=11 // pred_check
          %p675 = pneg %p156
        $region22: #{_lambda_.1} parent=11 // pred_check_branch
          %677 = sbr.rel (%p675) target = $region24
        $region23: #{_lambda_.1} parent=11 // pred_region
          _
        $region24: #{_lambda_.1} parent=11 // pred_fallthru
          _
        // Predicated region
        $region25: #{_lambda_.1} parent=11 // pred_check
          %p678 = pneg %p177
        $region26: #{_lambda_.1} parent=11 // pred_check_branch
          %680 = sbr.rel (%p678) target = $region28
        $region27: #{_lambda_.1} parent=11 // pred_region
          %s682 = ssub.s32 256, 256
          %683 = vsyncadd [#allocation5], %s682
          %s684 = sshll.u32 [#allocation4], 4
          %s685 = int_to_ptr.vmem [resolvable:$true] %s684
          %690 = dma.hbm_to_vmem [thread:$0]  %s5, 256, %s685, [#allocation5], 64, 64, 4
        $region28: #{_lambda_.1} parent=11 // pred_fallthru
          _
        // Predicated region
        $region29: #{_lambda_.1} parent=11 // pred_check
          %p691 = pneg %p198
        $region30: #{_lambda_.1} parent=11 // pred_check_branch
          %693 = sbr.rel (%p691) target = $region32
        $region31: #{_lambda_.1} parent=11 // pred_region
          _
        $region32: #{_lambda_.1} parent=11 // pred_fallthru
          _
        // Predicated region
        $region33: #{_lambda_.1} parent=11 // pred_check
          %p694 = pneg %p219
        $region34: #{_lambda_.1} parent=11 // pred_check_branch
          %696 = sbr.rel (%p694) target = $region36
        $region35: #{_lambda_.1} parent=11 // pred_region
          %s698 = ssub.s32 256, 256
          %699 = vsyncadd [#allocation5], %s698
          %s700 = sshll.u32 [#allocation6], 4
          %s701 = int_to_ptr.vmem [resolvable:$true] %s700
          %706 = dma.hbm_to_vmem [thread:$0]  %s7, 256, %s701, [#allocation5], 64, 64, 4
        $region36: #{_lambda_.1} parent=11 // pred_fallthru
          _
        // Predicated region
        $region37: #{_lambda_.1} parent=11 // pred_check
          %p707 = pneg %p240
        $region38: #{_lambda_.1} parent=11 // pred_check_branch
          %709 = sbr.rel (%p707) target = $region40
        $region39: #{_lambda_.1} parent=11 // pred_region
          _
        $region40: #{_lambda_.1} parent=11 // pred_fallthru
          _
        // Predicated region
        $region41: #{_lambda_.1} parent=11 // pred_check
          %p710 = pneg %p261
        $region42: #{_lambda_.1} parent=11 // pred_check_branch
          %712 = sbr.rel (%p710) target = $region44
        $region43: #{_lambda_.1} parent=11 // pred_region
          %s714 = ssub.s32 256, 256
          %715 = vsyncadd [#allocation8], %s714
          %s716 = sshll.u32 [#allocation7], 4
          %s717 = int_to_ptr.vmem [resolvable:$true] %s716
          %722 = dma.hbm_to_vmem [thread:$0]  %s9, 256, %s717, [#allocation8], 64, 64, 4
        $region44: #{_lambda_.1} parent=11 // pred_fallthru
          _
        // Predicated region
        $region45: #{_lambda_.1} parent=11 // pred_check
          %p723 = pneg %p282
        $region46: #{_lambda_.1} parent=11 // pred_check_branch
          %725 = sbr.rel (%p723) target = $region48
        $region47: #{_lambda_.1} parent=11 // pred_region
          _
        $region48: #{_lambda_.1} parent=11 // pred_fallthru
          _
        // Predicated region
        $region49: #{_lambda_.1} parent=11 // pred_check
          %p726 = pneg %p303
        $region50: #{_lambda_.1} parent=11 // pred_check_branch
          %728 = sbr.rel (%p726) target = $region52
        $region51: #{_lambda_.1} parent=11 // pred_region
          %s730 = ssub.s32 256, 256
          %731 = vsyncadd [#allocation8], %s730
          %s732 = sshll.u32 [#allocation9], 4
          %s733 = int_to_ptr.vmem [resolvable:$true] %s732
          %738 = dma.hbm_to_vmem [thread:$0]  %s11, 256, %s733, [#allocation8], 64, 64, 4
        $region52: #{_lambda_.1} parent=11 // pred_fallthru
          _
        // Predicated region
        $region53: #{_lambda_.1} parent=11 // pred_check
          %p739 = pneg %p324
        $region54: #{_lambda_.1} parent=11 // pred_check_branch
          %741 = sbr.rel (%p739) target = $region56
        $region55: #{_lambda_.1} parent=11 // pred_region
          _
        $region56: #{_lambda_.1} parent=11 // pred_fallthru
          _
        // Predicated region
        $region57: #{_lambda_.1} parent=11 // pred_check
          %p742 = pneg %p345
        $region58: #{_lambda_.1} parent=11 // pred_check_branch
          %744 = sbr.rel (%p742) target = $region60
        $region59: #{_lambda_.1} parent=11 // pred_region
          %s746 = ssub.s32 256, 256
          %747 = vsyncadd [#allocation11], %s746
          %s748 = sshll.u32 [#allocation10], 4
          %s749 = int_to_ptr.vmem [resolvable:$true] %s748
          %754 = dma.hbm_to_vmem [thread:$0]  %s13, 256, %s749, [#allocation11], 64, 64, 4
        $region60: #{_lambda_.1} parent=11 // pred_fallthru
          _
        // Predicated region
        $region61: #{_lambda_.1} parent=11 // pred_check
          %p755 = pneg %p366
        $region62: #{_lambda_.1} parent=11 // pred_check_branch
          %757 = sbr.rel (%p755) target = $region64
        $region63: #{_lambda_.1} parent=11 // pred_region
          %s759 = ssub.s32 16, 16
          %760 = vsyncadd [#allocation11], %s759
          %s762 = sshll.u32 [#allocation12], 4
          %s763 = int_to_ptr.vmem [resolvable:$true] %s762
          %765 = dma.hbm_to_vmem [thread:$0]  %s14, 16, %s763, [#allocation11]
        $region64: #{_lambda_.1} parent=11 // pred_fallthru
          _
        // Predicated region
        $region65: #{_lambda_.1} parent=11 // pred_check
          %p766 = pneg %p387
        $region66: #{_lambda_.1} parent=11 // pred_check_branch
          %768 = sbr.rel (%p766) target = $region68
        $region67: #{_lambda_.1} parent=11 // pred_region
          _
        $region68: #{_lambda_.1} parent=11 // pred_fallthru
          _
        // Predicated region
        $region69: #{_lambda_.1} parent=11 // pred_check
          %p769 = pneg %p408
        $region70: #{_lambda_.1} parent=11 // pred_check_branch
          %771 = sbr.rel (%p769) target = $region72
        $region71: #{_lambda_.1} parent=11 // pred_region
          _
        $region72: #{_lambda_.1} parent=11 // pred_fallthru
          _
        // Predicated region
        $region73: #{_lambda_.1} parent=11 // pred_check
          %p772 = pneg %p429
        $region74: #{_lambda_.1} parent=11 // pred_check_branch
          %774 = sbr.rel (%p772) target = $region76
        $region75: #{_lambda_.1} parent=11 // pred_region
          %s776 = ssub.s32 2048, 2048
          %777 = vsyncadd [#allocation14], %s776
          %s778 = sshll.u32 [#allocation13], 4
          %s779 = int_to_ptr.vmem [resolvable:$true] %s778
          %784 = dma.hbm_to_vmem [thread:$0]  %s17, 2048, %s779, [#allocation14], 128, 128, 8
        $region76: #{_lambda_.1} parent=11 // pred_fallthru
          _
        // Predicated region
        $region77: #{_lambda_.1} parent=11 // pred_check
          %p785 = pneg %p450
        $region78: #{_lambda_.1} parent=11 // pred_check_branch
          %787 = sbr.rel (%p785) target = $region80
        $region79: #{_lambda_.1} parent=11 // pred_region
          %s789 = ssub.s32 4096, 4096
          %790 = vsyncadd [#allocation14], %s789
          %s791 = sshll.u32 [#allocation15], 4
          %s792 = int_to_ptr.vmem [resolvable:$true] %s791
          %797 = dma.hbm_to_vmem [thread:$0]  %s18, 4096, %s792, [#allocation14], 128, 128, 8
        $region80: #{_lambda_.1} parent=11 // pred_fallthru
          _
        // Predicated region
        $region81: #{_lambda_.1} parent=11 // pred_check
          %p798 = pneg %p471
        $region82: #{_lambda_.1} parent=11 // pred_check_branch
          %800 = sbr.rel (%p798) target = $region84
        $region83: #{_lambda_.1} parent=11 // pred_region
          %s802 = ssub.s32 1024, 1024
          %803 = vsyncadd [#allocation17], %s802
          %s804 = sshll.u32 [#allocation16], 4
          %s805 = int_to_ptr.vmem [resolvable:$true] %s804
          %810 = dma.hbm_to_vmem [thread:$0]  %s19, 1024, %s805, [#allocation17], 128, 128, 8
        $region84: #{_lambda_.1} parent=11 // pred_fallthru
          _
        // Predicated region
        $region85: #{_lambda_.1} parent=11 // pred_check
          %p811 = pneg %p492
        $region86: #{_lambda_.1} parent=11 // pred_check_branch
          %813 = sbr.rel (%p811) target = $region88
        $region87: #{_lambda_.1} parent=11 // pred_region
          %s815 = ssub.s32 1024, 1024
          %816 = vsyncadd [#allocation17], %s815
          %s817 = sshll.u32 [#allocation18], 4
          %s818 = int_to_ptr.vmem [resolvable:$true] %s817
          %823 = dma.hbm_to_vmem [thread:$0]  %s20, 1024, %s818, [#allocation17], 256, 256, 16
        $region88: #{_lambda_.1} parent=11 // pred_fallthru
          _
        // Predicated region
        $region89: #{_lambda_.1} parent=11 // pred_check
          %p824 = pneg %p513
        $region90: #{_lambda_.1} parent=11 // pred_check_branch
          %826 = sbr.rel (%p824) target = $region92
        $region91: #{_lambda_.1} parent=11 // pred_region
          %s828 = ssub.s32 2048, 2048
          %829 = vsyncadd [#allocation20], %s828
          %s830 = sshll.u32 [#allocation19], 4
          %s831 = int_to_ptr.vmem [resolvable:$true] %s830
          %836 = dma.hbm_to_vmem [thread:$0]  %s21, 2048, %s831, [#allocation20], 128, 128, 8
        $region92: #{_lambda_.1} parent=11 // pred_fallthru
          _
        // Predicated region
        $region93: #{_lambda_.1} parent=11 // pred_check
          %p837 = pneg %p534
        $region94: #{_lambda_.1} parent=11 // pred_check_branch
          %839 = sbr.rel (%p837) target = $region96
        $region95: #{_lambda_.1} parent=11 // pred_region
          %s841 = ssub.s32 8192, 8192
          %842 = vsyncadd [#allocation20], %s841
          %s843 = sshll.u32 [#allocation21], 4
          %s844 = int_to_ptr.vmem [resolvable:$true] %s843
          %849 = dma.hbm_to_vmem [thread:$0]  %s22, 8192, %s844, [#allocation20], 256, 256, 16
        $region96: #{_lambda_.1} parent=11 // pred_fallthru
          _
        // Predicated region
        $region97: #{_lambda_.1} parent=11 // pred_check
          %p850 = pneg %p555
        $region98: #{_lambda_.1} parent=11 // pred_check_branch
          %852 = sbr.rel (%p850) target = $region100
        $region99: #{_lambda_.1} parent=11 // pred_region
          %s854 = ssub.s32 2048, 2048
          %855 = vsyncadd [#allocation23], %s854
          %s856 = sshll.u32 [#allocation22], 4
          %s857 = int_to_ptr.vmem [resolvable:$true] %s856
          %862 = dma.hbm_to_vmem [thread:$0]  %s23, 2048, %s857, [#allocation23], 128, 128, 8
        $region100: #{_lambda_.1} parent=11 // pred_fallthru
          _
        // Predicated region
        $region101: #{_lambda_.1} parent=11 // pred_check
          %p863 = pneg %p576
        $region102: #{_lambda_.1} parent=11 // pred_check_branch
          %865 = sbr.rel (%p863) target = $region104
        $region103: #{_lambda_.1} parent=11 // pred_region
          _
        $region104: #{_lambda_.1} parent=11 // pred_fallthru
          _
        // Predicated region
        $region105: #{_lambda_.1} parent=11 // pred_check
          %p866 = pneg %p597
        $region106: #{_lambda_.1} parent=11 // pred_check_branch
          %868 = sbr.rel (%p866) target = $region108
        $region107: #{_lambda_.1} parent=11 // pred_region
          _
        $region108: #{_lambda_.1} parent=11 // pred_fallthru
          _
        // Predicated region
        $region109: #{_lambda_.1} parent=11 // pred_check
          %p869 = pneg %p618
        $region110: #{_lambda_.1} parent=11 // pred_check_branch
          %871 = sbr.rel (%p869) target = $region112
        $region111: #{_lambda_.1} parent=11 // pred_region
          %s873 = ssub.s32 512, 512
          %874 = vsyncadd [#allocation23], %s873
          %s875 = sshll.u32 [#allocation24], 4
          %s876 = int_to_ptr.vmem [resolvable:$true] %s875
          %881 = dma.hbm_to_vmem [thread:$0]  %s26, 512, %s876, [#allocation23], 128, 128, 8
        $region112: #{_lambda_.1} parent=11 // pred_fallthru
          _
      $region12: #{_lambda_.1} parent=5 // pred_fallthru
        _
      %p882 = scmp.lt.s32.totalorder %s41, 2
      // Predicated region
      $region113: #{_lambda_.1} parent=5 // pred_check
        %p883 = pneg %p882
      $region114: #{_lambda_.1} parent=5 // pred_check_branch
        %885 = sbr.rel (%p883) target = $region116
      $region115: #{_lambda_.1} parent=5 // pred_region
        // Predicated region
        $region117: #{_lambda_.1} parent=115 // pred_check
          %p886 = pneg %p61
        $region118: #{_lambda_.1} parent=115 // pred_check_branch
          %888 = sbr.rel (%p886) target = $region120
        $region119: #{_lambda_.1} parent=115 // pred_region
          %p889 = scmp.lt.s32.totalorder %s41, 1
          %s890 = scalar_select %p889, %s41, 1
          %s891 = smul.addr %s890, 4
          %s892 = smul.addr %s891, 8
          %s893 = scalar_lea.vmem %s0, %s892
        $region120: #{_lambda_.1} parent=115 // pred_fallthru
          _
        // Predicated region
        $region121: #{_lambda_.1} parent=115 // pred_check
          %p894 = pneg %p87
        $region122: #{_lambda_.1} parent=115 // pred_check_branch
          %896 = sbr.rel (%p894) target = $region124
        $region123: #{_lambda_.1} parent=115 // pred_region
          %p897 = scmp.lt.s32.totalorder %s41, 1
          %s898 = scalar_select %p897, %s41, 1
          %s899 = smul.addr %s898, 8
          %s900 = smul.addr %s899, 8
          %s901 = scalar_lea.vmem %s1, %s900
        $region124: #{_lambda_.1} parent=115 // pred_fallthru
          _
      $region116: #{_lambda_.1} parent=5 // pred_fallthru
        _
      %p902 = scmp.le.s32.totalorder 1, %s41
      %p903 = scmp.lt.s32.totalorder %s41, 3
      %p904 = pnand %p902, %p903
      %p905 = pneg %p904
      // Predicated region
      $region125: #{_lambda_.1} parent=5 // pred_check
        _
      $region126: #{_lambda_.1} parent=5 // pred_check_branch
        %907 = sbr.rel (%p904) target = $region128
      $region127: #{_lambda_.1} parent=5 // pred_region
        %s908 = ssub.s32 %s41, 1
        // Predicated region
        $region129: #{_lambda_.1} parent=127 // pred_check
          %p909 = pneg %p135
        $region130: #{_lambda_.1} parent=127 // pred_check_branch
          %911 = sbr.rel (%p909) target = $region132
        $region131: #{_lambda_.1} parent=127 // pred_region
          %912 = dma.done [#allocation3], 256
        $region132: #{_lambda_.1} parent=127 // pred_fallthru
          _
        // Predicated region
        $region133: #{_lambda_.1} parent=127 // pred_check
          %p913 = pneg %p177
        $region134: #{_lambda_.1} parent=127 // pred_check_branch
          %915 = sbr.rel (%p913) target = $region136
        $region135: #{_lambda_.1} parent=127 // pred_region
          %916 = dma.done [#allocation5], 256
        $region136: #{_lambda_.1} parent=127 // pred_fallthru
          _
        // Predicated region
        $region137: #{_lambda_.1} parent=127 // pred_check
          %p917 = pneg %p219
        $region138: #{_lambda_.1} parent=127 // pred_check_branch
          %919 = sbr.rel (%p917) target = $region140
        $region139: #{_lambda_.1} parent=127 // pred_region
          %920 = dma.done [#allocation5], 256
        $region140: #{_lambda_.1} parent=127 // pred_fallthru
          _
        // Predicated region
        $region141: #{_lambda_.1} parent=127 // pred_check
          %p921 = pneg %p261
        $region142: #{_lambda_.1} parent=127 // pred_check_branch
          %923 = sbr.rel (%p921) target = $region144
        $region143: #{_lambda_.1} parent=127 // pred_region
          %924 = dma.done [#allocation8], 256
        $region144: #{_lambda_.1} parent=127 // pred_fallthru
          _
        // Predicated region
        $region145: #{_lambda_.1} parent=127 // pred_check
          %p925 = pneg %p303
        $region146: #{_lambda_.1} parent=127 // pred_check_branch
          %927 = sbr.rel (%p925) target = $region148
        $region147: #{_lambda_.1} parent=127 // pred_region
          %928 = dma.done [#allocation8], 256
        $region148: #{_lambda_.1} parent=127 // pred_fallthru
          _
        // Predicated region
        $region149: #{_lambda_.1} parent=127 // pred_check
          %p929 = pneg %p345
        $region150: #{_lambda_.1} parent=127 // pred_check_branch
          %931 = sbr.rel (%p929) target = $region152
        $region151: #{_lambda_.1} parent=127 // pred_region
          %932 = dma.done [#allocation11], 256
        $region152: #{_lambda_.1} parent=127 // pred_fallthru
          _
        // Predicated region
        $region153: #{_lambda_.1} parent=127 // pred_check
          %p933 = pneg %p366
        $region154: #{_lambda_.1} parent=127 // pred_check_branch
          %935 = sbr.rel (%p933) target = $region156
        $region155: #{_lambda_.1} parent=127 // pred_region
          %936 = dma.done [#allocation11], 16
        $region156: #{_lambda_.1} parent=127 // pred_fallthru
          _
        // Predicated region
        $region157: #{_lambda_.1} parent=127 // pred_check
          %p937 = pneg %p429
        $region158: #{_lambda_.1} parent=127 // pred_check_branch
          %939 = sbr.rel (%p937) target = $region160
        $region159: #{_lambda_.1} parent=127 // pred_region
          %940 = dma.done [#allocation14], 2048
        $region160: #{_lambda_.1} parent=127 // pred_fallthru
          _
        // Predicated region
        $region161: #{_lambda_.1} parent=127 // pred_check
          %p941 = pneg %p450
        $region162: #{_lambda_.1} parent=127 // pred_check_branch
          %943 = sbr.rel (%p941) target = $region164
        $region163: #{_lambda_.1} parent=127 // pred_region
          %944 = dma.done [#allocation14], 4096
        $region164: #{_lambda_.1} parent=127 // pred_fallthru
          _
        // Predicated region
        $region165: #{_lambda_.1} parent=127 // pred_check
          %p945 = pneg %p471
        $region166: #{_lambda_.1} parent=127 // pred_check_branch
          %947 = sbr.rel (%p945) target = $region168
        $region167: #{_lambda_.1} parent=127 // pred_region
          %948 = dma.done [#allocation17], 1024
        $region168: #{_lambda_.1} parent=127 // pred_fallthru
          _
        // Predicated region
        $region169: #{_lambda_.1} parent=127 // pred_check
          %p949 = pneg %p492
        $region170: #{_lambda_.1} parent=127 // pred_check_branch
          %951 = sbr.rel (%p949) target = $region172
        $region171: #{_lambda_.1} parent=127 // pred_region
          %952 = dma.done [#allocation17], 1024
        $region172: #{_lambda_.1} parent=127 // pred_fallthru
          _
        // Predicated region
        $region173: #{_lambda_.1} parent=127 // pred_check
          %p953 = pneg %p513
        $region174: #{_lambda_.1} parent=127 // pred_check_branch
          %955 = sbr.rel (%p953) target = $region176
        $region175: #{_lambda_.1} parent=127 // pred_region
          %956 = dma.done [#allocation20], 2048
        $region176: #{_lambda_.1} parent=127 // pred_fallthru
          _
        // Predicated region
        $region177: #{_lambda_.1} parent=127 // pred_check
          %p957 = pneg %p534
        $region178: #{_lambda_.1} parent=127 // pred_check_branch
          %959 = sbr.rel (%p957) target = $region180
        $region179: #{_lambda_.1} parent=127 // pred_region
          %960 = dma.done [#allocation20], 8192
        $region180: #{_lambda_.1} parent=127 // pred_fallthru
          _
        // Predicated region
        $region181: #{_lambda_.1} parent=127 // pred_check
          %p961 = pneg %p555
        $region182: #{_lambda_.1} parent=127 // pred_check_branch
          %963 = sbr.rel (%p961) target = $region184
        $region183: #{_lambda_.1} parent=127 // pred_region
          %964 = dma.done [#allocation23], 2048
        $region184: #{_lambda_.1} parent=127 // pred_fallthru
          _
        // Predicated region
        $region185: #{_lambda_.1} parent=127 // pred_check
          %p965 = pneg %p618
        $region186: #{_lambda_.1} parent=127 // pred_check_branch
          %967 = sbr.rel (%p965) target = $region188
        $region187: #{_lambda_.1} parent=127 // pred_region
          %968 = dma.done [#allocation23], 512
        $region188: #{_lambda_.1} parent=127 // pred_fallthru
          _
        %p969 = scmp.lt.s32.totalorder %s46, 1
        %s970 = scalar_select %p969, %s46, 1
        %s971 = smul.addr %s970, 4
        %s972 = smul.addr %s971, 8
        %s973 = scalar_lea.vmem %s0, %s972
        %p974 = pneg %p67
        %p975 = pneg %p64
        %p976 = scmp.lt.s32.totalorder %s46, 1
        %s977 = scalar_select %p976, %s46, 1
        %s978 = smul.addr %s977, 8
        %s979 = smul.addr %s978, 8
        %s980 = scalar_lea.vmem %s1, %s979
        %p981 = pneg %p93
        %p982 = pneg %p90
        %p983 = pneg %p114
        %p984 = pneg %p111
        %p985 = pneg %p135
        %p986 = pneg %p132
        %p987 = pneg %p156
        %p988 = pneg %p153
        %p989 = pneg %p177
        %p990 = pneg %p174
        %p991 = pneg %p198
        %p992 = pneg %p195
        %p993 = pneg %p219
        %p994 = pneg %p216
        %p995 = pneg %p240
        %p996 = pneg %p237
        %p997 = pneg %p261
        %p998 = pneg %p258
        %p999 = pneg %p282
        %p1000 = pneg %p279
        %p1001 = pneg %p303
        %p1002 = pneg %p300
        %p1003 = pneg %p324
        %p1004 = pneg %p321
        %p1005 = pneg %p345
        %p1006 = pneg %p342
        %p1007 = pneg %p366
        %p1008 = pneg %p363
        %p1009 = pneg %p387
        %p1010 = pneg %p384
        %p1011 = pneg %p408
        %p1012 = pneg %p405
        %p1013 = pneg %p429
        %p1014 = pneg %p426
        %p1015 = pneg %p450
        %p1016 = pneg %p447
        %p1017 = pneg %p471
        %p1018 = pneg %p468
        %p1019 = pneg %p492
        %p1020 = pneg %p489
        %p1021 = pneg %p513
        %p1022 = pneg %p510
        %p1023 = pneg %p534
        %p1024 = pneg %p531
        %p1025 = pneg %p555
        %p1026 = pneg %p552
        %p1027 = pneg %p576
        %p1028 = pneg %p573
        %p1029 = pneg %p597
        %p1030 = pneg %p594
        %p1031 = pneg %p618
        %p1032 = pneg %p615
        %p1033 = pneg %p644
        %p1034 = pneg %p641
        %p1035 = scmp.lt.s32.totalorder %s46, 1
        %s1036 = scalar_select %p1035, %s46, 1
        %s1037 = smul.addr %s1036, 4
        %s1038 = smul.addr %s1037, 8
        %s1039 = scalar_lea.vmem %s27, %s1038
        %p1040 = scmp.lt.s32.totalorder %s46, 1
        %s1041 = scalar_select %p1040, %s46, 1
        %s1042 = smul.addr %s1041, 4
        %s1043 = smul.addr %s1042, 8
        %s1044 = scalar_lea.vmem %s0, %s1043
        %p1045 = scmp.lt.s32.totalorder %s46, 1
        %s1046 = scalar_select %p1045, %s46, 1
        %s1047 = smul.addr %s1046, 8
        %s1048 = smul.addr %s1047, 8
        %s1049 = scalar_lea.vmem %s1, %s1048
        %p1050 = scmp.lt.s32.totalorder %s46, 1
        %s1051 = scalar_select %p1050, %s46, 1
        %s1052 = smul.addr %s1051, 4
        %s1053 = smul.addr %s1052, 8
        %s1054 = scalar_lea.vmem %s27, %s1053
        %v1056 = vld [vmem:[%s1044] sm:$0xff]
        %v1057 = vld [vmem:[%s1044 + $0x8] sm:$0xff]
        %v1058 = vld [vmem:[%s1044 + $0x10] sm:$0xff]
        %v1059 = vld [vmem:[%s1044 + $0x18] sm:$0xff]
        %v1060 = vld [vmem:[%s2] sm:$0xff]
        %v1061 = vld [vmem:[%s2 + $0x8] sm:$0xff]
        %v1062 = vld [vmem:[%s2 + $0x10] sm:$0xff]
        %v1063 = vld [vmem:[%s2 + $0x18] sm:$0xff]
        %v1064 = vadd.f32 %v1056, %v1060
        %v1065 = vadd.f32 %v1057, %v1061
        %v1066 = vadd.f32 %v1058, %v1062
        %v1067 = vadd.f32 %v1059, %v1063
        %v1068 = vpack.c.bf16 %v1065, %v1064
        %v1069 = vpack.c.bf16 %v1067, %v1066
        %v1070 = vpack.c.bf16 %v1057, %v1056
        %v1071 = vpack.c.bf16 %v1059, %v1058
        %v1072 = vld [vmem:[#allocation2] sm:$0xf]
        %v1073 = vld [vmem:[#allocation2 + $0x4] sm:$0xf]
        %v1074 = vld [vmem:[#allocation2 + $0x8] sm:$0xf]
        %v1075 = vld [vmem:[#allocation2 + $0xc] sm:$0xf]
        %v1076 = vld [vmem:[%s4] sm:$0x1]
        %v1078 = vlaneseq
        %v1079 = vshrl.u32 %v1078, 7
        %v1080 = vsub.s32 0, %v1079
        %v1081 = vrot.slane %v1076, %v1080
        %v1087 = vunpack.c.l.b16 %v1072
        %v1088 = vunpack.c.l.b16 %v1073
        %v1089 = vunpack.c.l.b16 %v1074
        %v1090 = vunpack.c.l.b16 %v1075
        %v1091 = vpack.c.b16 %v1088, %v1087
        %v1092 = vpack.c.b16 %v1090, %v1089
        %vm1095 = vcmask 261120
        %v1097 = vsel %vm1095, %v1068, 0
        %v1100 = vsel %vm1095, %v1069, 0
        %v1103 = vsel %vm1095, %v1070, 0
        %v1106 = vsel %vm1095, %v1071, 0
        %1108 = vmatprep.subr.bf16.mxu0 0
        %1109 = vmatpush1.bf16.msra.mxu0 0
        %1110 = vmatprep.subr.bf16.mxu0 0
        %1111 = vmatpush1.bf16.msra.mxu0 0
        %1112 = vmatprep.subr.bf16.mxu0 0
        %1113 = vmatpush1.bf16.msra.mxu0 0
        %1114 = vmatprep.subr.bf16.mxu0 0
        %1115 = vmatpush1.bf16.msra.mxu0 0
        %1116 = vmatprep.subr.bf16.mxu0 0
        %1117 = vmatpush1.bf16.msra.mxu0 0
        %1118 = vmatprep.subr.bf16.mxu0 0
        %1119 = vmatpush1.bf16.msra.mxu0 0
        %1120 = vmatprep.subr.bf16.mxu0 0
        %1121 = vmatpush1.bf16.msra.mxu0 %v1092
        %1122 = vmatprep.subr.bf16.mxu0 0
        %1123 = vmatpush1.bf16.msra.mxu0 %v1091
        %1124 = vmatprep.subr.bf16.mxu0 0
        %1125 = vmatpush2.bf16.msra.mxu0 0
        %1126 = vmatprep.subr.bf16.mxu0 0
        %1127 = vmatpush2.bf16.msra.mxu0 0
        %1128 = vmatprep.subr.bf16.mxu0 0
        %1129 = vmatpush2.bf16.msra.mxu0 0
        %1130 = vmatprep.subr.bf16.mxu0 0
        %1131 = vmatpush2.bf16.msra.mxu0 0
        %1132 = vmatprep.subr.bf16.mxu0 0
        %1133 = vmatpush2.bf16.msra.mxu0 0
        %1134 = vmatprep.subr.bf16.mxu0 0
        %1135 = vmatpush2.bf16.msra.mxu0 0
        %1136 = vmatprep.subr.bf16.mxu0 0
        %1137 = vmatpush2.bf16.msra.mxu0 0
        %1138 = vmatprep.subr.bf16.mxu0 0
        %1139 = vmatpush2.bf16.msra.mxu0 0
        %1140 = vmatprep.mubr.bf16.mxu0 0
        %1141 = vmatmul.mubr.bf16.gmra.mxu0 %v1097
        %v1142 = vpop.f32.mrf.mxu0
        %v1143 = vadd.f32 %v1081, %v1142
        %v1144 = vpop.f32.mrf.mxu0
        %v1145 = vpop.f32.mrf.mxu0
        %v1146 = vadd.f32 %v1081, %v1145
        %v1147 = vpop.f32.mrf.mxu0
        %1148 = vmatprep.mubr.bf16.mxu0 0
        %1149 = vmatmul.mubr.bf16.gmra.mxu0 %v1100
        %v1150 = vpop.f32.mrf.mxu0
        %v1151 = vadd.f32 %v1081, %v1150
        %v1152 = vpop.f32.mrf.mxu0
        %v1153 = vpop.f32.mrf.mxu0
        %v1154 = vadd.f32 %v1081, %v1153
        %v1155 = vpop.f32.mrf.mxu0
        %1156 = vmatprep.mubr.bf16.mxu0 0
        %1157 = vmatmul.mubr.bf16.gmra.mxu0 %v1103
        %v1158 = vpop.f32.mrf.mxu0
        %v1159 = vadd.f32 %v1081, %v1158
        %v1160 = vpop.f32.mrf.mxu0
        %v1161 = vpop.f32.mrf.mxu0
        %v1162 = vadd.f32 %v1081, %v1161
        %v1163 = vpop.f32.mrf.mxu0
        %1164 = vmatprep.mubr.bf16.mxu0 0
        %1165 = vmatmul.mubr.bf16.gmra.mxu0 %v1106
        %v1166 = vpop.f32.mrf.mxu0
        %v1167 = vadd.f32 %v1081, %v1166
        %v1168 = vpop.f32.mrf.mxu0
        %v1169 = vpop.f32.mrf.mxu0
        %v1170 = vadd.f32 %v1081, %v1169
        %v1171 = vpop.f32.mrf.mxu0
        %1172 = vdwg.mxu0
        %v1173 = vld [vmem:[#allocation13] sm:$0xff]
        %v1174 = vld [vmem:[#allocation13 + $0x8] sm:$0xff]
        %v1175 = vld [vmem:[#allocation13 + $0x10] sm:$0xff]
        %v1176 = vld [vmem:[#allocation13 + $0x18] sm:$0xff]
        %v1177 = vld [vmem:[#allocation13 + $0x20] sm:$0xff]
        %v1178 = vld [vmem:[#allocation13 + $0x28] sm:$0xff]
        %v1179 = vld [vmem:[#allocation13 + $0x30] sm:$0xff]
        %v1180 = vld [vmem:[#allocation13 + $0x38] sm:$0xff]
        %v1181 = vld [vmem:[#allocation13 + $0x40] sm:$0xff]
        %v1182 = vld [vmem:[#allocation13 + $0x48] sm:$0xff]
        %v1183 = vld [vmem:[#allocation13 + $0x50] sm:$0xff]
        %v1184 = vld [vmem:[#allocation13 + $0x58] sm:$0xff]
        %v1185 = vld [vmem:[#allocation13 + $0x60] sm:$0xff]
        %v1186 = vld [vmem:[#allocation13 + $0x68] sm:$0xff]
        %v1187 = vld [vmem:[#allocation13 + $0x70] sm:$0xff]
        %v1188 = vld [vmem:[#allocation13 + $0x78] sm:$0xff]
        %1205 = vrot.lane.b32.xlu0 %v1173, 32
        %v1206 = vpop.permute.xlu0 %1205
        %1207 = vrot.lane.b32.xlu0 %v1174, 32
        %v1208 = vpop.permute.xlu0 %1207
        %1209 = vrot.lane.b32.xlu0 %v1175, 32
        %v1210 = vpop.permute.xlu0 %1209
        %1211 = vrot.lane.b32.xlu0 %v1176, 32
        %v1212 = vpop.permute.xlu0 %1211
        %1213 = vrot.lane.b32.xlu0 %v1177, 32
        %v1214 = vpop.permute.xlu0 %1213
        %1215 = vrot.lane.b32.xlu0 %v1178, 32
        %v1216 = vpop.permute.xlu0 %1215
        %1217 = vrot.lane.b32.xlu0 %v1179, 32
        %v1218 = vpop.permute.xlu0 %1217
        %1219 = vrot.lane.b32.xlu0 %v1180, 32
        %v1220 = vpop.permute.xlu0 %1219
        %1221 = vrot.lane.b32.xlu0 %v1181, 32
        %v1222 = vpop.permute.xlu0 %1221
        %1223 = vrot.lane.b32.xlu0 %v1182, 32
        %v1224 = vpop.permute.xlu0 %1223
        %1225 = vrot.lane.b32.xlu0 %v1183, 32
        %v1226 = vpop.permute.xlu0 %1225
        %1227 = vrot.lane.b32.xlu0 %v1184, 32
        %v1228 = vpop.permute.xlu0 %1227
        %1229 = vrot.lane.b32.xlu0 %v1185, 32
        %v1230 = vpop.permute.xlu0 %1229
        %1231 = vrot.lane.b32.xlu0 %v1186, 32
        %v1232 = vpop.permute.xlu0 %1231
        %1233 = vrot.lane.b32.xlu0 %v1187, 32
        %v1234 = vpop.permute.xlu0 %1233
        %1235 = vrot.lane.b32.xlu0 %v1188, 32
        %v1236 = vpop.permute.xlu0 %1235
        %v1253 = vmul.f32 %v1143, %v1206
        %v1254 = vmul.f32 %v1146, %v1208
        %v1255 = vmul.f32 %v1151, %v1210
        %v1256 = vmul.f32 %v1154, %v1212
        %v1257 = vmul.f32 %v1143, %v1214
        %v1258 = vmul.f32 %v1146, %v1216
        %v1259 = vmul.f32 %v1151, %v1218
        %v1260 = vmul.f32 %v1154, %v1220
        %v1261 = vmul.f32 %v1143, %v1222
        %v1262 = vmul.f32 %v1146, %v1224
        %v1263 = vmul.f32 %v1151, %v1226
        %v1264 = vmul.f32 %v1154, %v1228
        %v1265 = vmul.f32 %v1143, %v1230
        %v1266 = vmul.f32 %v1146, %v1232
        %v1267 = vmul.f32 %v1151, %v1234
        %v1268 = vmul.f32 %v1154, %v1236
        %v1269 = vpack.c.bf16 %v1254, %v1253
        %v1270 = vpack.c.bf16 %v1256, %v1255
        %v1271 = vpack.c.bf16 %v1258, %v1257
        %v1272 = vpack.c.bf16 %v1260, %v1259
        %v1273 = vpack.c.bf16 %v1262, %v1261
        %v1274 = vpack.c.bf16 %v1264, %v1263
        %v1275 = vpack.c.bf16 %v1266, %v1265
        %v1276 = vpack.c.bf16 %v1268, %v1267
        %1277 = vrot.lane.b32.xlu0 %v1173, 64
        %v1278 = vpop.permute.xlu0 %1277
        %1279 = vrot.lane.b32.xlu0 %v1174, 64
        %v1280 = vpop.permute.xlu0 %1279
        %1281 = vrot.lane.b32.xlu0 %v1175, 64
        %v1282 = vpop.permute.xlu0 %1281
        %1283 = vrot.lane.b32.xlu0 %v1176, 64
        %v1284 = vpop.permute.xlu0 %1283
        %1285 = vrot.lane.b32.xlu0 %v1177, 64
        %v1286 = vpop.permute.xlu0 %1285
        %1287 = vrot.lane.b32.xlu0 %v1178, 64
        %v1288 = vpop.permute.xlu0 %1287
        %1289 = vrot.lane.b32.xlu0 %v1179, 64
        %v1290 = vpop.permute.xlu0 %1289
        %1291 = vrot.lane.b32.xlu0 %v1180, 64
        %v1292 = vpop.permute.xlu0 %1291
        %1293 = vrot.lane.b32.xlu0 %v1181, 64
        %v1294 = vpop.permute.xlu0 %1293
        %1295 = vrot.lane.b32.xlu0 %v1182, 64
        %v1296 = vpop.permute.xlu0 %1295
        %1297 = vrot.lane.b32.xlu0 %v1183, 64
        %v1298 = vpop.permute.xlu0 %1297
        %1299 = vrot.lane.b32.xlu0 %v1184, 64
        %v1300 = vpop.permute.xlu0 %1299
        %1301 = vrot.lane.b32.xlu0 %v1185, 64
        %v1302 = vpop.permute.xlu0 %1301
        %1303 = vrot.lane.b32.xlu0 %v1186, 64
        %v1304 = vpop.permute.xlu0 %1303
        %1305 = vrot.lane.b32.xlu0 %v1187, 64
        %v1306 = vpop.permute.xlu0 %1305
        %1307 = vrot.lane.b32.xlu0 %v1188, 64
        %v1308 = vpop.permute.xlu0 %1307
        %v1325 = vmul.f32 %v1143, %v1278
        %v1326 = vmul.f32 %v1146, %v1280
        %v1327 = vmul.f32 %v1151, %v1282
        %v1328 = vmul.f32 %v1154, %v1284
        %v1329 = vmul.f32 %v1143, %v1286
        %v1330 = vmul.f32 %v1146, %v1288
        %v1331 = vmul.f32 %v1151, %v1290
        %v1332 = vmul.f32 %v1154, %v1292
        %v1333 = vmul.f32 %v1143, %v1294
        %v1334 = vmul.f32 %v1146, %v1296
        %v1335 = vmul.f32 %v1151, %v1298
        %v1336 = vmul.f32 %v1154, %v1300
        %v1337 = vmul.f32 %v1143, %v1302
        %v1338 = vmul.f32 %v1146, %v1304
        %v1339 = vmul.f32 %v1151, %v1306
        %v1340 = vmul.f32 %v1154, %v1308
        %v1341 = vpack.c.bf16 %v1326, %v1325
        %v1342 = vpack.c.bf16 %v1328, %v1327
        %v1343 = vpack.c.bf16 %v1330, %v1329
        %v1344 = vpack.c.bf16 %v1332, %v1331
        %v1345 = vpack.c.bf16 %v1334, %v1333
        %v1346 = vpack.c.bf16 %v1336, %v1335
        %v1347 = vpack.c.bf16 %v1338, %v1337
        %v1348 = vpack.c.bf16 %v1340, %v1339
        %v1349 = vmul.f32 %v1159, %v1206
        %v1350 = vmul.f32 %v1162, %v1208
        %v1351 = vmul.f32 %v1167, %v1210
        %v1352 = vmul.f32 %v1170, %v1212
        %v1353 = vmul.f32 %v1159, %v1214
        %v1354 = vmul.f32 %v1162, %v1216
        %v1355 = vmul.f32 %v1167, %v1218
        %v1356 = vmul.f32 %v1170, %v1220
        %v1357 = vmul.f32 %v1159, %v1222
        %v1358 = vmul.f32 %v1162, %v1224
        %v1359 = vmul.f32 %v1167, %v1226
        %v1360 = vmul.f32 %v1170, %v1228
        %v1361 = vmul.f32 %v1159, %v1230
        %v1362 = vmul.f32 %v1162, %v1232
        %v1363 = vmul.f32 %v1167, %v1234
        %v1364 = vmul.f32 %v1170, %v1236
        %v1365 = vpack.c.bf16 %v1350, %v1349
        %v1366 = vpack.c.bf16 %v1352, %v1351
        %v1367 = vpack.c.bf16 %v1354, %v1353
        %v1368 = vpack.c.bf16 %v1356, %v1355
        %v1369 = vpack.c.bf16 %v1358, %v1357
        %v1370 = vpack.c.bf16 %v1360, %v1359
        %v1371 = vpack.c.bf16 %v1362, %v1361
        %v1372 = vpack.c.bf16 %v1364, %v1363
        %v1373 = vmul.f32 %v1143, 0.35355338
        %v1374 = vmul.f32 %v1146, 0.35355338
        %v1375 = vmul.f32 %v1151, 0.35355338
        %v1376 = vmul.f32 %v1154, 0.35355338
        %v1377 = vpack.c.bf16 %v1374, %v1373
        %v1378 = vpack.c.bf16 %v1376, %v1375
        %1387 = vrot.lane.b32.xlu0 %v1269, 96
        %v1388 = vpop.permute.xlu0 %1387
        %1389 = vrot.lane.b32.xlu0 %v1270, 96
        %v1390 = vpop.permute.xlu0 %1389
        %1391 = vrot.lane.b32.xlu0 %v1271, 96
        %v1392 = vpop.permute.xlu0 %1391
        %1393 = vrot.lane.b32.xlu0 %v1272, 96
        %v1394 = vpop.permute.xlu0 %1393
        %1395 = vrot.lane.b32.xlu0 %v1273, 96
        %v1396 = vpop.permute.xlu0 %1395
        %1397 = vrot.lane.b32.xlu0 %v1274, 96
        %v1398 = vpop.permute.xlu0 %1397
        %1399 = vrot.lane.b32.xlu0 %v1275, 96
        %v1400 = vpop.permute.xlu0 %1399
        %1401 = vrot.lane.b32.xlu0 %v1276, 96
        %v1402 = vpop.permute.xlu0 %1401
        %v1404 = vsel %vm1095, %v1377, 0
        %v1407 = vsel %vm1095, %v1378, 0
        %v1410 = vsel %vm1095, %v1388, 0
        %v1413 = vsel %vm1095, %v1390, 0
        %v1416 = vsel %vm1095, %v1392, 0
        %v1419 = vsel %vm1095, %v1394, 0
        %v1422 = vsel %vm1095, %v1396, 0
        %v1425 = vsel %vm1095, %v1398, 0
        %v1428 = vsel %vm1095, %v1400, 0
        %v1431 = vsel %vm1095, %v1402, 0
        %1433 = vmatprep.subr.bf16.mxu0 0
        %1434 = vmatpush1.bf16.xpose.msra.mxu0 %v1431
        %1435 = vmatprep.subr.bf16.mxu0 0
        %1436 = vmatpush1.bf16.xpose.msra.mxu0 %v1428
        %1437 = vmatprep.subr.bf16.mxu0 0
        %1438 = vmatpush1.bf16.xpose.msra.mxu0 %v1425
        %1439 = vmatprep.subr.bf16.mxu0 0
        %1440 = vmatpush1.bf16.xpose.msra.mxu0 %v1422
        %1441 = vmatprep.subr.bf16.mxu0 0
        %1442 = vmatpush1.bf16.xpose.msra.mxu0 %v1419
        %1443 = vmatprep.subr.bf16.mxu0 0
        %1444 = vmatpush1.bf16.xpose.msra.mxu0 %v1416
        %1445 = vmatprep.subr.bf16.mxu0 0
        %1446 = vmatpush1.bf16.xpose.msra.mxu0 %v1413
        %1447 = vmatprep.subr.bf16.mxu0 0
        %1448 = vmatpush1.bf16.xpose.msra.mxu0 %v1410
        %1449 = vmatprep.subr.bf16.mxu0 0
        %1450 = vmatpush2.bf16.xpose.msra.mxu0 0
        %1451 = vmatprep.subr.bf16.mxu0 0
        %1452 = vmatpush2.bf16.xpose.msra.mxu0 0
        %1453 = vmatprep.subr.bf16.mxu0 0
        %1454 = vmatpush2.bf16.xpose.msra.mxu0 0
        %1455 = vmatprep.subr.bf16.mxu0 0
        %1456 = vmatpush2.bf16.xpose.msra.mxu0 0
        %1457 = vmatprep.subr.bf16.mxu0 0
        %1458 = vmatpush2.bf16.xpose.msra.mxu0 0
        %1459 = vmatprep.subr.bf16.mxu0 0
        %1460 = vmatpush2.bf16.xpose.msra.mxu0 0
        %1461 = vmatprep.subr.bf16.mxu0 0
        %1462 = vmatpush2.bf16.xpose.msra.mxu0 0
        %1463 = vmatprep.subr.bf16.mxu0 0
        %1464 = vmatpush2.bf16.xpose.msra.mxu0 0
        %1465 = vmatprep.mubr.bf16.mxu0 0
        %1466 = vmatmul.mubr.bf16.gmra.mxu0 %v1404
        %v1467 = vpop.f32.mrf.mxu0
        %v1468 = vadd.f32 0.0, %v1467
        %v1469 = vpop.f32.mrf.mxu0
        %v1470 = vpop.f32.mrf.mxu0
        %v1471 = vadd.f32 0.0, %v1470
        %v1472 = vpop.f32.mrf.mxu0
        %1473 = vmatprep.mubr.bf16.mxu0 0
        %1474 = vmatmul.mubr.bf16.gmra.mxu0 %v1407
        %v1475 = vpop.f32.mrf.mxu0
        %v1476 = vadd.f32 0.0, %v1475
        %v1477 = vpop.f32.mrf.mxu0
        %v1478 = vpop.f32.mrf.mxu0
        %v1479 = vadd.f32 0.0, %v1478
        %v1480 = vpop.f32.mrf.mxu0
        %1481 = vdwg.mxu0
        %v1482 = vmul.f32 %v1159, 0.35355338
        %v1483 = vmul.f32 %v1162, 0.35355338
        %v1484 = vmul.f32 %v1167, 0.35355338
        %v1485 = vmul.f32 %v1170, 0.35355338
        %v1486 = vpack.c.bf16 %v1483, %v1482
        %v1487 = vpack.c.bf16 %v1485, %v1484
        %1496 = vrot.lane.b32.xlu0 %v1365, 96
        %v1497 = vpop.permute.xlu0 %1496
        %1498 = vrot.lane.b32.xlu0 %v1366, 96
        %v1499 = vpop.permute.xlu0 %1498
        %1500 = vrot.lane.b32.xlu0 %v1367, 96
        %v1501 = vpop.permute.xlu0 %1500
        %1502 = vrot.lane.b32.xlu0 %v1368, 96
        %v1503 = vpop.permute.xlu0 %1502
        %1504 = vrot.lane.b32.xlu0 %v1369, 96
        %v1505 = vpop.permute.xlu0 %1504
        %1506 = vrot.lane.b32.xlu0 %v1370, 96
        %v1507 = vpop.permute.xlu0 %1506
        %1508 = vrot.lane.b32.xlu0 %v1371, 96
        %v1509 = vpop.permute.xlu0 %1508
        %1510 = vrot.lane.b32.xlu0 %v1372, 96
        %v1511 = vpop.permute.xlu0 %1510
        %v1513 = vsel %vm1095, %v1486, 0
        %v1516 = vsel %vm1095, %v1487, 0
        %v1519 = vsel %vm1095, %v1497, 0
        %v1522 = vsel %vm1095, %v1499, 0
        %v1525 = vsel %vm1095, %v1501, 0
        %v1528 = vsel %vm1095, %v1503, 0
        %v1531 = vsel %vm1095, %v1505, 0
        %v1534 = vsel %vm1095, %v1507, 0
        %v1537 = vsel %vm1095, %v1509, 0
        %v1540 = vsel %vm1095, %v1511, 0
        %1542 = vmatprep.subr.bf16.mxu0 0
        %1543 = vmatpush1.bf16.xpose.msra.mxu0 %v1540
        %1544 = vmatprep.subr.bf16.mxu0 0
        %1545 = vmatpush1.bf16.xpose.msra.mxu0 %v1537
        %1546 = vmatprep.subr.bf16.mxu0 0
        %1547 = vmatpush1.bf16.xpose.msra.mxu0 %v1534
        %1548 = vmatprep.subr.bf16.mxu0 0
        %1549 = vmatpush1.bf16.xpose.msra.mxu0 %v1531
        %1550 = vmatprep.subr.bf16.mxu0 0
        %1551 = vmatpush1.bf16.xpose.msra.mxu0 %v1528
        %1552 = vmatprep.subr.bf16.mxu0 0
        %1553 = vmatpush1.bf16.xpose.msra.mxu0 %v1525
        %1554 = vmatprep.subr.bf16.mxu0 0
        %1555 = vmatpush1.bf16.xpose.msra.mxu0 %v1522
        %1556 = vmatprep.subr.bf16.mxu0 0
        %1557 = vmatpush1.bf16.xpose.msra.mxu0 %v1519
        %1558 = vmatprep.subr.bf16.mxu0 0
        %1559 = vmatpush2.bf16.xpose.msra.mxu0 0
        %1560 = vmatprep.subr.bf16.mxu0 0
        %1561 = vmatpush2.bf16.xpose.msra.mxu0 0
        %1562 = vmatprep.subr.bf16.mxu0 0
        %1563 = vmatpush2.bf16.xpose.msra.mxu0 0
        %1564 = vmatprep.subr.bf16.mxu0 0
        %1565 = vmatpush2.bf16.xpose.msra.mxu0 0
        %1566 = vmatprep.subr.bf16.mxu0 0
        %1567 = vmatpush2.bf16.xpose.msra.mxu0 0
        %1568 = vmatprep.subr.bf16.mxu0 0
        %1569 = vmatpush2.bf16.xpose.msra.mxu0 0
        %1570 = vmatprep.subr.bf16.mxu0 0
        %1571 = vmatpush2.bf16.xpose.msra.mxu0 0
        %1572 = vmatprep.subr.bf16.mxu0 0
        %1573 = vmatpush2.bf16.xpose.msra.mxu0 0
        %1574 = vmatprep.mubr.bf16.mxu0 0
        %1575 = vmatmul.mubr.bf16.gmra.mxu0 %v1513
        %v1576 = vpop.f32.mrf.mxu0
        %v1577 = vadd.f32 0.0, %v1576
        %v1578 = vpop.f32.mrf.mxu0
        %v1579 = vpop.f32.mrf.mxu0
        %v1580 = vadd.f32 0.0, %v1579
        %v1581 = vpop.f32.mrf.mxu0
        %1582 = vmatprep.mubr.bf16.mxu0 0
        %1583 = vmatmul.mubr.bf16.gmra.mxu0 %v1516
        %v1584 = vpop.f32.mrf.mxu0
        %v1585 = vadd.f32 0.0, %v1584
        %v1586 = vpop.f32.mrf.mxu0
        %v1587 = vpop.f32.mrf.mxu0
        %v1588 = vadd.f32 0.0, %v1587
        %v1589 = vpop.f32.mrf.mxu0
        %1590 = vdwg.mxu0
        %v1591 = vld [vmem:[#allocation16] sm:$0xff]
        %v1592 = vld [vmem:[#allocation16 + $0x8] sm:$0xff]
        %v1593 = vld [vmem:[#allocation16 + $0x10] sm:$0xff]
        %v1594 = vld [vmem:[#allocation16 + $0x18] sm:$0xff]
        %v1595 = vld [vmem:[#allocation16 + $0x20] sm:$0xff]
        %v1596 = vld [vmem:[#allocation16 + $0x28] sm:$0xff]
        %v1597 = vld [vmem:[#allocation16 + $0x30] sm:$0xff]
        %v1598 = vld [vmem:[#allocation16 + $0x38] sm:$0xff]
        %v1599 = vld [vmem:[#allocation19] sm:$0xff]
        %v1600 = vld [vmem:[#allocation19 + $0x8] sm:$0xff]
        %v1601 = vld [vmem:[#allocation19 + $0x10] sm:$0xff]
        %v1602 = vld [vmem:[#allocation19 + $0x18] sm:$0xff]
        %v1603 = vld [vmem:[#allocation19 + $0x20] sm:$0xff]
        %v1604 = vld [vmem:[#allocation19 + $0x28] sm:$0xff]
        %v1605 = vld [vmem:[#allocation19 + $0x30] sm:$0xff]
        %v1606 = vld [vmem:[#allocation19 + $0x38] sm:$0xff]
        %v1607 = vld [vmem:[#allocation19 + $0x40] sm:$0xff]
        %v1608 = vld [vmem:[#allocation19 + $0x48] sm:$0xff]
        %v1609 = vld [vmem:[#allocation19 + $0x50] sm:$0xff]
        %v1610 = vld [vmem:[#allocation19 + $0x58] sm:$0xff]
        %v1611 = vld [vmem:[#allocation19 + $0x60] sm:$0xff]
        %v1612 = vld [vmem:[#allocation19 + $0x68] sm:$0xff]
        %v1613 = vld [vmem:[#allocation19 + $0x70] sm:$0xff]
        %v1614 = vld [vmem:[#allocation19 + $0x78] sm:$0xff]
        %v1615 = vadd.f32 %v1468, %v1591
        %v1616 = vadd.f32 %v1471, %v1592
        %v1617 = vadd.f32 %v1476, %v1593
        %v1618 = vadd.f32 %v1479, %v1594
        %v1619 = vadd.f32 %v1577, %v1595
        %v1620 = vadd.f32 %v1580, %v1596
        %v1621 = vadd.f32 %v1585, %v1597
        %v1622 = vadd.f32 %v1588, %v1598
        %1623 = vmax.xlane.f32.xlu0 %v1615
        %v1624 = vpop.xlane.xlu0 %1623
        %1625 = vmax.xlane.f32.xlu0 %v1616
        %v1626 = vpop.xlane.xlu0 %1625
        %1627 = vmax.xlane.f32.xlu0 %v1617
        %v1628 = vpop.xlane.xlu0 %1627
        %1629 = vmax.xlane.f32.xlu0 %v1618
        %v1630 = vpop.xlane.xlu0 %1629
        %1631 = vmax.xlane.f32.xlu0 %v1619
        %v1632 = vpop.xlane.xlu0 %1631
        %1633 = vmax.xlane.f32.xlu0 %v1620
        %v1634 = vpop.xlane.xlu0 %1633
        %1635 = vmax.xlane.f32.xlu0 %v1621
        %v1636 = vpop.xlane.xlu0 %1635
        %1637 = vmax.xlane.f32.xlu0 %v1622
        %v1638 = vpop.xlane.xlu0 %1637
        %v1639 = vsub.f32 %v1615, %v1624
        %v1640 = vsub.f32 %v1616, %v1626
        %v1641 = vsub.f32 %v1617, %v1628
        %v1642 = vsub.f32 %v1618, %v1630
        %v1643 = vsub.f32 %v1619, %v1632
        %v1644 = vsub.f32 %v1620, %v1634
        %v1645 = vsub.f32 %v1621, %v1636
        %v1646 = vsub.f32 %v1622, %v1638
        %v1647 = vmul.f32 %v1639, 1.442695
        %v1648 = vpow.pop %v1647
        %v1649 = vmul.f32 %v1640, 1.442695
        %v1650 = vpow.pop %v1649
        %v1651 = vmul.f32 %v1641, 1.442695
        %v1652 = vpow.pop %v1651
        %v1653 = vmul.f32 %v1642, 1.442695
        %v1654 = vpow.pop %v1653
        %v1655 = vmul.f32 %v1643, 1.442695
        %v1656 = vpow.pop %v1655
        %v1657 = vmul.f32 %v1644, 1.442695
        %v1658 = vpow.pop %v1657
        %v1659 = vmul.f32 %v1645, 1.442695
        %v1660 = vpow.pop %v1659
        %v1661 = vmul.f32 %v1646, 1.442695
        %v1662 = vpow.pop %v1661
        %1663 = vmatprep.subr.mxu0 0.0
        %1664 = vmatpush1.msra.mxu0 %v1614
        %1665 = vmatprep.subr.mxu0 0.0
        %1666 = vmatpush1.msra.mxu0 %v1613
        %1667 = vmatprep.subr.mxu0 0.0
        %1668 = vmatpush1.msra.mxu0 %v1612
        %1669 = vmatprep.subr.mxu0 0.0
        %1670 = vmatpush1.msra.mxu0 %v1611
        %1671 = vmatprep.subr.mxu0 0.0
        %1672 = vmatpush1.msra.mxu0 %v1610
        %1673 = vmatprep.subr.mxu0 0.0
        %1674 = vmatpush1.msra.mxu0 %v1609
        %1675 = vmatprep.subr.mxu0 0.0
        %1676 = vmatpush1.msra.mxu0 %v1608
        %1677 = vmatprep.subr.mxu0 0.0
        %1678 = vmatpush1.msra.mxu0 %v1607
        %1679 = vmatprep.subr.mxu0 0.0
        %1680 = vmatpush1.msra.mxu0 %v1606
        %1681 = vmatprep.subr.mxu0 0.0
        %1682 = vmatpush1.msra.mxu0 %v1605
        %1683 = vmatprep.subr.mxu0 0.0
        %1684 = vmatpush1.msra.mxu0 %v1604
        %1685 = vmatprep.subr.mxu0 0.0
        %1686 = vmatpush1.msra.mxu0 %v1603
        %1687 = vmatprep.subr.mxu0 0.0
        %1688 = vmatpush1.msra.mxu0 %v1602
        %1689 = vmatprep.subr.mxu0 0.0
        %1690 = vmatpush1.msra.mxu0 %v1601
        %1691 = vmatprep.subr.mxu0 0.0
        %1692 = vmatpush1.msra.mxu0 %v1600
        %1693 = vmatprep.subr.mxu0 0.0
        %1694 = vmatpush1.msra.mxu0 %v1599
        %1695 = vmatprep.subr.mxu0 0.0
        %1696 = vmatpush2.msra.mxu0 0.0
        %1697 = vmatprep.subr.mxu0 0.0
        %1698 = vmatpush2.msra.mxu0 0.0
        %1699 = vmatprep.subr.mxu0 0.0
        %1700 = vmatpush2.msra.mxu0 0.0
        %1701 = vmatprep.subr.mxu0 0.0
        %1702 = vmatpush2.msra.mxu0 0.0
        %1703 = vmatprep.subr.mxu0 0.0
        %1704 = vmatpush2.msra.mxu0 0.0
        %1705 = vmatprep.subr.mxu0 0.0
        %1706 = vmatpush2.msra.mxu0 0.0
        %1707 = vmatprep.subr.mxu0 0.0
        %1708 = vmatpush2.msra.mxu0 0.0
        %1709 = vmatprep.subr.mxu0 0.0
        %1710 = vmatpush2.msra.mxu0 0.0
        %1711 = vmatprep.subr.mxu0 0.0
        %1712 = vmatpush2.msra.mxu0 0.0
        %1713 = vmatprep.subr.mxu0 0.0
        %1714 = vmatpush2.msra.mxu0 0.0
        %1715 = vmatprep.subr.mxu0 0.0
        %1716 = vmatpush2.msra.mxu0 0.0
        %1717 = vmatprep.subr.mxu0 0.0
        %1718 = vmatpush2.msra.mxu0 0.0
        %1719 = vmatprep.subr.mxu0 0.0
        %1720 = vmatpush2.msra.mxu0 0.0
        %1721 = vmatprep.subr.mxu0 0.0
        %1722 = vmatpush2.msra.mxu0 0.0
        %1723 = vmatprep.subr.mxu0 0.0
        %1724 = vmatpush2.msra.mxu0 0.0
        %1725 = vmatprep.subr.mxu0 0.0
        %1726 = vmatpush2.msra.mxu0 0.0
        %1727 = vmatprep.mubr.f32.mxu0 0.0
        %1728 = vmatmul.mubr.f32.gmra.mxu0 %v1648
        %v1729 = vpop.f32.mrf.mxu0
        %v1730 = vadd.f32 0.0, %v1729
        %v1731 = vpop.f32.mrf.mxu0
        %1732 = vmatprep.mubr.f32.mxu0 0.0
        %1733 = vmatmul.mubr.f32.gmra.mxu0 %v1650
        %v1734 = vpop.f32.mrf.mxu0
        %v1735 = vadd.f32 0.0, %v1734
        %v1736 = vpop.f32.mrf.mxu0
        %1737 = vmatprep.mubr.f32.mxu0 0.0
        %1738 = vmatmul.mubr.f32.gmra.mxu0 %v1652
        %v1739 = vpop.f32.mrf.mxu0
        %v1740 = vadd.f32 0.0, %v1739
        %v1741 = vpop.f32.mrf.mxu0
        %1742 = vmatprep.mubr.f32.mxu0 0.0
        %1743 = vmatmul.mubr.f32.gmra.mxu0 %v1654
        %v1744 = vpop.f32.mrf.mxu0
        %v1745 = vadd.f32 0.0, %v1744
        %v1746 = vpop.f32.mrf.mxu0
        %1747 = vmatprep.mubr.f32.mxu0 0.0
        %1748 = vmatmul.mubr.f32.gmra.mxu0 %v1656
        %v1749 = vpop.f32.mrf.mxu0
        %v1750 = vadd.f32 0.0, %v1749
        %v1751 = vpop.f32.mrf.mxu0
        %1752 = vmatprep.mubr.f32.mxu0 0.0
        %1753 = vmatmul.mubr.f32.gmra.mxu0 %v1658
        %v1754 = vpop.f32.mrf.mxu0
        %v1755 = vadd.f32 0.0, %v1754
        %v1756 = vpop.f32.mrf.mxu0
        %1757 = vmatprep.mubr.f32.mxu0 0.0
        %1758 = vmatmul.mubr.f32.gmra.mxu0 %v1660
        %v1759 = vpop.f32.mrf.mxu0
        %v1760 = vadd.f32 0.0, %v1759
        %v1761 = vpop.f32.mrf.mxu0
        %1762 = vmatprep.mubr.f32.mxu0 0.0
        %1763 = vmatmul.mubr.f32.gmra.mxu0 %v1662
        %v1764 = vpop.f32.mrf.mxu0
        %v1765 = vadd.f32 0.0, %v1764
        %v1766 = vpop.f32.mrf.mxu0
        %1767 = vdwg.mxu0
        %v1768 = vrcp.pop %v1730
        %v1769 = vrcp.pop %v1735
        %v1770 = vrcp.pop %v1740
        %v1771 = vrcp.pop %v1745
        %v1772 = vrcp.pop %v1750
        %v1773 = vrcp.pop %v1755
        %v1774 = vrcp.pop %v1760
        %v1775 = vrcp.pop %v1765
        %v1776 = vmul.f32 %v1648, %v1768
        %v1777 = vmul.f32 %v1650, %v1769
        %v1778 = vmul.f32 %v1652, %v1770
        %v1779 = vmul.f32 %v1654, %v1771
        %v1780 = vmul.f32 %v1656, %v1772
        %v1781 = vmul.f32 %v1658, %v1773
        %v1782 = vmul.f32 %v1660, %v1774
        %v1783 = vmul.f32 %v1662, %v1775
        %v1784 = vpack.c.bf16 %v1777, %v1776
        %v1785 = vpack.c.bf16 %v1779, %v1778
        %1794 = vrot.lane.b32.xlu0 %v1341, 64
        %v1795 = vpop.permute.xlu0 %1794
        %1796 = vrot.lane.b32.xlu0 %v1342, 64
        %v1797 = vpop.permute.xlu0 %1796
        %1798 = vrot.lane.b32.xlu0 %v1343, 64
        %v1799 = vpop.permute.xlu0 %1798
        %1800 = vrot.lane.b32.xlu0 %v1344, 64
        %v1801 = vpop.permute.xlu0 %1800
        %1802 = vrot.lane.b32.xlu0 %v1345, 64
        %v1803 = vpop.permute.xlu0 %1802
        %1804 = vrot.lane.b32.xlu0 %v1346, 64
        %v1805 = vpop.permute.xlu0 %1804
        %1806 = vrot.lane.b32.xlu0 %v1347, 64
        %v1807 = vpop.permute.xlu0 %1806
        %1808 = vrot.lane.b32.xlu0 %v1348, 64
        %v1809 = vpop.permute.xlu0 %1808
        %1818 = vmatprep.subr.bf16.mxu0 0
        %1819 = vmatpush1.bf16.msra.mxu0 %v1809
        %1820 = vmatprep.subr.bf16.mxu0 0
        %1821 = vmatpush1.bf16.msra.mxu0 %v1807
        %1822 = vmatprep.subr.bf16.mxu0 0
        %1823 = vmatpush1.bf16.msra.mxu0 %v1805
        %1824 = vmatprep.subr.bf16.mxu0 0
        %1825 = vmatpush1.bf16.msra.mxu0 %v1803
        %1826 = vmatprep.subr.bf16.mxu0 0
        %1827 = vmatpush1.bf16.msra.mxu0 %v1801
        %1828 = vmatprep.subr.bf16.mxu0 0
        %1829 = vmatpush1.bf16.msra.mxu0 %v1799
        %1830 = vmatprep.subr.bf16.mxu0 0
        %1831 = vmatpush1.bf16.msra.mxu0 %v1797
        %1832 = vmatprep.subr.bf16.mxu0 0
        %1833 = vmatpush1.bf16.msra.mxu0 %v1795
        %1834 = vmatprep.subr.bf16.mxu0 0
        %1835 = vmatpush2.bf16.msra.mxu0 0
        %1836 = vmatprep.subr.bf16.mxu0 0
        %1837 = vmatpush2.bf16.msra.mxu0 0
        %1838 = vmatprep.subr.bf16.mxu0 0
        %1839 = vmatpush2.bf16.msra.mxu0 0
        %1840 = vmatprep.subr.bf16.mxu0 0
        %1841 = vmatpush2.bf16.msra.mxu0 0
        %1842 = vmatprep.subr.bf16.mxu0 0
        %1843 = vmatpush2.bf16.msra.mxu0 0
        %1844 = vmatprep.subr.bf16.mxu0 0
        %1845 = vmatpush2.bf16.msra.mxu0 0
        %1846 = vmatprep.subr.bf16.mxu0 0
        %1847 = vmatpush2.bf16.msra.mxu0 0
        %1848 = vmatprep.subr.bf16.mxu0 0
        %1849 = vmatpush2.bf16.msra.mxu0 0
        %1850 = vmatprep.mubr.bf16.mxu0 0
        %1851 = vmatmul.mubr.bf16.gmra.mxu0 %v1784
        %v1852 = vpop.f32.mrf.mxu0
        %v1853 = vadd.f32 0.0, %v1852
        %v1854 = vpop.f32.mrf.mxu0
        %v1855 = vpop.f32.mrf.mxu0
        %v1856 = vadd.f32 0.0, %v1855
        %v1857 = vpop.f32.mrf.mxu0
        %1858 = vmatprep.mubr.bf16.mxu0 0
        %1859 = vmatmul.mubr.bf16.gmra.mxu0 %v1785
        %v1860 = vpop.f32.mrf.mxu0
        %v1861 = vadd.f32 0.0, %v1860
        %v1862 = vpop.f32.mrf.mxu0
        %v1863 = vpop.f32.mrf.mxu0
        %v1864 = vadd.f32 0.0, %v1863
        %v1865 = vpop.f32.mrf.mxu0
        %1866 = vdwg.mxu0
        %v1867 = vpack.c.bf16 %v1856, %v1853
        %v1868 = vpack.c.bf16 %v1864, %v1861
        %v1869 = vld [vmem:[#allocation4] sm:$0xf]
        %v1870 = vld [vmem:[#allocation4 + $0x4] sm:$0xf]
        %v1871 = vld [vmem:[#allocation4 + $0x8] sm:$0xf]
        %v1872 = vld [vmem:[#allocation4 + $0xc] sm:$0xf]
        %v1873 = vld [vmem:[%s6] sm:$0x1]
        %v1875 = vlaneseq
        %v1876 = vshrl.u32 %v1875, 7
        %v1877 = vsub.s32 0, %v1876
        %v1878 = vrot.slane %v1873, %v1877
        %v1884 = vunpack.c.l.b16 %v1869
        %v1885 = vunpack.c.l.b16 %v1870
        %v1886 = vunpack.c.l.b16 %v1871
        %v1887 = vunpack.c.l.b16 %v1872
        %v1888 = vpack.c.b16 %v1885, %v1884
        %v1889 = vpack.c.b16 %v1887, %v1886
        %v1893 = vsel %vm1095, %v1867, 0
        %v1896 = vsel %vm1095, %v1868, 0
        %1898 = vmatprep.subr.bf16.mxu0 0
        %1899 = vmatpush1.bf16.msra.mxu0 0
        %1900 = vmatprep.subr.bf16.mxu0 0
        %1901 = vmatpush1.bf16.msra.mxu0 0
        %1902 = vmatprep.subr.bf16.mxu0 0
        %1903 = vmatpush1.bf16.msra.mxu0 0
        %1904 = vmatprep.subr.bf16.mxu0 0
        %1905 = vmatpush1.bf16.msra.mxu0 0
        %1906 = vmatprep.subr.bf16.mxu0 0
        %1907 = vmatpush1.bf16.msra.mxu0 0
        %1908 = vmatprep.subr.bf16.mxu0 0
        %1909 = vmatpush1.bf16.msra.mxu0 0
        %1910 = vmatprep.subr.bf16.mxu0 0
        %1911 = vmatpush1.bf16.msra.mxu0 %v1889
        %1912 = vmatprep.subr.bf16.mxu0 0
        %1913 = vmatpush1.bf16.msra.mxu0 %v1888
        %1914 = vmatprep.subr.bf16.mxu0 0
        %1915 = vmatpush2.bf16.msra.mxu0 0
        %1916 = vmatprep.subr.bf16.mxu0 0
        %1917 = vmatpush2.bf16.msra.mxu0 0
        %1918 = vmatprep.subr.bf16.mxu0 0
        %1919 = vmatpush2.bf16.msra.mxu0 0
        %1920 = vmatprep.subr.bf16.mxu0 0
        %1921 = vmatpush2.bf16.msra.mxu0 0
        %1922 = vmatprep.subr.bf16.mxu0 0
        %1923 = vmatpush2.bf16.msra.mxu0 0
        %1924 = vmatprep.subr.bf16.mxu0 0
        %1925 = vmatpush2.bf16.msra.mxu0 0
        %1926 = vmatprep.subr.bf16.mxu0 0
        %1927 = vmatpush2.bf16.msra.mxu0 0
        %1928 = vmatprep.subr.bf16.mxu0 0
        %1929 = vmatpush2.bf16.msra.mxu0 0
        %1930 = vmatprep.mubr.bf16.mxu0 0
        %1931 = vmatmul.mubr.bf16.gmra.mxu0 %v1893
        %v1932 = vpop.f32.mrf.mxu0
        %v1933 = vadd.f32 %v1878, %v1932
        %v1934 = vpop.f32.mrf.mxu0
        %v1935 = vpop.f32.mrf.mxu0
        %v1936 = vadd.f32 %v1878, %v1935
        %v1937 = vpop.f32.mrf.mxu0
        %1938 = vmatprep.mubr.bf16.mxu0 0
        %1939 = vmatmul.mubr.bf16.gmra.mxu0 %v1896
        %v1940 = vpop.f32.mrf.mxu0
        %v1941 = vadd.f32 %v1878, %v1940
        %v1942 = vpop.f32.mrf.mxu0
        %v1943 = vpop.f32.mrf.mxu0
        %v1944 = vadd.f32 %v1878, %v1943
        %v1945 = vpop.f32.mrf.mxu0
        %1946 = vdwg.mxu0
        %v1947 = vld [vmem:[#allocation22] sm:$0xff]
        %v1948 = vld [vmem:[#allocation22 + $0x8] sm:$0xff]
        %v1949 = vld [vmem:[#allocation22 + $0x10] sm:$0xff]
        %v1950 = vld [vmem:[#allocation22 + $0x18] sm:$0xff]
        %v1951 = vld [vmem:[#allocation22 + $0x20] sm:$0xff]
        %v1952 = vld [vmem:[#allocation22 + $0x28] sm:$0xff]
        %v1953 = vld [vmem:[#allocation22 + $0x30] sm:$0xff]
        %v1954 = vld [vmem:[#allocation22 + $0x38] sm:$0xff]
        %v1955 = vld [vmem:[#allocation22 + $0x40] sm:$0xff]
        %v1956 = vld [vmem:[#allocation22 + $0x48] sm:$0xff]
        %v1957 = vld [vmem:[#allocation22 + $0x50] sm:$0xff]
        %v1958 = vld [vmem:[#allocation22 + $0x58] sm:$0xff]
        %v1959 = vld [vmem:[#allocation22 + $0x60] sm:$0xff]
        %v1960 = vld [vmem:[#allocation22 + $0x68] sm:$0xff]
        %v1961 = vld [vmem:[#allocation22 + $0x70] sm:$0xff]
        %v1962 = vld [vmem:[#allocation22 + $0x78] sm:$0xff]
        %1963 = vmatprep.subr.mxu0 0.0
        %1964 = vmatpush1.msra.mxu0 %v1962
        %1965 = vmatprep.subr.mxu0 0.0
        %1966 = vmatpush1.msra.mxu0 %v1961
        %1967 = vmatprep.subr.mxu0 0.0
        %1968 = vmatpush1.msra.mxu0 %v1960
        %1969 = vmatprep.subr.mxu0 0.0
        %1970 = vmatpush1.msra.mxu0 %v1959
        %1971 = vmatprep.subr.mxu0 0.0
        %1972 = vmatpush1.msra.mxu0 %v1958
        %1973 = vmatprep.subr.mxu0 0.0
        %1974 = vmatpush1.msra.mxu0 %v1957
        %1975 = vmatprep.subr.mxu0 0.0
        %1976 = vmatpush1.msra.mxu0 %v1956
        %1977 = vmatprep.subr.mxu0 0.0
        %1978 = vmatpush1.msra.mxu0 %v1955
        %1979 = vmatprep.subr.mxu0 0.0
        %1980 = vmatpush1.msra.mxu0 %v1954
        %1981 = vmatprep.subr.mxu0 0.0
        %1982 = vmatpush1.msra.mxu0 %v1953
        %1983 = vmatprep.subr.mxu0 0.0
        %1984 = vmatpush1.msra.mxu0 %v1952
        %1985 = vmatprep.subr.mxu0 0.0
        %1986 = vmatpush1.msra.mxu0 %v1951
        %1987 = vmatprep.subr.mxu0 0.0
        %1988 = vmatpush1.msra.mxu0 %v1950
        %1989 = vmatprep.subr.mxu0 0.0
        %1990 = vmatpush1.msra.mxu0 %v1949
        %1991 = vmatprep.subr.mxu0 0.0
        %1992 = vmatpush1.msra.mxu0 %v1948
        %1993 = vmatprep.subr.mxu0 0.0
        %1994 = vmatpush1.msra.mxu0 %v1947
        %1995 = vmatprep.subr.mxu0 0.0
        %1996 = vmatpush2.msra.mxu0 0.0
        %1997 = vmatprep.subr.mxu0 0.0
        %1998 = vmatpush2.msra.mxu0 0.0
        %1999 = vmatprep.subr.mxu0 0.0
        %2000 = vmatpush2.msra.mxu0 0.0
        %2001 = vmatprep.subr.mxu0 0.0
        %2002 = vmatpush2.msra.mxu0 0.0
        %2003 = vmatprep.subr.mxu0 0.0
        %2004 = vmatpush2.msra.mxu0 0.0
        %2005 = vmatprep.subr.mxu0 0.0
        %2006 = vmatpush2.msra.mxu0 0.0
        %2007 = vmatprep.subr.mxu0 0.0
        %2008 = vmatpush2.msra.mxu0 0.0
        %2009 = vmatprep.subr.mxu0 0.0
        %2010 = vmatpush2.msra.mxu0 0.0
        %2011 = vmatprep.subr.mxu0 0.0
        %2012 = vmatpush2.msra.mxu0 0.0
        %2013 = vmatprep.subr.mxu0 0.0
        %2014 = vmatpush2.msra.mxu0 0.0
        %2015 = vmatprep.subr.mxu0 0.0
        %2016 = vmatpush2.msra.mxu0 0.0
        %2017 = vmatprep.subr.mxu0 0.0
        %2018 = vmatpush2.msra.mxu0 0.0
        %2019 = vmatprep.subr.mxu0 0.0
        %2020 = vmatpush2.msra.mxu0 0.0
        %2021 = vmatprep.subr.mxu0 0.0
        %2022 = vmatpush2.msra.mxu0 0.0
        %2023 = vmatprep.subr.mxu0 0.0
        %2024 = vmatpush2.msra.mxu0 0.0
        %2025 = vmatprep.subr.mxu0 0.0
        %2026 = vmatpush2.msra.mxu0 0.0
        %2027 = vmatprep.mubr.f32.mxu0 0.0
        %2028 = vmatmul.mubr.f32.gmra.mxu0 %v1776
        %v2029 = vpop.f32.mrf.mxu0
        %v2030 = vadd.f32 0.0, %v2029
        %v2031 = vpop.f32.mrf.mxu0
        %2032 = vmatprep.mubr.f32.mxu0 0.0
        %2033 = vmatmul.mubr.f32.gmra.mxu0 %v1777
        %v2034 = vpop.f32.mrf.mxu0
        %v2035 = vadd.f32 0.0, %v2034
        %v2036 = vpop.f32.mrf.mxu0
        %2037 = vmatprep.mubr.f32.mxu0 0.0
        %2038 = vmatmul.mubr.f32.gmra.mxu0 %v1778
        %v2039 = vpop.f32.mrf.mxu0
        %v2040 = vadd.f32 0.0, %v2039
        %v2041 = vpop.f32.mrf.mxu0
        %2042 = vmatprep.mubr.f32.mxu0 0.0
        %2043 = vmatmul.mubr.f32.gmra.mxu0 %v1779
        %v2044 = vpop.f32.mrf.mxu0
        %v2045 = vadd.f32 0.0, %v2044
        %v2046 = vpop.f32.mrf.mxu0
        %2047 = vdwg.mxu0
        %2048 = vmatprep.subr.mxu0 0.0
        %2049 = vmatpush1.msra.mxu0 %v2045
        %2050 = vmatprep.subr.mxu0 0.0
        %2051 = vmatpush1.msra.mxu0 %v2040
        %2052 = vmatprep.subr.mxu0 0.0
        %2053 = vmatpush1.msra.mxu0 %v2035
        %2054 = vmatprep.subr.mxu0 0.0
        %2055 = vmatpush1.msra.mxu0 %v2030
        %2056 = vmatprep.subr.mxu0 0.0
        %2057 = vmatpush1.msra.mxu0 %v2045
        %2058 = vmatprep.subr.mxu0 0.0
        %2059 = vmatpush1.msra.mxu0 %v2040
        %2060 = vmatprep.subr.mxu0 0.0
        %2061 = vmatpush1.msra.mxu0 %v2035
        %2062 = vmatprep.subr.mxu0 0.0
        %2063 = vmatpush1.msra.mxu0 %v2030
        %2064 = vmatprep.subr.mxu0 0.0
        %2065 = vmatpush1.msra.mxu0 %v2045
        %2066 = vmatprep.subr.mxu0 0.0
        %2067 = vmatpush1.msra.mxu0 %v2040
        %2068 = vmatprep.subr.mxu0 0.0
        %2069 = vmatpush1.msra.mxu0 %v2035
        %2070 = vmatprep.subr.mxu0 0.0
        %2071 = vmatpush1.msra.mxu0 %v2030
        %2072 = vmatprep.subr.mxu0 0.0
        %2073 = vmatpush1.msra.mxu0 %v2045
        %2074 = vmatprep.subr.mxu0 0.0
        %2075 = vmatpush1.msra.mxu0 %v2040
        %2076 = vmatprep.subr.mxu0 0.0
        %2077 = vmatpush1.msra.mxu0 %v2035
        %2078 = vmatprep.subr.mxu0 0.0
        %2079 = vmatpush1.msra.mxu0 %v2030
        %2080 = vmatprep.subr.mxu0 0.0
        %2081 = vmatpush2.msra.mxu0 0.0
        %2082 = vmatprep.subr.mxu0 0.0
        %2083 = vmatpush2.msra.mxu0 0.0
        %2084 = vmatprep.subr.mxu0 0.0
        %2085 = vmatpush2.msra.mxu0 0.0
        %2086 = vmatprep.subr.mxu0 0.0
        %2087 = vmatpush2.msra.mxu0 0.0
        %2088 = vmatprep.subr.mxu0 0.0
        %2089 = vmatpush2.msra.mxu0 0.0
        %2090 = vmatprep.subr.mxu0 0.0
        %2091 = vmatpush2.msra.mxu0 0.0
        %2092 = vmatprep.subr.mxu0 0.0
        %2093 = vmatpush2.msra.mxu0 0.0
        %2094 = vmatprep.subr.mxu0 0.0
        %2095 = vmatpush2.msra.mxu0 0.0
        %2096 = vmatprep.subr.mxu0 0.0
        %2097 = vmatpush2.msra.mxu0 0.0
        %2098 = vmatprep.subr.mxu0 0.0
        %2099 = vmatpush2.msra.mxu0 0.0
        %2100 = vmatprep.subr.mxu0 0.0
        %2101 = vmatpush2.msra.mxu0 0.0
        %2102 = vmatprep.subr.mxu0 0.0
        %2103 = vmatpush2.msra.mxu0 0.0
        %2104 = vmatprep.subr.mxu0 0.0
        %2105 = vmatpush2.msra.mxu0 0.0
        %2106 = vmatprep.subr.mxu0 0.0
        %2107 = vmatpush2.msra.mxu0 0.0
        %2108 = vmatprep.subr.mxu0 0.0
        %2109 = vmatpush2.msra.mxu0 0.0
        %2110 = vmatprep.subr.mxu0 0.0
        %2111 = vmatpush2.msra.mxu0 0.0
        %2112 = vmatprep.mubr.f32.mxu0 0.0
        %2113 = vmatmul.mubr.f32.gmra.mxu0 %v1780
        %v2114 = vpop.f32.mrf.mxu0
        %v2115 = vadd.f32 0.0, %v2114
        %v2116 = vpop.f32.mrf.mxu0
        %2117 = vmatprep.mubr.f32.mxu0 0.0
        %2118 = vmatmul.mubr.f32.gmra.mxu0 %v1781
        %v2119 = vpop.f32.mrf.mxu0
        %v2120 = vadd.f32 0.0, %v2119
        %v2121 = vpop.f32.mrf.mxu0
        %2122 = vmatprep.mubr.f32.mxu0 0.0
        %2123 = vmatmul.mubr.f32.gmra.mxu0 %v1782
        %v2124 = vpop.f32.mrf.mxu0
        %v2125 = vadd.f32 0.0, %v2124
        %v2126 = vpop.f32.mrf.mxu0
        %2127 = vmatprep.mubr.f32.mxu0 0.0
        %2128 = vmatmul.mubr.f32.gmra.mxu0 %v1783
        %v2129 = vpop.f32.mrf.mxu0
        %v2130 = vadd.f32 0.0, %v2129
        %v2131 = vpop.f32.mrf.mxu0
        %2132 = vdwg.mxu0
        %v2133 = vld [vmem:[%s25] sm:$0xff]
        %v2134 = vld [vmem:[%s25 + $0x8] sm:$0xff]
        %v2135 = vld [vmem:[%s25 + $0x10] sm:$0xff]
        %v2136 = vld [vmem:[%s25 + $0x18] sm:$0xff]
        %v2137 = vld [vmem:[%s25 + $0x20] sm:$0xff]
        %v2138 = vld [vmem:[%s25 + $0x28] sm:$0xff]
        %v2139 = vld [vmem:[%s25 + $0x30] sm:$0xff]
        %v2140 = vld [vmem:[%s25 + $0x38] sm:$0xff]
        %v2141 = vld [vmem:[%s25 + $0x40] sm:$0xff]
        %v2142 = vld [vmem:[%s25 + $0x48] sm:$0xff]
        %v2143 = vld [vmem:[%s25 + $0x50] sm:$0xff]
        %v2144 = vld [vmem:[%s25 + $0x58] sm:$0xff]
        %v2145 = vld [vmem:[%s25 + $0x60] sm:$0xff]
        %v2146 = vld [vmem:[%s25 + $0x68] sm:$0xff]
        %v2147 = vld [vmem:[%s25 + $0x70] sm:$0xff]
        %v2148 = vld [vmem:[%s25 + $0x78] sm:$0xff]
        %2149 = vmatprep.subr.mxu0 0.0
        %2150 = vmatpush1.msra.mxu0 %v2148
        %2151 = vmatprep.subr.mxu0 0.0
        %2152 = vmatpush1.msra.mxu0 %v2147
        %2153 = vmatprep.subr.mxu0 0.0
        %2154 = vmatpush1.msra.mxu0 %v2146
        %2155 = vmatprep.subr.mxu0 0.0
        %2156 = vmatpush1.msra.mxu0 %v2145
        %2157 = vmatprep.subr.mxu0 0.0
        %2158 = vmatpush1.msra.mxu0 %v2144
        %2159 = vmatprep.subr.mxu0 0.0
        %2160 = vmatpush1.msra.mxu0 %v2143
        %2161 = vmatprep.subr.mxu0 0.0
        %2162 = vmatpush1.msra.mxu0 %v2142
        %2163 = vmatprep.subr.mxu0 0.0
        %2164 = vmatpush1.msra.mxu0 %v2141
        %2165 = vmatprep.subr.mxu0 0.0
        %2166 = vmatpush1.msra.mxu0 %v2140
        %2167 = vmatprep.subr.mxu0 0.0
        %2168 = vmatpush1.msra.mxu0 %v2139
        %2169 = vmatprep.subr.mxu0 0.0
        %2170 = vmatpush1.msra.mxu0 %v2138
        %2171 = vmatprep.subr.mxu0 0.0
        %2172 = vmatpush1.msra.mxu0 %v2137
        %2173 = vmatprep.subr.mxu0 0.0
        %2174 = vmatpush1.msra.mxu0 %v2136
        %2175 = vmatprep.subr.mxu0 0.0
        %2176 = vmatpush1.msra.mxu0 %v2135
        %2177 = vmatprep.subr.mxu0 0.0
        %2178 = vmatpush1.msra.mxu0 %v2134
        %2179 = vmatprep.subr.mxu0 0.0
        %2180 = vmatpush1.msra.mxu0 %v2133
        %2181 = vmatprep.subr.mxu0 0.0
        %2182 = vmatpush2.msra.mxu0 0.0
        %2183 = vmatprep.subr.mxu0 0.0
        %2184 = vmatpush2.msra.mxu0 0.0
        %2185 = vmatprep.subr.mxu0 0.0
        %2186 = vmatpush2.msra.mxu0 0.0
        %2187 = vmatprep.subr.mxu0 0.0
        %2188 = vmatpush2.msra.mxu0 0.0
        %2189 = vmatprep.subr.mxu0 0.0
        %2190 = vmatpush2.msra.mxu0 0.0
        %2191 = vmatprep.subr.mxu0 0.0
        %2192 = vmatpush2.msra.mxu0 0.0
        %2193 = vmatprep.subr.mxu0 0.0
        %2194 = vmatpush2.msra.mxu0 0.0
        %2195 = vmatprep.subr.mxu0 0.0
        %2196 = vmatpush2.msra.mxu0 0.0
        %2197 = vmatprep.subr.mxu0 0.0
        %2198 = vmatpush2.msra.mxu0 0.0
        %2199 = vmatprep.subr.mxu0 0.0
        %2200 = vmatpush2.msra.mxu0 0.0
        %2201 = vmatprep.subr.mxu0 0.0
        %2202 = vmatpush2.msra.mxu0 0.0
        %2203 = vmatprep.subr.mxu0 0.0
        %2204 = vmatpush2.msra.mxu0 0.0
        %2205 = vmatprep.subr.mxu0 0.0
        %2206 = vmatpush2.msra.mxu0 0.0
        %2207 = vmatprep.subr.mxu0 0.0
        %2208 = vmatpush2.msra.mxu0 0.0
        %2209 = vmatprep.subr.mxu0 0.0
        %2210 = vmatpush2.msra.mxu0 0.0
        %2211 = vmatprep.subr.mxu0 0.0
        %2212 = vmatpush2.msra.mxu0 0.0
        %2213 = vmatprep.mubr.f32.mxu0 0.0
        %2214 = vmatmul.mubr.f32.gmra.mxu0 %v2115
        %v2215 = vpop.f32.mrf.mxu0
        %v2216 = vadd.f32 0.0, %v2215
        %v2217 = vpop.f32.mrf.mxu0
        %2218 = vmatprep.mubr.f32.mxu0 0.0
        %2219 = vmatmul.mubr.f32.gmra.mxu0 %v2120
        %v2220 = vpop.f32.mrf.mxu0
        %v2221 = vadd.f32 0.0, %v2220
        %v2222 = vpop.f32.mrf.mxu0
        %2223 = vmatprep.mubr.f32.mxu0 0.0
        %2224 = vmatmul.mubr.f32.gmra.mxu0 %v2125
        %v2225 = vpop.f32.mrf.mxu0
        %v2226 = vadd.f32 0.0, %v2225
        %v2227 = vpop.f32.mrf.mxu0
        %2228 = vmatprep.mubr.f32.mxu0 0.0
        %2229 = vmatmul.mubr.f32.gmra.mxu0 %v2130
        %v2230 = vpop.f32.mrf.mxu0
        %v2231 = vadd.f32 0.0, %v2230
        %v2232 = vpop.f32.mrf.mxu0
        %2233 = vdwg.mxu0
        %v2234 = vld [vmem:[#allocation24] sm:$0xff]
        %v2235 = vld [vmem:[#allocation24 + $0x8] sm:$0xff]
        %v2236 = vld [vmem:[#allocation24 + $0x10] sm:$0xff]
        %v2237 = vld [vmem:[#allocation24 + $0x18] sm:$0xff]
        %v2238 = vmul.f32 %v2216, %v2234
        %v2239 = vmul.f32 %v2221, %v2235
        %v2240 = vmul.f32 %v2226, %v2236
        %v2241 = vmul.f32 %v2231, %v2237
        %v2243 = vsel %vm1095, %v2238, 0
        %v2246 = vsel %vm1095, %v2239, 0
        %v2249 = vsel %vm1095, %v2240, 0
        %v2252 = vsel %vm1095, %v2241, 0
        %2254 = vmatprep.subr.mxu0 0.0
        %2255 = vmatpush1.msra.mxu0 0.0
        %2256 = vmatprep.subr.mxu0 0.0
        %2257 = vmatpush1.msra.mxu0 0.0
        %2258 = vmatprep.subr.mxu0 0.0
        %2259 = vmatpush1.msra.mxu0 0.0
        %2260 = vmatprep.subr.mxu0 0.0
        %2261 = vmatpush1.msra.mxu0 0.0
        %2262 = vmatprep.subr.mxu0 0.0
        %2263 = vmatpush1.msra.mxu0 0.0
        %2264 = vmatprep.subr.mxu0 0.0
        %2265 = vmatpush1.msra.mxu0 0.0
        %2266 = vmatprep.subr.mxu0 0.0
        %2267 = vmatpush1.msra.mxu0 0.0
        %2268 = vmatprep.subr.mxu0 0.0
        %2269 = vmatpush1.msra.mxu0 0.0
        %2270 = vmatprep.subr.mxu0 0.0
        %2271 = vmatpush1.msra.mxu0 0.0
        %2272 = vmatprep.subr.mxu0 0.0
        %2273 = vmatpush1.msra.mxu0 0.0
        %2274 = vmatprep.subr.mxu0 0.0
        %2275 = vmatpush1.msra.mxu0 0.0
        %2276 = vmatprep.subr.mxu0 0.0
        %2277 = vmatpush1.msra.mxu0 0.0
        %2278 = vmatprep.subr.mxu0 0.0
        %2279 = vmatpush1.msra.mxu0 %v1944
        %2280 = vmatprep.subr.mxu0 0.0
        %2281 = vmatpush1.msra.mxu0 %v1941
        %2282 = vmatprep.subr.mxu0 0.0
        %2283 = vmatpush1.msra.mxu0 %v1936
        %2284 = vmatprep.subr.mxu0 0.0
        %2285 = vmatpush1.msra.mxu0 %v1933
        %2286 = vmatprep.subr.mxu0 0.0
        %2287 = vmatpush2.msra.mxu0 0.0
        %2288 = vmatprep.subr.mxu0 0.0
        %2289 = vmatpush2.msra.mxu0 0.0
        %2290 = vmatprep.subr.mxu0 0.0
        %2291 = vmatpush2.msra.mxu0 0.0
        %2292 = vmatprep.subr.mxu0 0.0
        %2293 = vmatpush2.msra.mxu0 0.0
        %2294 = vmatprep.subr.mxu0 0.0
        %2295 = vmatpush2.msra.mxu0 0.0
        %2296 = vmatprep.subr.mxu0 0.0
        %2297 = vmatpush2.msra.mxu0 0.0
        %2298 = vmatprep.subr.mxu0 0.0
        %2299 = vmatpush2.msra.mxu0 0.0
        %2300 = vmatprep.subr.mxu0 0.0
        %2301 = vmatpush2.msra.mxu0 0.0
        %2302 = vmatprep.subr.mxu0 0.0
        %2303 = vmatpush2.msra.mxu0 0.0
        %2304 = vmatprep.subr.mxu0 0.0
        %2305 = vmatpush2.msra.mxu0 0.0
        %2306 = vmatprep.subr.mxu0 0.0
        %2307 = vmatpush2.msra.mxu0 0.0
        %2308 = vmatprep.subr.mxu0 0.0
        %2309 = vmatpush2.msra.mxu0 0.0
        %2310 = vmatprep.subr.mxu0 0.0
        %2311 = vmatpush2.msra.mxu0 0.0
        %2312 = vmatprep.subr.mxu0 0.0
        %2313 = vmatpush2.msra.mxu0 0.0
        %2314 = vmatprep.subr.mxu0 0.0
        %2315 = vmatpush2.msra.mxu0 0.0
        %2316 = vmatprep.subr.mxu0 0.0
        %2317 = vmatpush2.msra.mxu0 0.0
        %2318 = vmatprep.mubr.f32.mxu0 0.0
        %2319 = vmatmul.mubr.f32.gmra.mxu0 %v2243
        %v2320 = vpop.f32.mrf.mxu0
        %v2321 = vadd.f32 0.0, %v2320
        %v2322 = vpop.f32.mrf.mxu0
        %2323 = vmatprep.mubr.f32.mxu0 0.0
        %2324 = vmatmul.mubr.f32.gmra.mxu0 %v2246
        %v2325 = vpop.f32.mrf.mxu0
        %v2326 = vadd.f32 0.0, %v2325
        %v2327 = vpop.f32.mrf.mxu0
        %2328 = vmatprep.mubr.f32.mxu0 0.0
        %2329 = vmatmul.mubr.f32.gmra.mxu0 %v2249
        %v2330 = vpop.f32.mrf.mxu0
        %v2331 = vadd.f32 0.0, %v2330
        %v2332 = vpop.f32.mrf.mxu0
        %2333 = vmatprep.mubr.f32.mxu0 0.0
        %2334 = vmatmul.mubr.f32.gmra.mxu0 %v2252
        %v2335 = vpop.f32.mrf.mxu0
        %v2336 = vadd.f32 0.0, %v2335
        %v2337 = vpop.f32.mrf.mxu0
        %2338 = vdwg.mxu0
        %v2339 = vld [vmem:[%s1049] sm:$0xff]
        %v2340 = vld [vmem:[%s1049 + $0x8] sm:$0xff]
        %v2341 = vld [vmem:[%s1049 + $0x10] sm:$0xff]
        %v2342 = vld [vmem:[%s1049 + $0x18] sm:$0xff]
        %v2343 = vld [vmem:[%s1049 + $0x20] sm:$0xff]
        %v2344 = vld [vmem:[%s1049 + $0x28] sm:$0xff]
        %v2345 = vld [vmem:[%s1049 + $0x30] sm:$0xff]
        %v2346 = vld [vmem:[%s1049 + $0x38] sm:$0xff]
        %v2347 = vpack.c.bf16 %v2326, %v2321
        %v2348 = vpack.c.bf16 %v2336, %v2331
        %v2349 = vld [vmem:[#allocation6] sm:$0xf]
        %v2350 = vld [vmem:[#allocation6 + $0x4] sm:$0xf]
        %v2351 = vld [vmem:[#allocation6 + $0x8] sm:$0xf]
        %v2352 = vld [vmem:[#allocation6 + $0xc] sm:$0xf]
        %v2353 = vld [vmem:[%s8] sm:$0x1]
        %v2355 = vlaneseq
        %v2356 = vshrl.u32 %v2355, 7
        %v2357 = vsub.s32 0, %v2356
        %v2358 = vrot.slane %v2353, %v2357
        %v2364 = vunpack.c.l.b16 %v2349
        %v2365 = vunpack.c.l.b16 %v2350
        %v2366 = vunpack.c.l.b16 %v2351
        %v2367 = vunpack.c.l.b16 %v2352
        %v2368 = vpack.c.b16 %v2365, %v2364
        %v2369 = vpack.c.b16 %v2367, %v2366
        %v2373 = vsel %vm1095, %v2347, 0
        %v2376 = vsel %vm1095, %v2348, 0
        %2378 = vmatprep.subr.bf16.mxu0 0
        %2379 = vmatpush1.bf16.msra.mxu0 0
        %2380 = vmatprep.subr.bf16.mxu0 0
        %2381 = vmatpush1.bf16.msra.mxu0 0
        %2382 = vmatprep.subr.bf16.mxu0 0
        %2383 = vmatpush1.bf16.msra.mxu0 0
        %2384 = vmatprep.subr.bf16.mxu0 0
        %2385 = vmatpush1.bf16.msra.mxu0 0
        %2386 = vmatprep.subr.bf16.mxu0 0
        %2387 = vmatpush1.bf16.msra.mxu0 0
        %2388 = vmatprep.subr.bf16.mxu0 0
        %2389 = vmatpush1.bf16.msra.mxu0 0
        %2390 = vmatprep.subr.bf16.mxu0 0
        %2391 = vmatpush1.bf16.msra.mxu0 %v2369
        %2392 = vmatprep.subr.bf16.mxu0 0
        %2393 = vmatpush1.bf16.msra.mxu0 %v2368
        %2394 = vmatprep.subr.bf16.mxu0 0
        %2395 = vmatpush2.bf16.msra.mxu0 0
        %2396 = vmatprep.subr.bf16.mxu0 0
        %2397 = vmatpush2.bf16.msra.mxu0 0
        %2398 = vmatprep.subr.bf16.mxu0 0
        %2399 = vmatpush2.bf16.msra.mxu0 0
        %2400 = vmatprep.subr.bf16.mxu0 0
        %2401 = vmatpush2.bf16.msra.mxu0 0
        %2402 = vmatprep.subr.bf16.mxu0 0
        %2403 = vmatpush2.bf16.msra.mxu0 0
        %2404 = vmatprep.subr.bf16.mxu0 0
        %2405 = vmatpush2.bf16.msra.mxu0 0
        %2406 = vmatprep.subr.bf16.mxu0 0
        %2407 = vmatpush2.bf16.msra.mxu0 0
        %2408 = vmatprep.subr.bf16.mxu0 0
        %2409 = vmatpush2.bf16.msra.mxu0 0
        %2410 = vmatprep.mubr.bf16.mxu0 0
        %2411 = vmatmul.mubr.bf16.gmra.mxu0 %v2373
        %v2412 = vpop.f32.mrf.mxu0
        %v2413 = vadd.f32 %v2358, %v2412
        %v2414 = vpop.f32.mrf.mxu0
        %v2415 = vpop.f32.mrf.mxu0
        %v2416 = vadd.f32 %v2358, %v2415
        %v2417 = vpop.f32.mrf.mxu0
        %2418 = vmatprep.mubr.bf16.mxu0 0
        %2419 = vmatmul.mubr.bf16.gmra.mxu0 %v2376
        %v2420 = vpop.f32.mrf.mxu0
        %v2421 = vadd.f32 %v2358, %v2420
        %v2422 = vpop.f32.mrf.mxu0
        %v2423 = vpop.f32.mrf.mxu0
        %v2424 = vadd.f32 %v2358, %v2423
        %v2425 = vpop.f32.mrf.mxu0
        %2426 = vdwg.mxu0
        %v2427 = vpack.c.bf16 %v2340, %v2339
        %v2428 = vpack.c.bf16 %v2342, %v2341
        %v2429 = vpack.c.bf16 %v2344, %v2343
        %v2430 = vpack.c.bf16 %v2346, %v2345
        %v2431 = vld [vmem:[#allocation7] sm:$0xf]
        %v2432 = vld [vmem:[#allocation7 + $0x4] sm:$0xf]
        %v2433 = vld [vmem:[#allocation7 + $0x8] sm:$0xf]
        %v2434 = vld [vmem:[#allocation7 + $0xc] sm:$0xf]
        %v2435 = vld [vmem:[%s10] sm:$0x1]
        %v2437 = vlaneseq
        %v2438 = vshrl.u32 %v2437, 7
        %v2439 = vsub.s32 0, %v2438
        %v2440 = vrot.slane %v2435, %v2439
        %v2446 = vunpack.c.l.b16 %v2431
        %v2447 = vunpack.c.l.b16 %v2432
        %v2448 = vunpack.c.l.b16 %v2433
        %v2449 = vunpack.c.l.b16 %v2434
        %v2450 = vpack.c.b16 %v2447, %v2446
        %v2451 = vpack.c.b16 %v2449, %v2448
        %v2455 = vsel %vm1095, %v2427, 0
        %v2458 = vsel %vm1095, %v2428, 0
        %v2461 = vsel %vm1095, %v2429, 0
        %v2464 = vsel %vm1095, %v2430, 0
        %2466 = vmatprep.subr.bf16.mxu0 0
        %2467 = vmatpush1.bf16.msra.mxu0 0
        %2468 = vmatprep.subr.bf16.mxu0 0
        %2469 = vmatpush1.bf16.msra.mxu0 0
        %2470 = vmatprep.subr.bf16.mxu0 0
        %2471 = vmatpush1.bf16.msra.mxu0 0
        %2472 = vmatprep.subr.bf16.mxu0 0
        %2473 = vmatpush1.bf16.msra.mxu0 0
        %2474 = vmatprep.subr.bf16.mxu0 0
        %2475 = vmatpush1.bf16.msra.mxu0 0
        %2476 = vmatprep.subr.bf16.mxu0 0
        %2477 = vmatpush1.bf16.msra.mxu0 0
        %2478 = vmatprep.subr.bf16.mxu0 0
        %2479 = vmatpush1.bf16.msra.mxu0 %v2451
        %2480 = vmatprep.subr.bf16.mxu0 0
        %2481 = vmatpush1.bf16.msra.mxu0 %v2450
        %2482 = vmatprep.subr.bf16.mxu0 0
        %2483 = vmatpush2.bf16.msra.mxu0 0
        %2484 = vmatprep.subr.bf16.mxu0 0
        %2485 = vmatpush2.bf16.msra.mxu0 0
        %2486 = vmatprep.subr.bf16.mxu0 0
        %2487 = vmatpush2.bf16.msra.mxu0 0
        %2488 = vmatprep.subr.bf16.mxu0 0
        %2489 = vmatpush2.bf16.msra.mxu0 0
        %2490 = vmatprep.subr.bf16.mxu0 0
        %2491 = vmatpush2.bf16.msra.mxu0 0
        %2492 = vmatprep.subr.bf16.mxu0 0
        %2493 = vmatpush2.bf16.msra.mxu0 0
        %2494 = vmatprep.subr.bf16.mxu0 0
        %2495 = vmatpush2.bf16.msra.mxu0 0
        %2496 = vmatprep.subr.bf16.mxu0 0
        %2497 = vmatpush2.bf16.msra.mxu0 0
        %2498 = vmatprep.mubr.bf16.mxu0 0
        %2499 = vmatmul.mubr.bf16.gmra.mxu0 %v2455
        %v2500 = vpop.f32.mrf.mxu0
        %v2501 = vadd.f32 %v2440, %v2500
        %v2502 = vpop.f32.mrf.mxu0
        %v2503 = vpop.f32.mrf.mxu0
        %v2504 = vadd.f32 %v2440, %v2503
        %v2505 = vpop.f32.mrf.mxu0
        %2506 = vmatprep.mubr.bf16.mxu0 0
        %2507 = vmatmul.mubr.bf16.gmra.mxu0 %v2458
        %v2508 = vpop.f32.mrf.mxu0
        %v2509 = vadd.f32 %v2440, %v2508
        %v2510 = vpop.f32.mrf.mxu0
        %v2511 = vpop.f32.mrf.mxu0
        %v2512 = vadd.f32 %v2440, %v2511
        %v2513 = vpop.f32.mrf.mxu0
        %2514 = vmatprep.mubr.bf16.mxu0 0
        %2515 = vmatmul.mubr.bf16.gmra.mxu0 %v2461
        %v2516 = vpop.f32.mrf.mxu0
        %v2517 = vadd.f32 %v2440, %v2516
        %v2518 = vpop.f32.mrf.mxu0
        %v2519 = vpop.f32.mrf.mxu0
        %v2520 = vadd.f32 %v2440, %v2519
        %v2521 = vpop.f32.mrf.mxu0
        %2522 = vmatprep.mubr.bf16.mxu0 0
        %2523 = vmatmul.mubr.bf16.gmra.mxu0 %v2464
        %v2524 = vpop.f32.mrf.mxu0
        %v2525 = vadd.f32 %v2440, %v2524
        %v2526 = vpop.f32.mrf.mxu0
        %v2527 = vpop.f32.mrf.mxu0
        %v2528 = vadd.f32 %v2440, %v2527
        %v2529 = vpop.f32.mrf.mxu0
        %2530 = vdwg.mxu0
        %v2531 = vld [vmem:[#allocation15] sm:$0xff]
        %v2532 = vld [vmem:[#allocation15 + $0x8] sm:$0xff]
        %v2533 = vld [vmem:[#allocation15 + $0x10] sm:$0xff]
        %v2534 = vld [vmem:[#allocation15 + $0x18] sm:$0xff]
        %v2535 = vld [vmem:[#allocation15 + $0x20] sm:$0xff]
        %v2536 = vld [vmem:[#allocation15 + $0x28] sm:$0xff]
        %v2537 = vld [vmem:[#allocation15 + $0x30] sm:$0xff]
        %v2538 = vld [vmem:[#allocation15 + $0x38] sm:$0xff]
        %v2539 = vld [vmem:[#allocation15 + $0x40] sm:$0xff]
        %v2540 = vld [vmem:[#allocation15 + $0x48] sm:$0xff]
        %v2541 = vld [vmem:[#allocation15 + $0x50] sm:$0xff]
        %v2542 = vld [vmem:[#allocation15 + $0x58] sm:$0xff]
        %v2543 = vld [vmem:[#allocation15 + $0x60] sm:$0xff]
        %v2544 = vld [vmem:[#allocation15 + $0x68] sm:$0xff]
        %v2545 = vld [vmem:[#allocation15 + $0x70] sm:$0xff]
        %v2546 = vld [vmem:[#allocation15 + $0x78] sm:$0xff]
        %v2547 = vld [vmem:[#allocation15 + $0x80] sm:$0xff]
        %v2548 = vld [vmem:[#allocation15 + $0x88] sm:$0xff]
        %v2549 = vld [vmem:[#allocation15 + $0x90] sm:$0xff]
        %v2550 = vld [vmem:[#allocation15 + $0x98] sm:$0xff]
        %v2551 = vld [vmem:[#allocation15 + $0xa0] sm:$0xff]
        %v2552 = vld [vmem:[#allocation15 + $0xa8] sm:$0xff]
        %v2553 = vld [vmem:[#allocation15 + $0xb0] sm:$0xff]
        %v2554 = vld [vmem:[#allocation15 + $0xb8] sm:$0xff]
        %v2555 = vld [vmem:[#allocation15 + $0xc0] sm:$0xff]
        %v2556 = vld [vmem:[#allocation15 + $0xc8] sm:$0xff]
        %v2557 = vld [vmem:[#allocation15 + $0xd0] sm:$0xff]
        %v2558 = vld [vmem:[#allocation15 + $0xd8] sm:$0xff]
        %v2559 = vld [vmem:[#allocation15 + $0xe0] sm:$0xff]
        %v2560 = vld [vmem:[#allocation15 + $0xe8] sm:$0xff]
        %v2561 = vld [vmem:[#allocation15 + $0xf0] sm:$0xff]
        %v2562 = vld [vmem:[#allocation15 + $0xf8] sm:$0xff]
        %v2563 = vmul.f32 %v2501, %v2531
        %v2564 = vmul.f32 %v2504, %v2532
        %v2565 = vmul.f32 %v2509, %v2533
        %v2566 = vmul.f32 %v2512, %v2534
        %v2567 = vmul.f32 %v2517, %v2535
        %v2568 = vmul.f32 %v2520, %v2536
        %v2569 = vmul.f32 %v2525, %v2537
        %v2570 = vmul.f32 %v2528, %v2538
        %v2571 = vmul.f32 %v2501, %v2539
        %v2572 = vmul.f32 %v2504, %v2540
        %v2573 = vmul.f32 %v2509, %v2541
        %v2574 = vmul.f32 %v2512, %v2542
        %v2575 = vmul.f32 %v2517, %v2543
        %v2576 = vmul.f32 %v2520, %v2544
        %v2577 = vmul.f32 %v2525, %v2545
        %v2578 = vmul.f32 %v2528, %v2546
        %v2579 = vmul.f32 %v2501, %v2547
        %v2580 = vmul.f32 %v2504, %v2548
        %v2581 = vmul.f32 %v2509, %v2549
        %v2582 = vmul.f32 %v2512, %v2550
        %v2583 = vmul.f32 %v2517, %v2551
        %v2584 = vmul.f32 %v2520, %v2552
        %v2585 = vmul.f32 %v2525, %v2553
        %v2586 = vmul.f32 %v2528, %v2554
        %v2587 = vmul.f32 %v2501, %v2555
        %v2588 = vmul.f32 %v2504, %v2556
        %v2589 = vmul.f32 %v2509, %v2557
        %v2590 = vmul.f32 %v2512, %v2558
        %v2591 = vmul.f32 %v2517, %v2559
        %v2592 = vmul.f32 %v2520, %v2560
        %v2593 = vmul.f32 %v2525, %v2561
        %v2594 = vmul.f32 %v2528, %v2562
        %v2595 = vpack.c.bf16 %v2564, %v2563
        %v2596 = vpack.c.bf16 %v2566, %v2565
        %v2597 = vpack.c.bf16 %v2568, %v2567
        %v2598 = vpack.c.bf16 %v2570, %v2569
        %v2599 = vpack.c.bf16 %v2572, %v2571
        %v2600 = vpack.c.bf16 %v2574, %v2573
        %v2601 = vpack.c.bf16 %v2576, %v2575
        %v2602 = vpack.c.bf16 %v2578, %v2577
        %v2603 = vpack.c.bf16 %v2580, %v2579
        %v2604 = vpack.c.bf16 %v2582, %v2581
        %v2605 = vpack.c.bf16 %v2584, %v2583
        %v2606 = vpack.c.bf16 %v2586, %v2585
        %v2607 = vpack.c.bf16 %v2588, %v2587
        %v2608 = vpack.c.bf16 %v2590, %v2589
        %v2609 = vpack.c.bf16 %v2592, %v2591
        %v2610 = vpack.c.bf16 %v2594, %v2593
        %2643 = vrot.lane.b32.xlu0 %v2531, 32
        %v2644 = vpop.permute.xlu0 %2643
        %2645 = vrot.lane.b32.xlu0 %v2532, 32
        %v2646 = vpop.permute.xlu0 %2645
        %2647 = vrot.lane.b32.xlu0 %v2533, 32
        %v2648 = vpop.permute.xlu0 %2647
        %2649 = vrot.lane.b32.xlu0 %v2534, 32
        %v2650 = vpop.permute.xlu0 %2649
        %2651 = vrot.lane.b32.xlu0 %v2535, 32
        %v2652 = vpop.permute.xlu0 %2651
        %2653 = vrot.lane.b32.xlu0 %v2536, 32
        %v2654 = vpop.permute.xlu0 %2653
        %2655 = vrot.lane.b32.xlu0 %v2537, 32
        %v2656 = vpop.permute.xlu0 %2655
        %2657 = vrot.lane.b32.xlu0 %v2538, 32
        %v2658 = vpop.permute.xlu0 %2657
        %2659 = vrot.lane.b32.xlu0 %v2539, 32
        %v2660 = vpop.permute.xlu0 %2659
        %2661 = vrot.lane.b32.xlu0 %v2540, 32
        %v2662 = vpop.permute.xlu0 %2661
        %2663 = vrot.lane.b32.xlu0 %v2541, 32
        %v2664 = vpop.permute.xlu0 %2663
        %2665 = vrot.lane.b32.xlu0 %v2542, 32
        %v2666 = vpop.permute.xlu0 %2665
        %2667 = vrot.lane.b32.xlu0 %v2543, 32
        %v2668 = vpop.permute.xlu0 %2667
        %2669 = vrot.lane.b32.xlu0 %v2544, 32
        %v2670 = vpop.permute.xlu0 %2669
        %2671 = vrot.lane.b32.xlu0 %v2545, 32
        %v2672 = vpop.permute.xlu0 %2671
        %2673 = vrot.lane.b32.xlu0 %v2546, 32
        %v2674 = vpop.permute.xlu0 %2673
        %2675 = vrot.lane.b32.xlu0 %v2547, 32
        %v2676 = vpop.permute.xlu0 %2675
        %2677 = vrot.lane.b32.xlu0 %v2548, 32
        %v2678 = vpop.permute.xlu0 %2677
        %2679 = vrot.lane.b32.xlu0 %v2549, 32
        %v2680 = vpop.permute.xlu0 %2679
        %2681 = vrot.lane.b32.xlu0 %v2550, 32
        %v2682 = vpop.permute.xlu0 %2681
        %2683 = vrot.lane.b32.xlu0 %v2551, 32
        %v2684 = vpop.permute.xlu0 %2683
        %2685 = vrot.lane.b32.xlu0 %v2552, 32
        %v2686 = vpop.permute.xlu0 %2685
        %2687 = vrot.lane.b32.xlu0 %v2553, 32
        %v2688 = vpop.permute.xlu0 %2687
        %2689 = vrot.lane.b32.xlu0 %v2554, 32
        %v2690 = vpop.permute.xlu0 %2689
        %2691 = vrot.lane.b32.xlu0 %v2555, 32
        %v2692 = vpop.permute.xlu0 %2691
        %2693 = vrot.lane.b32.xlu0 %v2556, 32
        %v2694 = vpop.permute.xlu0 %2693
        %2695 = vrot.lane.b32.xlu0 %v2557, 32
        %v2696 = vpop.permute.xlu0 %2695
        %2697 = vrot.lane.b32.xlu0 %v2558, 32
        %v2698 = vpop.permute.xlu0 %2697
        %2699 = vrot.lane.b32.xlu0 %v2559, 32
        %v2700 = vpop.permute.xlu0 %2699
        %2701 = vrot.lane.b32.xlu0 %v2560, 32
        %v2702 = vpop.permute.xlu0 %2701
        %2703 = vrot.lane.b32.xlu0 %v2561, 32
        %v2704 = vpop.permute.xlu0 %2703
        %2705 = vrot.lane.b32.xlu0 %v2562, 32
        %v2706 = vpop.permute.xlu0 %2705
        %v2739 = vmul.f32 %v2501, %v2644
        %v2740 = vmul.f32 %v2504, %v2646
        %v2741 = vmul.f32 %v2509, %v2648
        %v2742 = vmul.f32 %v2512, %v2650
        %v2743 = vmul.f32 %v2517, %v2652
        %v2744 = vmul.f32 %v2520, %v2654
        %v2745 = vmul.f32 %v2525, %v2656
        %v2746 = vmul.f32 %v2528, %v2658
        %v2747 = vmul.f32 %v2501, %v2660
        %v2748 = vmul.f32 %v2504, %v2662
        %v2749 = vmul.f32 %v2509, %v2664
        %v2750 = vmul.f32 %v2512, %v2666
        %v2751 = vmul.f32 %v2517, %v2668
        %v2752 = vmul.f32 %v2520, %v2670
        %v2753 = vmul.f32 %v2525, %v2672
        %v2754 = vmul.f32 %v2528, %v2674
        %v2755 = vmul.f32 %v2501, %v2676
        %v2756 = vmul.f32 %v2504, %v2678
        %v2757 = vmul.f32 %v2509, %v2680
        %v2758 = vmul.f32 %v2512, %v2682
        %v2759 = vmul.f32 %v2517, %v2684
        %v2760 = vmul.f32 %v2520, %v2686
        %v2761 = vmul.f32 %v2525, %v2688
        %v2762 = vmul.f32 %v2528, %v2690
        %v2763 = vmul.f32 %v2501, %v2692
        %v2764 = vmul.f32 %v2504, %v2694
        %v2765 = vmul.f32 %v2509, %v2696
        %v2766 = vmul.f32 %v2512, %v2698
        %v2767 = vmul.f32 %v2517, %v2700
        %v2768 = vmul.f32 %v2520, %v2702
        %v2769 = vmul.f32 %v2525, %v2704
        %v2770 = vmul.f32 %v2528, %v2706
        %v2771 = vpack.c.bf16 %v2740, %v2739
        %v2772 = vpack.c.bf16 %v2742, %v2741
        %v2773 = vpack.c.bf16 %v2744, %v2743
        %v2774 = vpack.c.bf16 %v2746, %v2745
        %v2775 = vpack.c.bf16 %v2748, %v2747
        %v2776 = vpack.c.bf16 %v2750, %v2749
        %v2777 = vpack.c.bf16 %v2752, %v2751
        %v2778 = vpack.c.bf16 %v2754, %v2753
        %v2779 = vpack.c.bf16 %v2756, %v2755
        %v2780 = vpack.c.bf16 %v2758, %v2757
        %v2781 = vpack.c.bf16 %v2760, %v2759
        %v2782 = vpack.c.bf16 %v2762, %v2761
        %v2783 = vpack.c.bf16 %v2764, %v2763
        %v2784 = vpack.c.bf16 %v2766, %v2765
        %v2785 = vpack.c.bf16 %v2768, %v2767
        %v2786 = vpack.c.bf16 %v2770, %v2769
        %v2787 = vmul.f32 %v2413, 0.35355338
        %v2788 = vmul.f32 %v2416, 0.35355338
        %v2789 = vmul.f32 %v2421, 0.35355338
        %v2790 = vmul.f32 %v2424, 0.35355338
        %v2791 = vpack.c.bf16 %v2788, %v2787
        %v2792 = vpack.c.bf16 %v2790, %v2789
        %v2793 = vld [vmem:[#allocation18] sm:$0xff]
        %v2794 = vld [vmem:[#allocation18 + $0x8] sm:$0xff]
        %v2795 = vld [vmem:[#allocation18 + $0x10] sm:$0xff]
        %v2796 = vld [vmem:[#allocation18 + $0x18] sm:$0xff]
        %v2797 = vld [vmem:[#allocation18 + $0x20] sm:$0xff]
        %v2798 = vld [vmem:[#allocation18 + $0x28] sm:$0xff]
        %v2799 = vld [vmem:[#allocation18 + $0x30] sm:$0xff]
        %v2800 = vld [vmem:[#allocation18 + $0x38] sm:$0xff]
        %v2801 = vld [vmem:[#allocation21] sm:$0xff]
        %v2802 = vld [vmem:[#allocation21 + $0x8] sm:$0xff]
        %v2803 = vld [vmem:[#allocation21 + $0x10] sm:$0xff]
        %v2804 = vld [vmem:[#allocation21 + $0x18] sm:$0xff]
        %v2805 = vld [vmem:[#allocation21 + $0x20] sm:$0xff]
        %v2806 = vld [vmem:[#allocation21 + $0x28] sm:$0xff]
        %v2807 = vld [vmem:[#allocation21 + $0x30] sm:$0xff]
        %v2808 = vld [vmem:[#allocation21 + $0x38] sm:$0xff]
        %v2809 = vld [vmem:[#allocation21 + $0x40] sm:$0xff]
        %v2810 = vld [vmem:[#allocation21 + $0x48] sm:$0xff]
        %v2811 = vld [vmem:[#allocation21 + $0x50] sm:$0xff]
        %v2812 = vld [vmem:[#allocation21 + $0x58] sm:$0xff]
        %v2813 = vld [vmem:[#allocation21 + $0x60] sm:$0xff]
        %v2814 = vld [vmem:[#allocation21 + $0x68] sm:$0xff]
        %v2815 = vld [vmem:[#allocation21 + $0x70] sm:$0xff]
        %v2816 = vld [vmem:[#allocation21 + $0x78] sm:$0xff]
        %v2817 = vld [vmem:[#allocation21 + $0x80] sm:$0xff]
        %v2818 = vld [vmem:[#allocation21 + $0x88] sm:$0xff]
        %v2819 = vld [vmem:[#allocation21 + $0x90] sm:$0xff]
        %v2820 = vld [vmem:[#allocation21 + $0x98] sm:$0xff]
        %v2821 = vld [vmem:[#allocation21 + $0xa0] sm:$0xff]
        %v2822 = vld [vmem:[#allocation21 + $0xa8] sm:$0xff]
        %v2823 = vld [vmem:[#allocation21 + $0xb0] sm:$0xff]
        %v2824 = vld [vmem:[#allocation21 + $0xb8] sm:$0xff]
        %v2825 = vld [vmem:[#allocation21 + $0xc0] sm:$0xff]
        %v2826 = vld [vmem:[#allocation21 + $0xc8] sm:$0xff]
        %v2827 = vld [vmem:[#allocation21 + $0xd0] sm:$0xff]
        %v2828 = vld [vmem:[#allocation21 + $0xd8] sm:$0xff]
        %v2829 = vld [vmem:[#allocation21 + $0xe0] sm:$0xff]
        %v2830 = vld [vmem:[#allocation21 + $0xe8] sm:$0xff]
        %v2831 = vld [vmem:[#allocation21 + $0xf0] sm:$0xff]
        %v2832 = vld [vmem:[#allocation21 + $0xf8] sm:$0xff]
        %v2833 = vld [vmem:[#allocation21 + $0x100] sm:$0xff]
        %v2834 = vld [vmem:[#allocation21 + $0x108] sm:$0xff]
        %v2835 = vld [vmem:[#allocation21 + $0x110] sm:$0xff]
        %v2836 = vld [vmem:[#allocation21 + $0x118] sm:$0xff]
        %v2837 = vld [vmem:[#allocation21 + $0x120] sm:$0xff]
        %v2838 = vld [vmem:[#allocation21 + $0x128] sm:$0xff]
        %v2839 = vld [vmem:[#allocation21 + $0x130] sm:$0xff]
        %v2840 = vld [vmem:[#allocation21 + $0x138] sm:$0xff]
        %v2841 = vld [vmem:[#allocation21 + $0x140] sm:$0xff]
        %v2842 = vld [vmem:[#allocation21 + $0x148] sm:$0xff]
        %v2843 = vld [vmem:[#allocation21 + $0x150] sm:$0xff]
        %v2844 = vld [vmem:[#allocation21 + $0x158] sm:$0xff]
        %v2845 = vld [vmem:[#allocation21 + $0x160] sm:$0xff]
        %v2846 = vld [vmem:[#allocation21 + $0x168] sm:$0xff]
        %v2847 = vld [vmem:[#allocation21 + $0x170] sm:$0xff]
        %v2848 = vld [vmem:[#allocation21 + $0x178] sm:$0xff]
        %v2849 = vld [vmem:[#allocation21 + $0x180] sm:$0xff]
        %v2850 = vld [vmem:[#allocation21 + $0x188] sm:$0xff]
        %v2851 = vld [vmem:[#allocation21 + $0x190] sm:$0xff]
        %v2852 = vld [vmem:[#allocation21 + $0x198] sm:$0xff]
        %v2853 = vld [vmem:[#allocation21 + $0x1a0] sm:$0xff]
        %v2854 = vld [vmem:[#allocation21 + $0x1a8] sm:$0xff]
        %v2855 = vld [vmem:[#allocation21 + $0x1b0] sm:$0xff]
        %v2856 = vld [vmem:[#allocation21 + $0x1b8] sm:$0xff]
        %v2857 = vld [vmem:[#allocation21 + $0x1c0] sm:$0xff]
        %v2858 = vld [vmem:[#allocation21 + $0x1c8] sm:$0xff]
        %v2859 = vld [vmem:[#allocation21 + $0x1d0] sm:$0xff]
        %v2860 = vld [vmem:[#allocation21 + $0x1d8] sm:$0xff]
        %v2861 = vld [vmem:[#allocation21 + $0x1e0] sm:$0xff]
        %v2862 = vld [vmem:[#allocation21 + $0x1e8] sm:$0xff]
        %v2863 = vld [vmem:[#allocation21 + $0x1f0] sm:$0xff]
        %v2864 = vld [vmem:[#allocation21 + $0x1f8] sm:$0xff]
        %v2866 = vsel %vm1095, %v2791, 0
        %v2869 = vsel %vm1095, %v2792, 0
        %v2872 = vsel %vm1095, %v2595, 0
        %v2875 = vsel %vm1095, %v2596, 0
        %v2878 = vsel %vm1095, %v2597, 0
        %v2881 = vsel %vm1095, %v2598, 0
        %v2884 = vsel %vm1095, %v2599, 0
        %v2887 = vsel %vm1095, %v2600, 0
        %v2890 = vsel %vm1095, %v2601, 0
        %v2893 = vsel %vm1095, %v2602, 0
        %v2896 = vsel %vm1095, %v2603, 0
        %v2899 = vsel %vm1095, %v2604, 0
        %v2902 = vsel %vm1095, %v2605, 0
        %v2905 = vsel %vm1095, %v2606, 0
        %v2908 = vsel %vm1095, %v2607, 0
        %v2911 = vsel %vm1095, %v2608, 0
        %v2914 = vsel %vm1095, %v2609, 0
        %v2917 = vsel %vm1095, %v2610, 0
        %2919 = vmatprep.subr.bf16.mxu0 0
        %2920 = vmatpush1.bf16.xpose.msra.mxu0 %v2893
        %2921 = vmatprep.subr.bf16.mxu0 0
        %2922 = vmatpush1.bf16.xpose.msra.mxu0 %v2890
        %2923 = vmatprep.subr.bf16.mxu0 0
        %2924 = vmatpush1.bf16.xpose.msra.mxu0 %v2887
        %2925 = vmatprep.subr.bf16.mxu0 0
        %2926 = vmatpush1.bf16.xpose.msra.mxu0 %v2884
        %2927 = vmatprep.subr.bf16.mxu0 0
        %2928 = vmatpush1.bf16.xpose.msra.mxu0 %v2881
        %2929 = vmatprep.subr.bf16.mxu0 0
        %2930 = vmatpush1.bf16.xpose.msra.mxu0 %v2878
        %2931 = vmatprep.subr.bf16.mxu0 0
        %2932 = vmatpush1.bf16.xpose.msra.mxu0 %v2875
        %2933 = vmatprep.subr.bf16.mxu0 0
        %2934 = vmatpush1.bf16.xpose.msra.mxu0 %v2872
        %2935 = vmatprep.subr.bf16.mxu0 0
        %2936 = vmatpush2.bf16.xpose.msra.mxu0 %v2917
        %2937 = vmatprep.subr.bf16.mxu0 0
        %2938 = vmatpush2.bf16.xpose.msra.mxu0 %v2914
        %2939 = vmatprep.subr.bf16.mxu0 0
        %2940 = vmatpush2.bf16.xpose.msra.mxu0 %v2911
        %2941 = vmatprep.subr.bf16.mxu0 0
        %2942 = vmatpush2.bf16.xpose.msra.mxu0 %v2908
        %2943 = vmatprep.subr.bf16.mxu0 0
        %2944 = vmatpush2.bf16.xpose.msra.mxu0 %v2905
        %2945 = vmatprep.subr.bf16.mxu0 0
        %2946 = vmatpush2.bf16.xpose.msra.mxu0 %v2902
        %2947 = vmatprep.subr.bf16.mxu0 0
        %2948 = vmatpush2.bf16.xpose.msra.mxu0 %v2899
        %2949 = vmatprep.subr.bf16.mxu0 0
        %2950 = vmatpush2.bf16.xpose.msra.mxu0 %v2896
        %2951 = vmatprep.mubr.bf16.mxu0 0
        %2952 = vmatmul.mubr.bf16.gmra.mxu0 %v2866
        %v2953 = vpop.f32.mrf.mxu0
        %v2954 = vadd.f32 %v2793, %v2953
        %v2955 = vpop.f32.mrf.mxu0
        %v2956 = vadd.f32 %v2794, %v2955
        %v2957 = vpop.f32.mrf.mxu0
        %v2958 = vadd.f32 %v2795, %v2957
        %v2959 = vpop.f32.mrf.mxu0
        %v2960 = vadd.f32 %v2796, %v2959
        %2961 = vmatprep.mubr.bf16.mxu0 0
        %2962 = vmatmul.mubr.bf16.gmra.mxu0 %v2869
        %v2963 = vpop.f32.mrf.mxu0
        %v2964 = vadd.f32 %v2797, %v2963
        %v2965 = vpop.f32.mrf.mxu0
        %v2966 = vadd.f32 %v2798, %v2965
        %v2967 = vpop.f32.mrf.mxu0
        %v2968 = vadd.f32 %v2799, %v2967
        %v2969 = vpop.f32.mrf.mxu0
        %v2970 = vadd.f32 %v2800, %v2969
        %2971 = vdwg.mxu0
        %v2972 = vmax.f32 %v2954, %v2956
        %2973 = vmax.xlane.f32.xlu0 %v2972
        %v2974 = vpop.xlane.xlu0 %2973
        %v2975 = vmax.f32 %v2958, %v2960
        %2976 = vmax.xlane.f32.xlu0 %v2975
        %v2977 = vpop.xlane.xlu0 %2976
        %v2978 = vmax.f32 %v2964, %v2966
        %2979 = vmax.xlane.f32.xlu0 %v2978
        %v2980 = vpop.xlane.xlu0 %2979
        %v2981 = vmax.f32 %v2968, %v2970
        %2982 = vmax.xlane.f32.xlu0 %v2981
        %v2983 = vpop.xlane.xlu0 %2982
        %v2984 = vsub.f32 %v2954, %v2974
        %v2985 = vsub.f32 %v2956, %v2974
        %v2986 = vsub.f32 %v2958, %v2977
        %v2987 = vsub.f32 %v2960, %v2977
        %v2988 = vsub.f32 %v2964, %v2980
        %v2989 = vsub.f32 %v2966, %v2980
        %v2990 = vsub.f32 %v2968, %v2983
        %v2991 = vsub.f32 %v2970, %v2983
        %v2992 = vmul.f32 %v2984, 1.442695
        %v2993 = vpow.pop %v2992
        %v2994 = vmul.f32 %v2985, 1.442695
        %v2995 = vpow.pop %v2994
        %v2996 = vmul.f32 %v2986, 1.442695
        %v2997 = vpow.pop %v2996
        %v2998 = vmul.f32 %v2987, 1.442695
        %v2999 = vpow.pop %v2998
        %v3000 = vmul.f32 %v2988, 1.442695
        %v3001 = vpow.pop %v3000
        %v3002 = vmul.f32 %v2989, 1.442695
        %v3003 = vpow.pop %v3002
        %v3004 = vmul.f32 %v2990, 1.442695
        %v3005 = vpow.pop %v3004
        %v3006 = vmul.f32 %v2991, 1.442695
        %v3007 = vpow.pop %v3006
        %3008 = vmatprep.subr.mxu0 %v2832
        %3009 = vmatpush1.msra.mxu0 %v2831
        %3010 = vmatprep.subr.mxu0 %v2830
        %3011 = vmatpush1.msra.mxu0 %v2829
        %3012 = vmatprep.subr.mxu0 %v2828
        %3013 = vmatpush1.msra.mxu0 %v2827
        %3014 = vmatprep.subr.mxu0 %v2826
        %3015 = vmatpush1.msra.mxu0 %v2825
        %3016 = vmatprep.subr.mxu0 %v2824
        %3017 = vmatpush1.msra.mxu0 %v2823
        %3018 = vmatprep.subr.mxu0 %v2822
        %3019 = vmatpush1.msra.mxu0 %v2821
        %3020 = vmatprep.subr.mxu0 %v2820
        %3021 = vmatpush1.msra.mxu0 %v2819
        %3022 = vmatprep.subr.mxu0 %v2818
        %3023 = vmatpush1.msra.mxu0 %v2817
        %3024 = vmatprep.subr.mxu0 %v2816
        %3025 = vmatpush1.msra.mxu0 %v2815
        %3026 = vmatprep.subr.mxu0 %v2814
        %3027 = vmatpush1.msra.mxu0 %v2813
        %3028 = vmatprep.subr.mxu0 %v2812
        %3029 = vmatpush1.msra.mxu0 %v2811
        %3030 = vmatprep.subr.mxu0 %v2810
        %3031 = vmatpush1.msra.mxu0 %v2809
        %3032 = vmatprep.subr.mxu0 %v2808
        %3033 = vmatpush1.msra.mxu0 %v2807
        %3034 = vmatprep.subr.mxu0 %v2806
        %3035 = vmatpush1.msra.mxu0 %v2805
        %3036 = vmatprep.subr.mxu0 %v2804
        %3037 = vmatpush1.msra.mxu0 %v2803
        %3038 = vmatprep.subr.mxu0 %v2802
        %3039 = vmatpush1.msra.mxu0 %v2801
        %3040 = vmatprep.subr.mxu0 %v2864
        %3041 = vmatpush2.msra.mxu0 %v2863
        %3042 = vmatprep.subr.mxu0 %v2862
        %3043 = vmatpush2.msra.mxu0 %v2861
        %3044 = vmatprep.subr.mxu0 %v2860
        %3045 = vmatpush2.msra.mxu0 %v2859
        %3046 = vmatprep.subr.mxu0 %v2858
        %3047 = vmatpush2.msra.mxu0 %v2857
        %3048 = vmatprep.subr.mxu0 %v2856
        %3049 = vmatpush2.msra.mxu0 %v2855
        %3050 = vmatprep.subr.mxu0 %v2854
        %3051 = vmatpush2.msra.mxu0 %v2853
        %3052 = vmatprep.subr.mxu0 %v2852
        %3053 = vmatpush2.msra.mxu0 %v2851
        %3054 = vmatprep.subr.mxu0 %v2850
        %3055 = vmatpush2.msra.mxu0 %v2849
        %3056 = vmatprep.subr.mxu0 %v2848
        %3057 = vmatpush2.msra.mxu0 %v2847
        %3058 = vmatprep.subr.mxu0 %v2846
        %3059 = vmatpush2.msra.mxu0 %v2845
        %3060 = vmatprep.subr.mxu0 %v2844
        %3061 = vmatpush2.msra.mxu0 %v2843
        %3062 = vmatprep.subr.mxu0 %v2842
        %3063 = vmatpush2.msra.mxu0 %v2841
        %3064 = vmatprep.subr.mxu0 %v2840
        %3065 = vmatpush2.msra.mxu0 %v2839
        %3066 = vmatprep.subr.mxu0 %v2838
        %3067 = vmatpush2.msra.mxu0 %v2837
        %3068 = vmatprep.subr.mxu0 %v2836
        %3069 = vmatpush2.msra.mxu0 %v2835
        %3070 = vmatprep.subr.mxu0 %v2834
        %3071 = vmatpush2.msra.mxu0 %v2833
        %3072 = vmatprep.mubr.f32.mxu0 %v2995
        %3073 = vmatmul.mubr.f32.gmra.mxu0 %v2993
        %v3074 = vpop.f32.mrf.mxu0
        %v3075 = vadd.f32 0.0, %v3074
        %v3076 = vpop.f32.mrf.mxu0
        %v3077 = vadd.f32 0.0, %v3076
        %3078 = vmatprep.mubr.f32.mxu0 %v2999
        %3079 = vmatmul.mubr.f32.gmra.mxu0 %v2997
        %v3080 = vpop.f32.mrf.mxu0
        %v3081 = vadd.f32 0.0, %v3080
        %v3082 = vpop.f32.mrf.mxu0
        %v3083 = vadd.f32 0.0, %v3082
        %3084 = vmatprep.mubr.f32.mxu0 %v3003
        %3085 = vmatmul.mubr.f32.gmra.mxu0 %v3001
        %v3086 = vpop.f32.mrf.mxu0
        %v3087 = vadd.f32 0.0, %v3086
        %v3088 = vpop.f32.mrf.mxu0
        %v3089 = vadd.f32 0.0, %v3088
        %3090 = vmatprep.mubr.f32.mxu0 %v3007
        %3091 = vmatmul.mubr.f32.gmra.mxu0 %v3005
        %v3092 = vpop.f32.mrf.mxu0
        %v3093 = vadd.f32 0.0, %v3092
        %v3094 = vpop.f32.mrf.mxu0
        %v3095 = vadd.f32 0.0, %v3094
        %3096 = vdwg.mxu0
        %v3097 = vrcp.pop %v3075
        %v3098 = vrcp.pop %v3077
        %v3099 = vrcp.pop %v3081
        %v3100 = vrcp.pop %v3083
        %v3101 = vrcp.pop %v3087
        %v3102 = vrcp.pop %v3089
        %v3103 = vrcp.pop %v3093
        %v3104 = vrcp.pop %v3095
        %v3105 = vmul.f32 %v2993, %v3097
        %v3106 = vmul.f32 %v2995, %v3098
        %v3107 = vmul.f32 %v2997, %v3099
        %v3108 = vmul.f32 %v2999, %v3100
        %v3109 = vmul.f32 %v3001, %v3101
        %v3110 = vmul.f32 %v3003, %v3102
        %v3111 = vmul.f32 %v3005, %v3103
        %v3112 = vmul.f32 %v3007, %v3104
        %v3113 = vld [vmem:[%s24] sm:$0xff]
        %v3114 = vld [vmem:[%s24 + $0x8] sm:$0xff]
        %v3115 = vld [vmem:[%s24 + $0x10] sm:$0xff]
        %v3116 = vld [vmem:[%s24 + $0x18] sm:$0xff]
        %v3117 = vld [vmem:[%s24 + $0x20] sm:$0xff]
        %v3118 = vld [vmem:[%s24 + $0x28] sm:$0xff]
        %v3119 = vld [vmem:[%s24 + $0x30] sm:$0xff]
        %v3120 = vld [vmem:[%s24 + $0x38] sm:$0xff]
        %v3121 = vld [vmem:[%s24 + $0x40] sm:$0xff]
        %v3122 = vld [vmem:[%s24 + $0x48] sm:$0xff]
        %v3123 = vld [vmem:[%s24 + $0x50] sm:$0xff]
        %v3124 = vld [vmem:[%s24 + $0x58] sm:$0xff]
        %v3125 = vld [vmem:[%s24 + $0x60] sm:$0xff]
        %v3126 = vld [vmem:[%s24 + $0x68] sm:$0xff]
        %v3127 = vld [vmem:[%s24 + $0x70] sm:$0xff]
        %v3128 = vld [vmem:[%s24 + $0x78] sm:$0xff]
        %v3129 = vld [vmem:[%s24 + $0x80] sm:$0xff]
        %v3130 = vld [vmem:[%s24 + $0x88] sm:$0xff]
        %v3131 = vld [vmem:[%s24 + $0x90] sm:$0xff]
        %v3132 = vld [vmem:[%s24 + $0x98] sm:$0xff]
        %v3133 = vld [vmem:[%s24 + $0xa0] sm:$0xff]
        %v3134 = vld [vmem:[%s24 + $0xa8] sm:$0xff]
        %v3135 = vld [vmem:[%s24 + $0xb0] sm:$0xff]
        %v3136 = vld [vmem:[%s24 + $0xb8] sm:$0xff]
        %v3137 = vld [vmem:[%s24 + $0xc0] sm:$0xff]
        %v3138 = vld [vmem:[%s24 + $0xc8] sm:$0xff]
        %v3139 = vld [vmem:[%s24 + $0xd0] sm:$0xff]
        %v3140 = vld [vmem:[%s24 + $0xd8] sm:$0xff]
        %v3141 = vld [vmem:[%s24 + $0xe0] sm:$0xff]
        %v3142 = vld [vmem:[%s24 + $0xe8] sm:$0xff]
        %v3143 = vld [vmem:[%s24 + $0xf0] sm:$0xff]
        %v3144 = vld [vmem:[%s24 + $0xf8] sm:$0xff]
        %3145 = vmatprep.subr.mxu0 0.0
        %3146 = vmatpush1.msra.mxu0 %v3128
        %3147 = vmatprep.subr.mxu0 0.0
        %3148 = vmatpush1.msra.mxu0 %v3127
        %3149 = vmatprep.subr.mxu0 0.0
        %3150 = vmatpush1.msra.mxu0 %v3126
        %3151 = vmatprep.subr.mxu0 0.0
        %3152 = vmatpush1.msra.mxu0 %v3125
        %3153 = vmatprep.subr.mxu0 0.0
        %3154 = vmatpush1.msra.mxu0 %v3124
        %3155 = vmatprep.subr.mxu0 0.0
        %3156 = vmatpush1.msra.mxu0 %v3123
        %3157 = vmatprep.subr.mxu0 0.0
        %3158 = vmatpush1.msra.mxu0 %v3122
        %3159 = vmatprep.subr.mxu0 0.0
        %3160 = vmatpush1.msra.mxu0 %v3121
        %3161 = vmatprep.subr.mxu0 0.0
        %3162 = vmatpush1.msra.mxu0 %v3120
        %3163 = vmatprep.subr.mxu0 0.0
        %3164 = vmatpush1.msra.mxu0 %v3119
        %3165 = vmatprep.subr.mxu0 0.0
        %3166 = vmatpush1.msra.mxu0 %v3118
        %3167 = vmatprep.subr.mxu0 0.0
        %3168 = vmatpush1.msra.mxu0 %v3117
        %3169 = vmatprep.subr.mxu0 0.0
        %3170 = vmatpush1.msra.mxu0 %v3116
        %3171 = vmatprep.subr.mxu0 0.0
        %3172 = vmatpush1.msra.mxu0 %v3115
        %3173 = vmatprep.subr.mxu0 0.0
        %3174 = vmatpush1.msra.mxu0 %v3114
        %3175 = vmatprep.subr.mxu0 0.0
        %3176 = vmatpush1.msra.mxu0 %v3113
        %3177 = vmatprep.subr.mxu0 0.0
        %3178 = vmatpush2.msra.mxu0 %v3144
        %3179 = vmatprep.subr.mxu0 0.0
        %3180 = vmatpush2.msra.mxu0 %v3143
        %3181 = vmatprep.subr.mxu0 0.0
        %3182 = vmatpush2.msra.mxu0 %v3142
        %3183 = vmatprep.subr.mxu0 0.0
        %3184 = vmatpush2.msra.mxu0 %v3141
        %3185 = vmatprep.subr.mxu0 0.0
        %3186 = vmatpush2.msra.mxu0 %v3140
        %3187 = vmatprep.subr.mxu0 0.0
        %3188 = vmatpush2.msra.mxu0 %v3139
        %3189 = vmatprep.subr.mxu0 0.0
        %3190 = vmatpush2.msra.mxu0 %v3138
        %3191 = vmatprep.subr.mxu0 0.0
        %3192 = vmatpush2.msra.mxu0 %v3137
        %3193 = vmatprep.subr.mxu0 0.0
        %3194 = vmatpush2.msra.mxu0 %v3136
        %3195 = vmatprep.subr.mxu0 0.0
        %3196 = vmatpush2.msra.mxu0 %v3135
        %3197 = vmatprep.subr.mxu0 0.0
        %3198 = vmatpush2.msra.mxu0 %v3134
        %3199 = vmatprep.subr.mxu0 0.0
        %3200 = vmatpush2.msra.mxu0 %v3133
        %3201 = vmatprep.subr.mxu0 0.0
        %3202 = vmatpush2.msra.mxu0 %v3132
        %3203 = vmatprep.subr.mxu0 0.0
        %3204 = vmatpush2.msra.mxu0 %v3131
        %3205 = vmatprep.subr.mxu0 0.0
        %3206 = vmatpush2.msra.mxu0 %v3130
        %3207 = vmatprep.subr.mxu0 0.0
        %3208 = vmatpush2.msra.mxu0 %v3129
        %3209 = vmatprep.mubr.f32.mxu0 %v3106
        %3210 = vmatmul.mubr.f32.gmra.mxu0 %v3105
        %v3211 = vpop.f32.mrf.mxu0
        %v3212 = vadd.f32 0.0, %v3211
        %v3213 = vpop.f32.mrf.mxu0
        %3214 = vmatprep.mubr.f32.mxu0 %v3108
        %3215 = vmatmul.mubr.f32.gmra.mxu0 %v3107
        %v3216 = vpop.f32.mrf.mxu0
        %v3217 = vadd.f32 0.0, %v3216
        %v3218 = vpop.f32.mrf.mxu0
        %3219 = vmatprep.mubr.f32.mxu0 %v3110
        %3220 = vmatmul.mubr.f32.gmra.mxu0 %v3109
        %v3221 = vpop.f32.mrf.mxu0
        %v3222 = vadd.f32 0.0, %v3221
        %v3223 = vpop.f32.mrf.mxu0
        %3224 = vmatprep.mubr.f32.mxu0 %v3112
        %3225 = vmatmul.mubr.f32.gmra.mxu0 %v3111
        %v3226 = vpop.f32.mrf.mxu0
        %v3227 = vadd.f32 0.0, %v3226
        %v3228 = vpop.f32.mrf.mxu0
        %3229 = vdwg.mxu0
        %v3230 = vpack.c.bf16 %v3107, %v3105
        %v3231 = vpack.c.bf16 %v3108, %v3106
        %v3232 = vpack.c.bf16 %v3111, %v3109
        %v3233 = vpack.c.bf16 %v3112, %v3110
        %3250 = vrot.lane.b32.xlu0 %v2771, 96
        %v3251 = vpop.permute.xlu0 %3250
        %3252 = vrot.lane.b32.xlu0 %v2772, 96
        %v3253 = vpop.permute.xlu0 %3252
        %3254 = vrot.lane.b32.xlu0 %v2773, 96
        %v3255 = vpop.permute.xlu0 %3254
        %3256 = vrot.lane.b32.xlu0 %v2774, 96
        %v3257 = vpop.permute.xlu0 %3256
        %3258 = vrot.lane.b32.xlu0 %v2775, 96
        %v3259 = vpop.permute.xlu0 %3258
        %3260 = vrot.lane.b32.xlu0 %v2776, 96
        %v3261 = vpop.permute.xlu0 %3260
        %3262 = vrot.lane.b32.xlu0 %v2777, 96
        %v3263 = vpop.permute.xlu0 %3262
        %3264 = vrot.lane.b32.xlu0 %v2778, 96
        %v3265 = vpop.permute.xlu0 %3264
        %3266 = vrot.lane.b32.xlu0 %v2779, 96
        %v3267 = vpop.permute.xlu0 %3266
        %3268 = vrot.lane.b32.xlu0 %v2780, 96
        %v3269 = vpop.permute.xlu0 %3268
        %3270 = vrot.lane.b32.xlu0 %v2781, 96
        %v3271 = vpop.permute.xlu0 %3270
        %3272 = vrot.lane.b32.xlu0 %v2782, 96
        %v3273 = vpop.permute.xlu0 %3272
        %3274 = vrot.lane.b32.xlu0 %v2783, 96
        %v3275 = vpop.permute.xlu0 %3274
        %3276 = vrot.lane.b32.xlu0 %v2784, 96
        %v3277 = vpop.permute.xlu0 %3276
        %3278 = vrot.lane.b32.xlu0 %v2785, 96
        %v3279 = vpop.permute.xlu0 %3278
        %3280 = vrot.lane.b32.xlu0 %v2786, 96
        %v3281 = vpop.permute.xlu0 %3280
        %3298 = vmatprep.subr.bf16.mxu0 0
        %3299 = vmatpush1.bf16.msra.mxu0 %v3265
        %3300 = vmatprep.subr.bf16.mxu0 0
        %3301 = vmatpush1.bf16.msra.mxu0 %v3263
        %3302 = vmatprep.subr.bf16.mxu0 0
        %3303 = vmatpush1.bf16.msra.mxu0 %v3261
        %3304 = vmatprep.subr.bf16.mxu0 0
        %3305 = vmatpush1.bf16.msra.mxu0 %v3259
        %3306 = vmatprep.subr.bf16.mxu0 0
        %3307 = vmatpush1.bf16.msra.mxu0 %v3257
        %3308 = vmatprep.subr.bf16.mxu0 0
        %3309 = vmatpush1.bf16.msra.mxu0 %v3255
        %3310 = vmatprep.subr.bf16.mxu0 0
        %3311 = vmatpush1.bf16.msra.mxu0 %v3253
        %3312 = vmatprep.subr.bf16.mxu0 0
        %3313 = vmatpush1.bf16.msra.mxu0 %v3251
        %3314 = vmatprep.subr.bf16.mxu0 0
        %3315 = vmatpush2.bf16.msra.mxu0 %v3281
        %3316 = vmatprep.subr.bf16.mxu0 0
        %3317 = vmatpush2.bf16.msra.mxu0 %v3279
        %3318 = vmatprep.subr.bf16.mxu0 0
        %3319 = vmatpush2.bf16.msra.mxu0 %v3277
        %3320 = vmatprep.subr.bf16.mxu0 0
        %3321 = vmatpush2.bf16.msra.mxu0 %v3275
        %3322 = vmatprep.subr.bf16.mxu0 0
        %3323 = vmatpush2.bf16.msra.mxu0 %v3273
        %3324 = vmatprep.subr.bf16.mxu0 0
        %3325 = vmatpush2.bf16.msra.mxu0 %v3271
        %3326 = vmatprep.subr.bf16.mxu0 0
        %3327 = vmatpush2.bf16.msra.mxu0 %v3269
        %3328 = vmatprep.subr.bf16.mxu0 0
        %3329 = vmatpush2.bf16.msra.mxu0 %v3267
        %3330 = vmatprep.mubr.bf16.mxu0 %v3231
        %3331 = vmatmul.mubr.bf16.gmra.mxu0 %v3230
        %v3332 = vpop.f32.mrf.mxu0
        %v3333 = vadd.f32 0.0, %v3332
        %v3334 = vpop.f32.mrf.mxu0
        %v3335 = vpop.f32.mrf.mxu0
        %v3336 = vadd.f32 0.0, %v3335
        %v3337 = vpop.f32.mrf.mxu0
        %3338 = vmatprep.mubr.bf16.mxu0 %v3233
        %3339 = vmatmul.mubr.bf16.gmra.mxu0 %v3232
        %v3340 = vpop.f32.mrf.mxu0
        %v3341 = vadd.f32 0.0, %v3340
        %v3342 = vpop.f32.mrf.mxu0
        %v3343 = vpop.f32.mrf.mxu0
        %v3344 = vadd.f32 0.0, %v3343
        %v3345 = vpop.f32.mrf.mxu0
        %3346 = vdwg.mxu0
        %v3347 = vpack.c.bf16 %v3336, %v3333
        %v3348 = vpack.c.bf16 %v3344, %v3341
        %v3349 = vld [vmem:[#allocation9] sm:$0xf]
        %v3350 = vld [vmem:[#allocation9 + $0x4] sm:$0xf]
        %v3351 = vld [vmem:[#allocation9 + $0x8] sm:$0xf]
        %v3352 = vld [vmem:[#allocation9 + $0xc] sm:$0xf]
        %v3353 = vld [vmem:[%s12] sm:$0x1]
        %v3355 = vlaneseq
        %v3356 = vshrl.u32 %v3355, 7
        %v3357 = vsub.s32 0, %v3356
        %v3358 = vrot.slane %v3353, %v3357
        %v3364 = vunpack.c.l.b16 %v3349
        %v3365 = vunpack.c.l.b16 %v3350
        %v3366 = vunpack.c.l.b16 %v3351
        %v3367 = vunpack.c.l.b16 %v3352
        %v3368 = vpack.c.b16 %v3365, %v3364
        %v3369 = vpack.c.b16 %v3367, %v3366
        %v3373 = vsel %vm1095, %v3347, 0
        %v3376 = vsel %vm1095, %v3348, 0
        %3378 = vmatprep.subr.bf16.mxu0 0
        %3379 = vmatpush1.bf16.msra.mxu0 0
        %3380 = vmatprep.subr.bf16.mxu0 0
        %3381 = vmatpush1.bf16.msra.mxu0 0
        %3382 = vmatprep.subr.bf16.mxu0 0
        %3383 = vmatpush1.bf16.msra.mxu0 0
        %3384 = vmatprep.subr.bf16.mxu0 0
        %3385 = vmatpush1.bf16.msra.mxu0 0
        %3386 = vmatprep.subr.bf16.mxu0 0
        %3387 = vmatpush1.bf16.msra.mxu0 0
        %3388 = vmatprep.subr.bf16.mxu0 0
        %3389 = vmatpush1.bf16.msra.mxu0 0
        %3390 = vmatprep.subr.bf16.mxu0 0
        %3391 = vmatpush1.bf16.msra.mxu0 %v3369
        %3392 = vmatprep.subr.bf16.mxu0 0
        %3393 = vmatpush1.bf16.msra.mxu0 %v3368
        %3394 = vmatprep.subr.bf16.mxu0 0
        %3395 = vmatpush2.bf16.msra.mxu0 0
        %3396 = vmatprep.subr.bf16.mxu0 0
        %3397 = vmatpush2.bf16.msra.mxu0 0
        %3398 = vmatprep.subr.bf16.mxu0 0
        %3399 = vmatpush2.bf16.msra.mxu0 0
        %3400 = vmatprep.subr.bf16.mxu0 0
        %3401 = vmatpush2.bf16.msra.mxu0 0
        %3402 = vmatprep.subr.bf16.mxu0 0
        %3403 = vmatpush2.bf16.msra.mxu0 0
        %3404 = vmatprep.subr.bf16.mxu0 0
        %3405 = vmatpush2.bf16.msra.mxu0 0
        %3406 = vmatprep.subr.bf16.mxu0 0
        %3407 = vmatpush2.bf16.msra.mxu0 0
        %3408 = vmatprep.subr.bf16.mxu0 0
        %3409 = vmatpush2.bf16.msra.mxu0 0
        %3410 = vmatprep.mubr.bf16.mxu0 0
        %3411 = vmatmul.mubr.bf16.gmra.mxu0 %v3373
        %v3412 = vpop.f32.mrf.mxu0
        %v3413 = vadd.f32 %v3358, %v3412
        %v3414 = vpop.f32.mrf.mxu0
        %v3415 = vpop.f32.mrf.mxu0
        %v3416 = vadd.f32 %v3358, %v3415
        %v3417 = vpop.f32.mrf.mxu0
        %3418 = vmatprep.mubr.bf16.mxu0 0
        %3419 = vmatmul.mubr.bf16.gmra.mxu0 %v3376
        %v3420 = vpop.f32.mrf.mxu0
        %v3421 = vadd.f32 %v3358, %v3420
        %v3422 = vpop.f32.mrf.mxu0
        %v3423 = vpop.f32.mrf.mxu0
        %v3424 = vadd.f32 %v3358, %v3423
        %v3425 = vpop.f32.mrf.mxu0
        %3426 = vdwg.mxu0
        %v3427 = vpack.c.bf16 %v3416, %v3413
        %v3428 = vpack.c.bf16 %v3424, %v3421
        %v3429 = vld [vmem:[#allocation10] sm:$0xf]
        %v3430 = vld [vmem:[#allocation10 + $0x4] sm:$0xf]
        %v3431 = vld [vmem:[#allocation10 + $0x8] sm:$0xf]
        %v3432 = vld [vmem:[#allocation10 + $0xc] sm:$0xf]
        %v3433 = vld [vmem:[#allocation12] sm:$0x1]
        %v3435 = vlaneseq
        %v3436 = vshrl.u32 %v3435, 7
        %v3437 = vsub.s32 0, %v3436
        %v3438 = vrot.slane %v3433, %v3437
        %v3444 = vunpack.c.l.b16 %v3429
        %v3445 = vunpack.c.l.b16 %v3430
        %v3446 = vunpack.c.l.b16 %v3431
        %v3447 = vunpack.c.l.b16 %v3432
        %v3448 = vpack.c.b16 %v3445, %v3444
        %v3449 = vpack.c.b16 %v3447, %v3446
        %v3453 = vsel %vm1095, %v3427, 0
        %v3456 = vsel %vm1095, %v3428, 0
        %3458 = vmatprep.subr.bf16.mxu0 0
        %3459 = vmatpush1.bf16.msra.mxu0 0
        %3460 = vmatprep.subr.bf16.mxu0 0
        %3461 = vmatpush1.bf16.msra.mxu0 0
        %3462 = vmatprep.subr.bf16.mxu0 0
        %3463 = vmatpush1.bf16.msra.mxu0 0
        %3464 = vmatprep.subr.bf16.mxu0 0
        %3465 = vmatpush1.bf16.msra.mxu0 0
        %3466 = vmatprep.subr.bf16.mxu0 0
        %3467 = vmatpush1.bf16.msra.mxu0 0
        %3468 = vmatprep.subr.bf16.mxu0 0
        %3469 = vmatpush1.bf16.msra.mxu0 0
        %3470 = vmatprep.subr.bf16.mxu0 0
        %3471 = vmatpush1.bf16.msra.mxu0 %v3449
        %3472 = vmatprep.subr.bf16.mxu0 0
        %3473 = vmatpush1.bf16.msra.mxu0 %v3448
        %3474 = vmatprep.subr.bf16.mxu0 0
        %3475 = vmatpush2.bf16.msra.mxu0 0
        %3476 = vmatprep.subr.bf16.mxu0 0
        %3477 = vmatpush2.bf16.msra.mxu0 0
        %3478 = vmatprep.subr.bf16.mxu0 0
        %3479 = vmatpush2.bf16.msra.mxu0 0
        %3480 = vmatprep.subr.bf16.mxu0 0
        %3481 = vmatpush2.bf16.msra.mxu0 0
        %3482 = vmatprep.subr.bf16.mxu0 0
        %3483 = vmatpush2.bf16.msra.mxu0 0
        %3484 = vmatprep.subr.bf16.mxu0 0
        %3485 = vmatpush2.bf16.msra.mxu0 0
        %3486 = vmatprep.subr.bf16.mxu0 0
        %3487 = vmatpush2.bf16.msra.mxu0 0
        %3488 = vmatprep.subr.bf16.mxu0 0
        %3489 = vmatpush2.bf16.msra.mxu0 0
        %3490 = vmatprep.mubr.bf16.mxu0 0
        %3491 = vmatmul.mubr.bf16.gmra.mxu0 %v3453
        %v3492 = vpop.f32.mrf.mxu0
        %v3493 = vadd.f32 %v3438, %v3492
        %v3494 = vpop.f32.mrf.mxu0
        %v3495 = vpop.f32.mrf.mxu0
        %v3496 = vadd.f32 %v3438, %v3495
        %v3497 = vpop.f32.mrf.mxu0
        %3498 = vmatprep.mubr.bf16.mxu0 0
        %3499 = vmatmul.mubr.bf16.gmra.mxu0 %v3456
        %v3500 = vpop.f32.mrf.mxu0
        %v3501 = vadd.f32 %v3438, %v3500
        %v3502 = vpop.f32.mrf.mxu0
        %v3503 = vpop.f32.mrf.mxu0
        %v3504 = vadd.f32 %v3438, %v3503
        %v3505 = vpop.f32.mrf.mxu0
        %3506 = vdwg.mxu0
        %v3507 = vmax.f32 %v3493, 0.0
        %v3508 = vmax.f32 %v3496, 0.0
        %v3509 = vmax.f32 %v3501, 0.0
        %v3510 = vmax.f32 %v3504, 0.0
        %v3511 = vpack.c.bf16 %v3508, %v3507
        %v3512 = vpack.c.bf16 %v3510, %v3509
        %v3513 = vld [vmem:[%s15] sm:$0xf]
        %v3514 = vld [vmem:[%s15 + $0x4] sm:$0xf]
        %v3515 = vld [vmem:[%s15 + $0x8] sm:$0xf]
        %v3516 = vld [vmem:[%s15 + $0xc] sm:$0xf]
        %v3517 = vld [vmem:[%s15 + $0x10] sm:$0xf]
        %v3518 = vld [vmem:[%s15 + $0x14] sm:$0xf]
        %v3519 = vld [vmem:[%s15 + $0x18] sm:$0xf]
        %v3520 = vld [vmem:[%s15 + $0x1c] sm:$0xf]
        %v3521 = vld [vmem:[%s16] sm:$0x1]
        %v3523 = vlaneseq
        %v3524 = vshrl.u32 %v3523, 7
        %v3525 = vsub.s32 0, %v3524
        %v3526 = vrot.slane %v3521, %v3525
        %v3536 = vunpack.c.l.b16 %v3513
        %v3537 = vunpack.c.l.b16 %v3514
        %v3538 = vunpack.c.l.b16 %v3515
        %v3539 = vunpack.c.l.b16 %v3516
        %v3540 = vunpack.c.l.b16 %v3517
        %v3541 = vunpack.c.l.b16 %v3518
        %v3542 = vunpack.c.l.b16 %v3519
        %v3543 = vunpack.c.l.b16 %v3520
        %v3544 = vpack.c.b16 %v3537, %v3536
        %v3545 = vpack.c.b16 %v3539, %v3538
        %v3546 = vpack.c.b16 %v3541, %v3540
        %v3547 = vpack.c.b16 %v3543, %v3542
        %vm3552 = vcmask 523264
        %v3554 = vsel %vm3552, %v3511, 0
        %v3557 = vsel %vm3552, %v3512, 0
        %3559 = vmatprep.subr.bf16.mxu0 0
        %3560 = vmatpush1.bf16.msra.mxu0 0
        %3561 = vmatprep.subr.bf16.mxu0 0
        %3562 = vmatpush1.bf16.msra.mxu0 0
        %3563 = vmatprep.subr.bf16.mxu0 0
        %3564 = vmatpush1.bf16.msra.mxu0 0
        %3565 = vmatprep.subr.bf16.mxu0 0
        %3566 = vmatpush1.bf16.msra.mxu0 0
        %3567 = vmatprep.subr.bf16.mxu0 0
        %3568 = vmatpush1.bf16.msra.mxu0 %v3547
        %3569 = vmatprep.subr.bf16.mxu0 0
        %3570 = vmatpush1.bf16.msra.mxu0 %v3546
        %3571 = vmatprep.subr.bf16.mxu0 0
        %3572 = vmatpush1.bf16.msra.mxu0 %v3545
        %3573 = vmatprep.subr.bf16.mxu0 0
        %3574 = vmatpush1.bf16.msra.mxu0 %v3544
        %3575 = vmatprep.subr.bf16.mxu0 0
        %3576 = vmatpush2.bf16.msra.mxu0 0
        %3577 = vmatprep.subr.bf16.mxu0 0
        %3578 = vmatpush2.bf16.msra.mxu0 0
        %3579 = vmatprep.subr.bf16.mxu0 0
        %3580 = vmatpush2.bf16.msra.mxu0 0
        %3581 = vmatprep.subr.bf16.mxu0 0
        %3582 = vmatpush2.bf16.msra.mxu0 0
        %3583 = vmatprep.subr.bf16.mxu0 0
        %3584 = vmatpush2.bf16.msra.mxu0 0
        %3585 = vmatprep.subr.bf16.mxu0 0
        %3586 = vmatpush2.bf16.msra.mxu0 0
        %3587 = vmatprep.subr.bf16.mxu0 0
        %3588 = vmatpush2.bf16.msra.mxu0 0
        %3589 = vmatprep.subr.bf16.mxu0 0
        %3590 = vmatpush2.bf16.msra.mxu0 0
        %3591 = vmatprep.mubr.bf16.mxu0 0
        %3592 = vmatmul.mubr.bf16.gmra.mxu0 %v3554
        %v3593 = vpop.f32.mrf.mxu0
        %v3594 = vadd.f32 %v3526, %v3593
        %v3595 = vpop.f32.mrf.mxu0
        %v3596 = vpop.f32.mrf.mxu0
        %v3597 = vadd.f32 %v3526, %v3596
        %v3598 = vpop.f32.mrf.mxu0
        %3599 = vmatprep.mubr.bf16.mxu0 0
        %3600 = vmatmul.mubr.bf16.gmra.mxu0 %v3557
        %v3601 = vpop.f32.mrf.mxu0
        %v3602 = vadd.f32 %v3526, %v3601
        %v3603 = vpop.f32.mrf.mxu0
        %v3604 = vpop.f32.mrf.mxu0
        %v3605 = vadd.f32 %v3526, %v3604
        %v3606 = vpop.f32.mrf.mxu0
        %3607 = vdwg.mxu0
        %v3608 = vadd.f32 %v3594, %v2115
        %v3609 = vadd.f32 %v3597, %v2120
        %v3610 = vadd.f32 %v3602, %v2125
        %v3611 = vadd.f32 %v3605, %v2130
        %v3612 = vadd.f32 %v3608, %v3212
        %v3613 = vadd.f32 %v3609, %v3217
        %v3614 = vadd.f32 %v3610, %v3222
        %v3615 = vadd.f32 %v3611, %v3227
        %3616 = vst [vmem:[%s1054] sm:$0xff] %v3612
        %3617 = vst [vmem:[%s1054 + $0x8] sm:$0xff] %v3613
        %3618 = vst [vmem:[%s1054 + $0x10] sm:$0xff] %v3614
        %3619 = vst [vmem:[%s1054 + $0x18] sm:$0xff] %v3615
        %p3620 = scmp.lt.s32.totalorder %s46, 1
        %s3621 = scalar_select %p3620, %s46, 1
        %s3622 = smul.addr %s3621, 4
        %s3623 = smul.addr %s3622, 8
        %s3624 = scalar_lea.vmem %s27, %s3623
        // Predicated region
        $region189: #{_lambda_.1} parent=127 // pred_check
          %p3625 = pneg %p641
        $region190: #{_lambda_.1} parent=127 // pred_check_branch
          %3627 = sbr.rel (%p3625) target = $region192
        $region191: #{_lambda_.1} parent=127 // pred_region
          _
        $region192: #{_lambda_.1} parent=127 // pred_fallthru
          _
      $region128: #{_lambda_.1} parent=5 // pred_fallthru
        _
      %p3628 = scmp.le.s32.totalorder 2, %s41
      // Predicated region
      $region193: #{_lambda_.1} parent=5 // pred_check
        %p3629 = pneg %p3628
      $region194: #{_lambda_.1} parent=5 // pred_check_branch
        %3631 = sbr.rel (%p3629) target = $region196
      $region195: #{_lambda_.1} parent=5 // pred_region
        %s3632 = ssub.s32 %s41, 2
        // Predicated region
        $region197: #{_lambda_.1} parent=195 // pred_check
          %p3633 = pneg %p647
        $region198: #{_lambda_.1} parent=195 // pred_check_branch
          %3635 = sbr.rel (%p3633) target = $region200
        $region199: #{_lambda_.1} parent=195 // pred_region
          %p3636 = scmp.lt.s32.totalorder %s47, 1
          %s3637 = scalar_select %p3636, %s47, 1
          %s3638 = smul.addr %s3637, 4
          %s3639 = smul.addr %s3638, 8
          %s3640 = scalar_lea.vmem %s27, %s3639
        $region200: #{_lambda_.1} parent=195 // pred_fallthru
          _
      $region196: #{_lambda_.1} parent=5 // pred_fallthru
        _
    $region6: #{_lambda_.1} parent=1 // loop_footer
      %s45 = sadd.s32 1, %s41
    $region7: #{_lambda_.1} parent=1 // loop_footer_branch
      %40 = sbr.rel target = $region3
    $region8: #{_lambda_.1} parent=1 // loop_exit
      _
    %3641 = vsyncpa [#allocation3], 1
    %s3642 = scalar_lea.sflag [#allocation3], 1
    %3643 = vsyncpa %s3642, 1
    %3644 = vsyncpa [#allocation5], 1
    %3645 = vsyncpa [#allocation8], 1
    %3646 = vsyncpa [#allocation11], 1
    %3647 = vsyncpa [#allocation14], 1
    %3648 = vsyncpa [#allocation17], 1
    %3649 = vsyncpa [#allocation20], 1
    %3650 = vsyncpa [#allocation23], 1

</llo_original>
